<compile_context>
chip_gen: v7x
topology: tpu7x:2x2x1
jax: 0.10.0
libtpu: 0.0.40
codegen_flags: <defaults>
</compile_context>

<pallas_src>
import functools

import jax
import jax.numpy as jnp
from jax.experimental import pallas as pl
from jax.experimental.pallas import tpu as pltpu

EPS = 1e-5  # torch.nn.LayerNorm default
_SQRT1_2 = 0.7071067811865476


def _layernorm(x, gamma, beta):
    # Single-pass statistics: both reductions are independent -> XLU can issue
    # them back-to-back instead of serializing mean -> centered variance.
    m = jnp.mean(x, axis=-1, keepdims=True)
    m2 = jnp.mean(x * x, axis=-1, keepdims=True)
    var = m2 - m * m                               # f32 throughout (stability)
    return (x - m) * jax.lax.rsqrt(var + EPS) * gamma + beta


def _erf(x):
    # Abramowitz & Stegun 7.1.26 rational approximation, |err| <= 1.5e-7.
    # Uses only exp / FMA / select, all of which lower on Mosaic for every TPU gen.
    a1, a2, a3, a4, a5 = (0.254829592, -0.284496736, 1.421413741,
                          -1.453152027, 1.061405429)
    p = 0.3275911
    s = jnp.where(x >= 0.0, 1.0, -1.0)
    ax = jnp.abs(x)
    t = 1.0 / (1.0 + p * ax)
    poly = ((((a5 * t + a4) * t + a3) * t + a2) * t + a1) * t
    return s * (1.0 - poly * jnp.exp(-ax * ax))


def _gelu_erf(x):
    # torch.nn.GELU default (erf form), not the tanh approximation.
    return 0.5 * x * (1.0 + _erf(x * _SQRT1_2))


# ---------------------------------------------------------------------------
# Fused kernel: one grid step = one (cross-location + per-location) layer pair
# applied to a (Bblk*S, D) row-block that stays resident in VMEM across the
# trailing "arbitrary" layer axis (output block index is constant along it).
# ---------------------------------------------------------------------------
def mixer_layers_kernel(x_ref,
                        gc_ref, btc_ref, w1c_ref, b1c_ref, w2c_ref, b2c_ref,
                        gp_ref, btp_ref, w1p_ref, b1p_ref, w2p_ref, b2p_ref,
                        o_ref, *, bblk, seq):
    l = pl.program_id(1)

    # Load the input rows into the resident output block once per row-block.
    @pl.when(l == 0)
    def _():
        o_ref[...] = x_ref[...]

    x = o_ref[...]                                    # (Bblk*S, D) f32, VMEM-resident

    # --- cross-location (token-mixing) block: x + W2 @ gelu(W1 @ LN(x)) ------
    xn = _layernorm(x, gc_ref[0], btc_ref[0])         # (Bblk*S, D) f32
    w1c = w1c_ref[0]                                  # (Hs, S)  bf16, lane-dense
    w2c = w2c_ref[0]                                  # (S, Hs)  bf16, lane-dense
    b1c = b1c_ref[0]                                  # (Hs, 1)  f32
    b2c = b2c_ref[0]                                  # (S, 1)   f32
    # Static unroll over the batch sub-block: each dot is a full lane-dense
    # (Hs,S)@(S,D) MXU pass (vs the previous (32,8)@(8,128)).
    y_rows = []
    for b in range(bblk):
        xb = xn[b * seq:(b + 1) * seq, :].astype(jnp.bfloat16)          # (S, D)
        h = jnp.dot(w1c, xb, preferred_element_type=jnp.float32) + b1c  # (Hs, D) f32
        h = _gelu_erf(h)   # f32 GELU (safe on v5e: no bf16 VPU/EUP there)
        yb = jnp.dot(w2c, h.astype(jnp.bfloat16),
                     preferred_element_type=jnp.float32) + b2c          # (S, D) f32
        y_rows.append(yb)
    x = x + jnp.concatenate(y_rows, axis=0)           # (Bblk*S, D)

    # --- per-location (channel) block: x + gelu(LN(x) @ W1) @ W2 -------------
    # Batch+sequence rows feed the MXU together: M = Bblk*S.
    xn = _layernorm(x, gp_ref[0], btp_ref[0])         # (Bblk*S, D)
    h = jnp.dot(xn.astype(jnp.bfloat16), w1p_ref[0],
                preferred_element_type=jnp.float32) + b1p_ref[0]        # (Bblk*S, Hd)
    h = _gelu_erf(h)
    x = x + (jnp.dot(h.astype(jnp.bfloat16), w2p_ref[0],
                     preferred_element_type=jnp.float32) + b2p_ref[0])  # (Bblk*S, D)

    o_ref[...] = x


def _layer_spec(shape):
    # Per-layer-stacked parameter: block is one layer slice (selected by the layer
    # grid index); remaining dims are the full array dims.
    # NOTE: pipeline_mode=pl.Buffered(3) on the big channel-MLP weights is the next
    # knob if the layer-axis weight DMA becomes exposed at real model dims.
    nd = len(shape)
    return pl.BlockSpec((1,) + tuple(shape[1:]),
                        lambda g, l: (l,) + (0,) * (nd - 1))


def _vmem_limit_bytes(R, S, D, Hs, Hd):
    # Budget derived from the actual tile plan (not a fixed number), capped at
    # v7x's 64 MiB physical VMEM.
    f32, bf16 = 4, 2
    act = 2 * 2 * R * D * f32                                  # x-in + resident out, double-buffered
    w = bf16 * (Hs * S + S * Hs + D * Hd + Hd * D)             # per-layer matmul weights
    small = f32 * (128 * (Hs + S) + 8 * (4 * D + Hd + D))      # lane/sublane-padded biases + LN params
    stream = 2 * (w + small)                                   # double-buffered along the layer axis
    tmp = 4 * R * max(Hd, D) * f32                             # f32 intermediates (h / gelu / residual)
    est = act + stream + tmp
    return int(min(64 << 20, max(8 << 20, 2 * est)))           # 2x slack, floor 8 MiB, cap 64 MiB


# ---------------------------------------------------------------------------
# Wrapper: one pallas_call for the whole backbone
# ---------------------------------------------------------------------------
def alternating_backbone(x, p, *, batch_block=2):
    B, S, D = x.shape
    depth, Hs, _ = p["w1_c"].shape
    Hd = p["w1_p"].shape[2]
    assert B % batch_block == 0
    G = B // batch_block          # keep >= 2 so both v7x TensorCores get work
    R = batch_block * S

    # Fold batch into the row (sublane) axis: weights now stream from HBM only G
    # times (not B times) and the channel MLP sees M = R rows.
    xr = x.reshape(B * S, D)

    kernel = functools.partial(mixer_layers_kernel, bblk=batch_block, seq=S)

    grid_spec = pltpu.PrefetchScalarGridSpec(
        num_scalar_prefetch=0,
        grid=(G, depth),                     # layer (resident/reduction) axis last
        in_specs=[
            pl.BlockSpec((R, D), lambda g, l: (g, 0)),   # x rows (only read at l==0)
            _layer_spec((depth, 1, D)),       # gamma_cross
            _layer_spec((depth, 1, D)),       # beta_cross
            _layer_spec((depth, Hs, S)),      # w1_cross (bf16, lane-dense)
            _layer_spec((depth, Hs, 1)),      # b1_cross
            _layer_spec((depth, S, Hs)),      # w2_cross (bf16, lane-dense)
            _layer_spec((depth, S, 1)),       # b2_cross
            _layer_spec((depth, 1, D)),       # gamma_per
            _layer_spec((depth, 1, D)),       # beta_per
            _layer_spec((depth, D, Hd)),      # w1_per (bf16)
            _layer_spec((depth, 1, Hd)),      # b1_per (lane-dense)
            _layer_spec((depth, Hd, D)),      # w2_per (bf16)
            _layer_spec((depth, 1, D)),       # b2_per (lane-dense)
        ],
        out_specs=pl.BlockSpec((R, D), lambda g, l: (g, 0)),   # resident across l
    )

    out = pl.pallas_call(
        kernel,
        out_shape=jax.ShapeDtypeStruct((B * S, D), jnp.float32),
        grid_spec=grid_spec,
        compiler_params=pltpu.CompilerParams(
            dimension_semantics=("parallel", "arbitrary"),
            vmem_limit_bytes=_vmem_limit_bytes(R, S, D, Hs, Hd),
        ),
    )(xr,
      p["g_c"], p["bt_c"], p["w1_c"], p["b1_c"], p["w2_c"], p["b2_c"],
      p["g_p"], p["bt_p"], p["w1_p"], p["b1_p"], p["w2_p"], p["b2_p"])

    return out.reshape(B, S, D)


# ---------------------------------------------------------------------------
# Deterministic parameter init (synthetic, not a checkpoint). f32 master copy.
# ---------------------------------------------------------------------------
def init_params(key, S, D, Hs, Hd, depth):
    k = jax.random.split(key, 8)
    f32 = jnp.float32
    return dict(
        g_c=jnp.ones((depth, 1, D), f32),
        bt_c=jnp.zeros((depth, 1, D), f32),
        w1_c=0.02 * jax.random.normal(k[0], (depth, Hs, S), f32),
        b1_c=0.02 * jax.random.normal(k[1], (depth, Hs, 1), f32),
        w2_c=0.02 * jax.random.normal(k[2], (depth, S, Hs), f32),
        b2_c=0.02 * jax.random.normal(k[3], (depth, S, 1), f32),
        g_p=jnp.ones((depth, 1, D), f32),
        bt_p=jnp.zeros((depth, 1, D), f32),
        w1_p=0.02 * jax.random.normal(k[4], (depth, D, Hd), f32),
        b1_p=0.02 * jax.random.normal(k[5], (depth, 1, Hd), f32),
        w2_p=0.02 * jax.random.normal(k[6], (depth, Hd, D), f32),
        b2_p=0.02 * jax.random.normal(k[7], (depth, 1, D), f32),
    )


def quantize_weights(p):
    # Kernel-side copy: matmul weights in bf16 (halves the dominant weight HBM
    # traffic); LayerNorm params and biases stay f32.
    q = dict(p)
    for name in ("w1_c", "w2_c", "w1_p", "w2_p"):
        q[name] = p[name].astype(jnp.bfloat16)
    return q


# ---------------------------------------------------------------------------
# Pure-JAX f32 reference (true f32 weights, exact erf GELU) for correctness.
# ---------------------------------------------------------------------------
def ref_forward(x, p):
    depth = p["w1_c"].shape[0]
    for l in range(depth):
        xn = _layernorm(x, p["g_c"][l], p["bt_c"][l])
        h = jnp.einsum("hs,bsd->bhd", p["w1_c"][l], xn) + p["b1_c"][l]
        h = jax.nn.gelu(h, approximate=False)
        x = x + jnp.einsum("sh,bhd->bsd", p["w2_c"][l], h) + p["b2_c"][l]

        xn = _layernorm(x, p["g_p"][l], p["bt_p"][l])
        h = jnp.einsum("bsd,dh->bsh", xn, p["w1_p"][l]) + p["b1_p"][l]
        h = jax.nn.gelu(h, approximate=False)
        x = x + jnp.einsum("bsh,hd->bsd", h, p["w2_p"][l]) + p["b2_p"][l]
    return x


if __name__ == "__main__":
    # Lane-dense demo shapes: S, D, Hs multiples of 128 -> lane-dense token-mixing
    # weights and full-width MXU passes; Hd = 2*D.  Small enough to run instantly.
    B, S, D, Hs, Hd, depth = 4, 128, 128, 128, 256, 2
    key = jax.random.PRNGKey(0)
    key, xkey = jax.random.split(key)
    x = jax.random.normal(xkey, (B, S, D), jnp.float32)
    params = init_params(key, S, D, Hs, Hd, depth)          # f32 master (reference)
    kparams = quantize_weights(params)                      # bf16 weights (kernel)

    out = alternating_backbone(x, kparams, batch_block=2)   # grid=(2, depth)
    out = jax.block_until_ready(out)

    ref = ref_forward(x, params)
    assert out.shape == (B, S, D)
    # bf16 MXU operands vs a true-f32 reference -> relaxed tolerance.
    assert jnp.allclose(out, ref, atol=2e-2, rtol=2e-2), "Pallas output mismatch vs reference"
    print("KERNEL_OK")
</pallas_src>

<mosaic_0001>
module attributes {stable_mosaic.version = 11 : i64} {
  func.func @mixer_layers_kernel(%arg0: i32, %arg1: i32, %arg2: memref<256x128xf32, #tpu.memory_space<vmem>>, %arg3: memref<1x1x128xf32, #tpu.memory_space<vmem>>, %arg4: memref<1x1x128xf32, #tpu.memory_space<vmem>>, %arg5: memref<1x128x128xbf16, #tpu.memory_space<vmem>>, %arg6: memref<1x128x1xf32, #tpu.memory_space<vmem>>, %arg7: memref<1x128x128xbf16, #tpu.memory_space<vmem>>, %arg8: memref<1x128x1xf32, #tpu.memory_space<vmem>>, %arg9: memref<1x1x128xf32, #tpu.memory_space<vmem>>, %arg10: memref<1x1x128xf32, #tpu.memory_space<vmem>>, %arg11: memref<1x128x256xbf16, #tpu.memory_space<vmem>>, %arg12: memref<1x1x256xf32, #tpu.memory_space<vmem>>, %arg13: memref<1x256x128xbf16, #tpu.memory_space<vmem>>, %arg14: memref<1x1x128xf32, #tpu.memory_space<vmem>>, %arg15: memref<256x128xf32, #tpu.memory_space<vmem>>) attributes {dimension_semantics = [#tpu.dimension_semantics<parallel>, #tpu.dimension_semantics<arbitrary>], iteration_bounds = array<i64: 2, 2>, scalar_prefetch = 0 : i64, scratch_operands = 0 : i64, tpu.core_type = #tpu.core_type<tc>, window_params = [{transform_indices = @transform_0, window_bounds = array<i64: 256, 128>}, {transform_indices = @transform_1, window_bounds = array<i64: 1, 1, 128>}, {transform_indices = @transform_2, window_bounds = array<i64: 1, 1, 128>}, {transform_indices = @transform_3, window_bounds = array<i64: 1, 128, 128>}, {transform_indices = @transform_4, window_bounds = array<i64: 1, 128, 1>}, {transform_indices = @transform_5, window_bounds = array<i64: 1, 128, 128>}, {transform_indices = @transform_6, window_bounds = array<i64: 1, 128, 1>}, {transform_indices = @transform_7, window_bounds = array<i64: 1, 1, 128>}, {transform_indices = @transform_8, window_bounds = array<i64: 1, 1, 128>}, {transform_indices = @transform_9, window_bounds = array<i64: 1, 128, 256>}, {transform_indices = @transform_10, window_bounds = array<i64: 1, 1, 256>}, {transform_indices = @transform_11, window_bounds = array<i64: 1, 256, 128>}, {transform_indices = @transform_12, window_bounds = array<i64: 1, 1, 128>}, {transform_indices = @transform_13, window_bounds = array<i64: 256, 128>}]} {
    %c0_i32 = arith.constant 0 : i32
    %0 = arith.cmpi eq, %arg1, %c0_i32 : i32
    %1 = arith.extui %0 : i1 to i32
    %c0_i32_0 = arith.constant 0 : i32
    %2 = arith.cmpi ne, %1, %c0_i32_0 : i32
    scf.if %2 {
      %c0_103 = arith.constant 0 : index
      %c0_104 = arith.constant 0 : index
      %225 = vector.load %arg2[%c0_103, %c0_104] : memref<256x128xf32, #tpu.memory_space<vmem>>, vector<256x128xf32>
      %c0_105 = arith.constant 0 : index
      %c0_106 = arith.constant 0 : index
      %226 = vector.load %arg15[%c0_105, %c0_106] : memref<256x128xf32, #tpu.memory_space<vmem>>, vector<256x128xf32>
      tpu.vector_store %arg15[%c0_105, %c0_106], %225 {strides = array<i32>} : memref<256x128xf32, #tpu.memory_space<vmem>>, vector<256x128xf32>,
    } else {
    }
    %c0 = arith.constant 0 : index
    %c0_1 = arith.constant 0 : index
    %3 = vector.load %arg15[%c0, %c0_1] : memref<256x128xf32, #tpu.memory_space<vmem>>, vector<256x128xf32>
    %c0_2 = arith.constant 0 : index
    %c0_3 = arith.constant 0 : index
    %c0_4 = arith.constant 0 : index
    %4 = vector.load %arg3[%c0_2, %c0_3, %c0_4] : memref<1x1x128xf32, #tpu.memory_space<vmem>>, vector<1x1x128xf32>
    %5 = vector.shape_cast %4 : vector<1x1x128xf32> to vector<1x128xf32>
    %c0_5 = arith.constant 0 : index
    %c0_6 = arith.constant 0 : index
    %c0_7 = arith.constant 0 : index
    %6 = vector.load %arg4[%c0_5, %c0_6, %c0_7] : memref<1x1x128xf32, #tpu.memory_space<vmem>>, vector<1x1x128xf32>
    %7 = vector.shape_cast %6 : vector<1x1x128xf32> to vector<1x128xf32>
    %cst = arith.constant dense<0.000000e+00> : vector<256xf32>
    %8 = vector.multi_reduction <add>, %3, %cst [1] : vector<256x128xf32> to vector<256xf32>
    %9 = vector.shape_cast %8 : vector<256xf32> to vector<256x1xf32>
    %cst_8 = arith.constant 1.280000e+02 : f32
    %10 = vector.broadcast %cst_8 : f32 to vector<256x1xf32>
    %11 = arith.divf %9, %10 : vector<256x1xf32>
    %12 = arith.mulf %3, %3 : vector<256x128xf32>
    %cst_9 = arith.constant dense<0.000000e+00> : vector<256xf32>
    %13 = vector.multi_reduction <add>, %12, %cst_9 [1] : vector<256x128xf32> to vector<256xf32>
    %14 = vector.shape_cast %13 : vector<256xf32> to vector<256x1xf32>
    %cst_10 = arith.constant 1.280000e+02 : f32
    %15 = vector.broadcast %cst_10 : f32 to vector<256x1xf32>
    %16 = arith.divf %14, %15 : vector<256x1xf32>
    %17 = arith.mulf %11, %11 : vector<256x1xf32>
    %18 = arith.subf %16, %17 : vector<256x1xf32>
    %19 = vector.broadcast %11 : vector<256x1xf32> to vector<256x128xf32>
    %20 = arith.subf %3, %19 : vector<256x128xf32>
    %cst_11 = arith.constant 9.99999974E-6 : f32
    %21 = vector.broadcast %cst_11 : f32 to vector<256x1xf32>
    %22 = arith.addf %18, %21 : vector<256x1xf32>
    %23 = math.rsqrt %22 : vector<256x1xf32>
    %24 = vector.broadcast %23 : vector<256x1xf32> to vector<256x128xf32>
    %25 = arith.mulf %20, %24 : vector<256x128xf32>
    %26 = vector.broadcast %5 : vector<1x128xf32> to vector<256x128xf32>
    %27 = arith.mulf %25, %26 : vector<256x128xf32>
    %28 = vector.broadcast %7 : vector<1x128xf32> to vector<256x128xf32>
    %29 = arith.addf %27, %28 : vector<256x128xf32>
    %c0_12 = arith.constant 0 : index
    %c0_13 = arith.constant 0 : index
    %c0_14 = arith.constant 0 : index
    %30 = vector.load %arg5[%c0_12, %c0_13, %c0_14] : memref<1x128x128xbf16, #tpu.memory_space<vmem>>, vector<1x128x128xbf16>
    %31 = vector.shape_cast %30 : vector<1x128x128xbf16> to vector<128x128xbf16>
    %c0_15 = arith.constant 0 : index
    %c0_16 = arith.constant 0 : index
    %c0_17 = arith.constant 0 : index
    %32 = vector.load %arg7[%c0_15, %c0_16, %c0_17] : memref<1x128x128xbf16, #tpu.memory_space<vmem>>, vector<1x128x128xbf16>
    %33 = vector.shape_cast %32 : vector<1x128x128xbf16> to vector<128x128xbf16>
    %c0_18 = arith.constant 0 : index
    %c0_19 = arith.constant 0 : index
    %c0_20 = arith.constant 0 : index
    %34 = vector.load %arg6[%c0_18, %c0_19, %c0_20] : memref<1x128x1xf32, #tpu.memory_space<vmem>>, vector<1x128x1xf32>
    %35 = vector.shape_cast %34 : vector<1x128x1xf32> to vector<128x1xf32>
    %c0_21 = arith.constant 0 : index
    %c0_22 = arith.constant 0 : index
    %c0_23 = arith.constant 0 : index
    %36 = vector.load %arg8[%c0_21, %c0_22, %c0_23] : memref<1x128x1xf32, #tpu.memory_space<vmem>>, vector<1x128x1xf32>
    %37 = vector.shape_cast %36 : vector<1x128x1xf32> to vector<128x1xf32>
    %38 = vector.extract_strided_slice %29 {offsets = [0, 0], sizes = [128, 128], strides = [1, 1]} : vector<256x128xf32> to vector<128x128xf32>
    %39 = arith.truncf %38 : vector<128x128xf32> to vector<128x128xbf16>
    %cst_24 = arith.constant dense<0.000000e+00> : vector<128x128xf32>
    %40 = tpu.matmul %31, %39, %cst_24 {dimension_numbers = #tpu.dot_dimension_numbers<[1], [0], [0], [1], [0, 0, 1, 1], [], []>} : vector<128x128xbf16>, vector<128x128xbf16>, vector<128x128xf32> -> vector<128x128xf32>
    %41 = vector.broadcast %35 : vector<128x1xf32> to vector<128x128xf32>
    %42 = arith.addf %40, %41 : vector<128x128xf32>
    %cst_25 = arith.constant 5.000000e-01 : f32
    %43 = vector.broadcast %cst_25 : f32 to vector<128x128xf32>
    %44 = arith.mulf %43, %42 : vector<128x128xf32>
    %cst_26 = arith.constant 0.707106769 : f32
    %45 = vector.broadcast %cst_26 : f32 to vector<128x128xf32>
    %46 = arith.mulf %42, %45 : vector<128x128xf32>
    %cst_27 = arith.constant 0.000000e+00 : f32
    %47 = vector.broadcast %cst_27 : f32 to vector<128x128xf32>
    %48 = arith.cmpf oge, %46, %47 : vector<128x128xf32>
    %cst_28 = arith.constant 1.000000e+00 : f32
    %cst_29 = arith.constant -1.000000e+00 : f32
    %49 = vector.broadcast %cst_28 : f32 to vector<128x128xf32>
    %50 = vector.broadcast %cst_29 : f32 to vector<128x128xf32>
    %51 = arith.select %48, %49, %50 : vector<128x128xi1>, vector<128x128xf32>
    %52 = math.absf %46 : vector<128x128xf32>
    %cst_30 = arith.constant 0.327591091 : f32
    %53 = vector.broadcast %cst_30 : f32 to vector<128x128xf32>
    %54 = arith.mulf %53, %52 : vector<128x128xf32>
    %cst_31 = arith.constant 1.000000e+00 : f32
    %55 = vector.broadcast %cst_31 : f32 to vector<128x128xf32>
    %56 = arith.addf %55, %54 : vector<128x128xf32>
    %cst_32 = arith.constant 1.000000e+00 : f32
    %57 = vector.broadcast %cst_32 : f32 to vector<128x128xf32>
    %58 = arith.divf %57, %56 : vector<128x128xf32>
    %cst_33 = arith.constant 1.06140542 : f32
    %59 = vector.broadcast %cst_33 : f32 to vector<128x128xf32>
    %60 = arith.mulf %59, %58 : vector<128x128xf32>
    %cst_34 = arith.constant -1.45315206 : f32
    %61 = vector.broadcast %cst_34 : f32 to vector<128x128xf32>
    %62 = arith.addf %60, %61 : vector<128x128xf32>
    %63 = arith.mulf %62, %58 : vector<128x128xf32>
    %cst_35 = arith.constant 1.42141378 : f32
    %64 = vector.broadcast %cst_35 : f32 to vector<128x128xf32>
    %65 = arith.addf %63, %64 : vector<128x128xf32>
    %66 = arith.mulf %65, %58 : vector<128x128xf32>
    %cst_36 = arith.constant -0.284496725 : f32
    %67 = vector.broadcast %cst_36 : f32 to vector<128x128xf32>
    %68 = arith.addf %66, %67 : vector<128x128xf32>
    %69 = arith.mulf %68, %58 : vector<128x128xf32>
    %cst_37 = arith.constant 0.254829586 : f32
    %70 = vector.broadcast %cst_37 : f32 to vector<128x128xf32>
    %71 = arith.addf %69, %70 : vector<128x128xf32>
    %72 = arith.mulf %71, %58 : vector<128x128xf32>
    %cst_38 = arith.constant 0.000000e+00 : f32
    %73 = vector.broadcast %cst_38 : f32 to vector<128x128xf32>
    %74 = arith.subf %73, %52 : vector<128x128xf32>
    %75 = arith.mulf %74, %52 : vector<128x128xf32>
    %76 = math.exp %75 : vector<128x128xf32>
    %77 = arith.mulf %72, %76 : vector<128x128xf32>
    %cst_39 = arith.constant 1.000000e+00 : f32
    %78 = vector.broadcast %cst_39 : f32 to vector<128x128xf32>
    %79 = arith.subf %78, %77 : vector<128x128xf32>
    %80 = arith.mulf %51, %79 : vector<128x128xf32>
    %cst_40 = arith.constant 1.000000e+00 : f32
    %81 = vector.broadcast %cst_40 : f32 to vector<128x128xf32>
    %82 = arith.addf %81, %80 : vector<128x128xf32>
    %83 = arith.mulf %44, %82 : vector<128x128xf32>
    %84 = arith.truncf %83 : vector<128x128xf32> to vector<128x128xbf16>
    %cst_41 = arith.constant dense<0.000000e+00> : vector<128x128xf32>
    %85 = tpu.matmul %33, %84, %cst_41 {dimension_numbers = #tpu.dot_dimension_numbers<[1], [0], [0], [1], [0, 0, 1, 1], [], []>} : vector<128x128xbf16>, vector<128x128xbf16>, vector<128x128xf32> -> vector<128x128xf32>
    %86 = vector.broadcast %37 : vector<128x1xf32> to vector<128x128xf32>
    %87 = arith.addf %85, %86 : vector<128x128xf32>
    %88 = vector.extract_strided_slice %29 {offsets = [128, 0], sizes = [128, 128], strides = [1, 1]} : vector<256x128xf32> to vector<128x128xf32>
    %89 = arith.truncf %88 : vector<128x128xf32> to vector<128x128xbf16>
    %cst_42 = arith.constant dense<0.000000e+00> : vector<128x128xf32>
    %90 = tpu.matmul %31, %89, %cst_42 {dimension_numbers = #tpu.dot_dimension_numbers<[1], [0], [0], [1], [0, 0, 1, 1], [], []>} : vector<128x128xbf16>, vector<128x128xbf16>, vector<128x128xf32> -> vector<128x128xf32>
    %91 = vector.broadcast %35 : vector<128x1xf32> to vector<128x128xf32>
    %92 = arith.addf %90, %91 : vector<128x128xf32>
    %cst_43 = arith.constant 5.000000e-01 : f32
    %93 = vector.broadcast %cst_43 : f32 to vector<128x128xf32>
    %94 = arith.mulf %93, %92 : vector<128x128xf32>
    %cst_44 = arith.constant 0.707106769 : f32
    %95 = vector.broadcast %cst_44 : f32 to vector<128x128xf32>
    %96 = arith.mulf %92, %95 : vector<128x128xf32>
    %cst_45 = arith.constant 0.000000e+00 : f32
    %97 = vector.broadcast %cst_45 : f32 to vector<128x128xf32>
    %98 = arith.cmpf oge, %96, %97 : vector<128x128xf32>
    %cst_46 = arith.constant 1.000000e+00 : f32
    %cst_47 = arith.constant -1.000000e+00 : f32
    %99 = vector.broadcast %cst_46 : f32 to vector<128x128xf32>
    %100 = vector.broadcast %cst_47 : f32 to vector<128x128xf32>
    %101 = arith.select %98, %99, %100 : vector<128x128xi1>, vector<128x128xf32>
    %102 = math.absf %96 : vector<128x128xf32>
    %cst_48 = arith.constant 0.327591091 : f32
    %103 = vector.broadcast %cst_48 : f32 to vector<128x128xf32>
    %104 = arith.mulf %103, %102 : vector<128x128xf32>
    %cst_49 = arith.constant 1.000000e+00 : f32
    %105 = vector.broadcast %cst_49 : f32 to vector<128x128xf32>
    %106 = arith.addf %105, %104 : vector<128x128xf32>
    %cst_50 = arith.constant 1.000000e+00 : f32
    %107 = vector.broadcast %cst_50 : f32 to vector<128x128xf32>
    %108 = arith.divf %107, %106 : vector<128x128xf32>
    %cst_51 = arith.constant 1.06140542 : f32
    %109 = vector.broadcast %cst_51 : f32 to vector<128x128xf32>
    %110 = arith.mulf %109, %108 : vector<128x128xf32>
    %cst_52 = arith.constant -1.45315206 : f32
    %111 = vector.broadcast %cst_52 : f32 to vector<128x128xf32>
    %112 = arith.addf %110, %111 : vector<128x128xf32>
    %113 = arith.mulf %112, %108 : vector<128x128xf32>
    %cst_53 = arith.constant 1.42141378 : f32
    %114 = vector.broadcast %cst_53 : f32 to vector<128x128xf32>
    %115 = arith.addf %113, %114 : vector<128x128xf32>
    %116 = arith.mulf %115, %108 : vector<128x128xf32>
    %cst_54 = arith.constant -0.284496725 : f32
    %117 = vector.broadcast %cst_54 : f32 to vector<128x128xf32>
    %118 = arith.addf %116, %117 : vector<128x128xf32>
    %119 = arith.mulf %118, %108 : vector<128x128xf32>
    %cst_55 = arith.constant 0.254829586 : f32
    %120 = vector.broadcast %cst_55 : f32 to vector<128x128xf32>
    %121 = arith.addf %119, %120 : vector<128x128xf32>
    %122 = arith.mulf %121, %108 : vector<128x128xf32>
    %cst_56 = arith.constant 0.000000e+00 : f32
    %123 = vector.broadcast %cst_56 : f32 to vector<128x128xf32>
    %124 = arith.subf %123, %102 : vector<128x128xf32>
    %125 = arith.mulf %124, %102 : vector<128x128xf32>
    %126 = math.exp %125 : vector<128x128xf32>
    %127 = arith.mulf %122, %126 : vector<128x128xf32>
    %cst_57 = arith.constant 1.000000e+00 : f32
    %128 = vector.broadcast %cst_57 : f32 to vector<128x128xf32>
    %129 = arith.subf %128, %127 : vector<128x128xf32>
    %130 = arith.mulf %101, %129 : vector<128x128xf32>
    %cst_58 = arith.constant 1.000000e+00 : f32
    %131 = vector.broadcast %cst_58 : f32 to vector<128x128xf32>
    %132 = arith.addf %131, %130 : vector<128x128xf32>
    %133 = arith.mulf %94, %132 : vector<128x128xf32>
    %134 = arith.truncf %133 : vector<128x128xf32> to vector<128x128xbf16>
    %cst_59 = arith.constant dense<0.000000e+00> : vector<128x128xf32>
    %135 = tpu.matmul %33, %134, %cst_59 {dimension_numbers = #tpu.dot_dimension_numbers<[1], [0], [0], [1], [0, 0, 1, 1], [], []>} : vector<128x128xbf16>, vector<128x128xbf16>, vector<128x128xf32> -> vector<128x128xf32>
    %136 = vector.broadcast %37 : vector<128x1xf32> to vector<128x128xf32>
    %137 = arith.addf %135, %136 : vector<128x128xf32>
    %138 = tpu.concatenate %87, %137 in 0 : vector<128x128xf32>, vector<128x128xf32> -> vector<256x128xf32>
    %139 = arith.addf %3, %138 : vector<256x128xf32>
    %c0_60 = arith.constant 0 : index
    %c0_61 = arith.constant 0 : index
    %c0_62 = arith.constant 0 : index
    %140 = vector.load %arg9[%c0_60, %c0_61, %c0_62] : memref<1x1x128xf32, #tpu.memory_space<vmem>>, vector<1x1x128xf32>
    %141 = vector.shape_cast %140 : vector<1x1x128xf32> to vector<1x128xf32>
    %c0_63 = arith.constant 0 : index
    %c0_64 = arith.constant 0 : index
    %c0_65 = arith.constant 0 : index
    %142 = vector.load %arg10[%c0_63, %c0_64, %c0_65] : memref<1x1x128xf32, #tpu.memory_space<vmem>>, vector<1x1x128xf32>
    %143 = vector.shape_cast %142 : vector<1x1x128xf32> to vector<1x128xf32>
    %cst_66 = arith.constant dense<0.000000e+00> : vector<256xf32>
    %144 = vector.multi_reduction <add>, %139, %cst_66 [1] : vector<256x128xf32> to vector<256xf32>
    %145 = vector.shape_cast %144 : vector<256xf32> to vector<256x1xf32>
    %cst_67 = arith.constant 1.280000e+02 : f32
    %146 = vector.broadcast %cst_67 : f32 to vector<256x1xf32>
    %147 = arith.divf %145, %146 : vector<256x1xf32>
    %148 = arith.mulf %139, %139 : vector<256x128xf32>
    %cst_68 = arith.constant dense<0.000000e+00> : vector<256xf32>
    %149 = vector.multi_reduction <add>, %148, %cst_68 [1] : vector<256x128xf32> to vector<256xf32>
    %150 = vector.shape_cast %149 : vector<256xf32> to vector<256x1xf32>
    %cst_69 = arith.constant 1.280000e+02 : f32
    %151 = vector.broadcast %cst_69 : f32 to vector<256x1xf32>
    %152 = arith.divf %150, %151 : vector<256x1xf32>
    %153 = arith.mulf %147, %147 : vector<256x1xf32>
    %154 = arith.subf %152, %153 : vector<256x1xf32>
    %155 = vector.broadcast %147 : vector<256x1xf32> to vector<256x128xf32>
    %156 = arith.subf %139, %155 : vector<256x128xf32>
    %cst_70 = arith.constant 9.99999974E-6 : f32
    %157 = vector.broadcast %cst_70 : f32 to vector<256x1xf32>
    %158 = arith.addf %154, %157 : vector<256x1xf32>
    %159 = math.rsqrt %158 : vector<256x1xf32>
    %160 = vector.broadcast %159 : vector<256x1xf32> to vector<256x128xf32>
    %161 = arith.mulf %156, %160 : vector<256x128xf32>
    %162 = vector.broadcast %141 : vector<1x128xf32> to vector<256x128xf32>
    %163 = arith.mulf %161, %162 : vector<256x128xf32>
    %164 = vector.broadcast %143 : vector<1x128xf32> to vector<256x128xf32>
    %165 = arith.addf %163, %164 : vector<256x128xf32>
    %166 = arith.truncf %165 : vector<256x128xf32> to vector<256x128xbf16>
    %c0_71 = arith.constant 0 : index
    %c0_72 = arith.constant 0 : index
    %c0_73 = arith.constant 0 : index
    %167 = vector.load %arg11[%c0_71, %c0_72, %c0_73] : memref<1x128x256xbf16, #tpu.memory_space<vmem>>, vector<1x128x256xbf16>
    %168 = vector.shape_cast %167 : vector<1x128x256xbf16> to vector<128x256xbf16>
    %cst_74 = arith.constant dense<0.000000e+00> : vector<256x256xf32>
    %169 = tpu.matmul %166, %168, %cst_74 {dimension_numbers = #tpu.dot_dimension_numbers<[1], [0], [0], [1], [0, 0, 1, 1], [], []>} : vector<256x128xbf16>, vector<128x256xbf16>, vector<256x256xf32> -> vector<256x256xf32>
    %c0_75 = arith.constant 0 : index
    %c0_76 = arith.constant 0 : index
    %c0_77 = arith.constant 0 : index
    %170 = vector.load %arg12[%c0_75, %c0_76, %c0_77] : memref<1x1x256xf32, #tpu.memory_space<vmem>>, vector<1x1x256xf32>
    %171 = vector.shape_cast %170 : vector<1x1x256xf32> to vector<1x256xf32>
    %172 = vector.broadcast %171 : vector<1x256xf32> to vector<256x256xf32>
    %173 = arith.addf %169, %172 : vector<256x256xf32>
    %cst_78 = arith.constant 5.000000e-01 : f32
    %174 = vector.broadcast %cst_78 : f32 to vector<256x256xf32>
    %175 = arith.mulf %174, %173 : vector<256x256xf32>
    %cst_79 = arith.constant 0.707106769 : f32
    %176 = vector.broadcast %cst_79 : f32 to vector<256x256xf32>
    %177 = arith.mulf %173, %176 : vector<256x256xf32>
    %cst_80 = arith.constant 0.000000e+00 : f32
    %178 = vector.broadcast %cst_80 : f32 to vector<256x256xf32>
    %179 = arith.cmpf oge, %177, %178 : vector<256x256xf32>
    %cst_81 = arith.constant 1.000000e+00 : f32
    %cst_82 = arith.constant -1.000000e+00 : f32
    %180 = vector.broadcast %cst_81 : f32 to vector<256x256xf32>
    %181 = vector.broadcast %cst_82 : f32 to vector<256x256xf32>
    %182 = arith.select %179, %180, %181 : vector<256x256xi1>, vector<256x256xf32>
    %183 = math.absf %177 : vector<256x256xf32>
    %cst_83 = arith.constant 0.327591091 : f32
    %184 = vector.broadcast %cst_83 : f32 to vector<256x256xf32>
    %185 = arith.mulf %184, %183 : vector<256x256xf32>
    %cst_84 = arith.constant 1.000000e+00 : f32
    %186 = vector.broadcast %cst_84 : f32 to vector<256x256xf32>
    %187 = arith.addf %186, %185 : vector<256x256xf32>
    %cst_85 = arith.constant 1.000000e+00 : f32
    %188 = vector.broadcast %cst_85 : f32 to vector<256x256xf32>
    %189 = arith.divf %188, %187 : vector<256x256xf32>
    %cst_86 = arith.constant 1.06140542 : f32
    %190 = vector.broadcast %cst_86 : f32 to vector<256x256xf32>
    %191 = arith.mulf %190, %189 : vector<256x256xf32>
    %cst_87 = arith.constant -1.45315206 : f32
    %192 = vector.broadcast %cst_87 : f32 to vector<256x256xf32>
    %193 = arith.addf %191, %192 : vector<256x256xf32>
    %194 = arith.mulf %193, %189 : vector<256x256xf32>
    %cst_88 = arith.constant 1.42141378 : f32
    %195 = vector.broadcast %cst_88 : f32 to vector<256x256xf32>
    %196 = arith.addf %194, %195 : vector<256x256xf32>
    %197 = arith.mulf %196, %189 : vector<256x256xf32>
    %cst_89 = arith.constant -0.284496725 : f32
    %198 = vector.broadcast %cst_89 : f32 to vector<256x256xf32>
    %199 = arith.addf %197, %198 : vector<256x256xf32>
    %200 = arith.mulf %199, %189 : vector<256x256xf32>
    %cst_90 = arith.constant 0.254829586 : f32
    %201 = vector.broadcast %cst_90 : f32 to vector<256x256xf32>
    %202 = arith.addf %200, %201 : vector<256x256xf32>
    %203 = arith.mulf %202, %189 : vector<256x256xf32>
    %cst_91 = arith.constant 0.000000e+00 : f32
    %204 = vector.broadcast %cst_91 : f32 to vector<256x256xf32>
    %205 = arith.subf %204, %183 : vector<256x256xf32>
    %206 = arith.mulf %205, %183 : vector<256x256xf32>
    %207 = math.exp %206 : vector<256x256xf32>
    %208 = arith.mulf %203, %207 : vector<256x256xf32>
    %cst_92 = arith.constant 1.000000e+00 : f32
    %209 = vector.broadcast %cst_92 : f32 to vector<256x256xf32>
    %210 = arith.subf %209, %208 : vector<256x256xf32>
    %211 = arith.mulf %182, %210 : vector<256x256xf32>
    %cst_93 = arith.constant 1.000000e+00 : f32
    %212 = vector.broadcast %cst_93 : f32 to vector<256x256xf32>
    %213 = arith.addf %212, %211 : vector<256x256xf32>
    %214 = arith.mulf %175, %213 : vector<256x256xf32>
    %215 = arith.truncf %214 : vector<256x256xf32> to vector<256x256xbf16>
    %c0_94 = arith.constant 0 : index
    %c0_95 = arith.constant 0 : index
    %c0_96 = arith.constant 0 : index
    %216 = vector.load %arg13[%c0_94, %c0_95, %c0_96] : memref<1x256x128xbf16, #tpu.memory_space<vmem>>, vector<1x256x128xbf16>
    %217 = vector.shape_cast %216 : vector<1x256x128xbf16> to vector<256x128xbf16>
    %cst_97 = arith.constant dense<0.000000e+00> : vector<256x128xf32>
    %218 = tpu.matmul %215, %217, %cst_97 {dimension_numbers = #tpu.dot_dimension_numbers<[1], [0], [0], [1], [0, 0, 1, 1], [], []>} : vector<256x256xbf16>, vector<256x128xbf16>, vector<256x128xf32> -> vector<256x128xf32>
    %c0_98 = arith.constant 0 : index
    %c0_99 = arith.constant 0 : index
    %c0_100 = arith.constant 0 : index
    %219 = vector.load %arg14[%c0_98, %c0_99, %c0_100] : memref<1x1x128xf32, #tpu.memory_space<vmem>>, vector<1x1x128xf32>
    %220 = vector.shape_cast %219 : vector<1x1x128xf32> to vector<1x128xf32>
    %221 = vector.broadcast %220 : vector<1x128xf32> to vector<256x128xf32>
    %222 = arith.addf %218, %221 : vector<256x128xf32>
    %223 = arith.addf %139, %222 : vector<256x128xf32>
    %c0_101 = arith.constant 0 : index
    %c0_102 = arith.constant 0 : index
    %224 = vector.load %arg15[%c0_101, %c0_102] : memref<256x128xf32, #tpu.memory_space<vmem>>, vector<256x128xf32>
    tpu.vector_store %arg15[%c0_101, %c0_102], %223 {strides = array<i32>} : memref<256x128xf32, #tpu.memory_space<vmem>>, vector<256x128xf32>,
    return
  }
  func.func @transform_0(%arg0: i32, %arg1: i32) -> (i32, i32) {
    %c0_i32 = arith.constant 0 : i32
    %c0_i32_0 = arith.constant 0 : i32
    return %arg0, %c0_i32 : i32, i32
  }
  func.func @transform_1(%arg0: i32, %arg1: i32) -> (i32, i32, i32) {
    %c0_i32 = arith.constant 0 : i32
    %c0_i32_0 = arith.constant 0 : i32
    %c0_i32_1 = arith.constant 0 : i32
    return %arg1, %c0_i32, %c0_i32_0 : i32, i32, i32
  }
  func.func @transform_2(%arg0: i32, %arg1: i32) -> (i32, i32, i32) {
    %c0_i32 = arith.constant 0 : i32
    %c0_i32_0 = arith.constant 0 : i32
    %c0_i32_1 = arith.constant 0 : i32
    return %arg1, %c0_i32, %c0_i32_0 : i32, i32, i32
  }
  func.func @transform_3(%arg0: i32, %arg1: i32) -> (i32, i32, i32) {
    %c0_i32 = arith.constant 0 : i32
    %c0_i32_0 = arith.constant 0 : i32
    %c0_i32_1 = arith.constant 0 : i32
    return %arg1, %c0_i32, %c0_i32_0 : i32, i32, i32
  }
  func.func @transform_4(%arg0: i32, %arg1: i32) -> (i32, i32, i32) {
    %c0_i32 = arith.constant 0 : i32
    %c0_i32_0 = arith.constant 0 : i32
    %c0_i32_1 = arith.constant 0 : i32
    return %arg1, %c0_i32, %c0_i32_0 : i32, i32, i32
  }
  func.func @transform_5(%arg0: i32, %arg1: i32) -> (i32, i32, i32) {
    %c0_i32 = arith.constant 0 : i32
    %c0_i32_0 = arith.constant 0 : i32
    %c0_i32_1 = arith.constant 0 : i32
    return %arg1, %c0_i32, %c0_i32_0 : i32, i32, i32
  }
  func.func @transform_6(%arg0: i32, %arg1: i32) -> (i32, i32, i32) {
    %c0_i32 = arith.constant 0 : i32
    %c0_i32_0 = arith.constant 0 : i32
    %c0_i32_1 = arith.constant 0 : i32
    return %arg1, %c0_i32, %c0_i32_0 : i32, i32, i32
  }
  func.func @transform_7(%arg0: i32, %arg1: i32) -> (i32, i32, i32) {
    %c0_i32 = arith.constant 0 : i32
    %c0_i32_0 = arith.constant 0 : i32
    %c0_i32_1 = arith.constant 0 : i32
    return %arg1, %c0_i32, %c0_i32_0 : i32, i32, i32
  }
  func.func @transform_8(%arg0: i32, %arg1: i32) -> (i32, i32, i32) {
    %c0_i32 = arith.constant 0 : i32
    %c0_i32_0 = arith.constant 0 : i32
    %c0_i32_1 = arith.constant 0 : i32
    return %arg1, %c0_i32, %c0_i32_0 : i32, i32, i32
  }
  func.func @transform_9(%arg0: i32, %arg1: i32) -> (i32, i32, i32) {
    %c0_i32 = arith.constant 0 : i32
    %c0_i32_0 = arith.constant 0 : i32
    %c0_i32_1 = arith.constant 0 : i32
    return %arg1, %c0_i32, %c0_i32_0 : i32, i32, i32
  }
  func.func @transform_10(%arg0: i32, %arg1: i32) -> (i32, i32, i32) {
    %c0_i32 = arith.constant 0 : i32
    %c0_i32_0 = arith.constant 0 : i32
    %c0_i32_1 = arith.constant 0 : i32
    return %arg1, %c0_i32, %c0_i32_0 : i32, i32, i32
  }
  func.func @transform_11(%arg0: i32, %arg1: i32) -> (i32, i32, i32) {
    %c0_i32 = arith.constant 0 : i32
    %c0_i32_0 = arith.constant 0 : i32
    %c0_i32_1 = arith.constant 0 : i32
    return %arg1, %c0_i32, %c0_i32_0 : i32, i32, i32
  }
  func.func @transform_12(%arg0: i32, %arg1: i32) -> (i32, i32, i32) {
    %c0_i32 = arith.constant 0 : i32
    %c0_i32_0 = arith.constant 0 : i32
    %c0_i32_1 = arith.constant 0 : i32
    return %arg1, %c0_i32, %c0_i32_0 : i32, i32, i32
  }
  func.func @transform_13(%arg0: i32, %arg1: i32) -> (i32, i32) {
    %c0_i32 = arith.constant 0 : i32
    %c0_i32_0 = arith.constant 0 : i32
    return %arg0, %c0_i32 : i32, i32
  }
}

</mosaic_0001>

<llo_original>
// kernel: tpu_custom_call.1
$region0: #{tpu_custom_call.1}
  #allocation0 [shape = 'u32[]', space=smem, size = 0x4, offset = 0x4, fixed_abs, tag = 'smem constant byte address 0x4 - core index']
  #allocation1 [shape = 'u32[144,128]{1,0:T(1,128)}', space=vmem, size = 0x12000, scoped, tag = 'internal scratch']
  %s0 = inlined_call_operand.vmem [shape: f32[512,128], index: 0, kind: input, shape index: {}]
  %s1 = inlined_call_operand.hbm [shape: f32[2,1,128], index: 1, kind: input, shape index: {}]
  %s2 = inlined_call_operand.vmem [shape: f32[2,1,128], index: 2, kind: input, shape index: {}]
  %s3 = inlined_call_operand.hbm [shape: bf16[2,128,128], index: 3, kind: input, shape index: {}]
  %s4 = inlined_call_operand.vmem [shape: f32[2,128,1], index: 4, kind: input, shape index: {}]
  %s5 = inlined_call_operand.hbm [shape: bf16[2,128,128], index: 5, kind: input, shape index: {}]
  %s6 = inlined_call_operand.vmem [shape: f32[2,128,1], index: 6, kind: input, shape index: {}]
  %s7 = inlined_call_operand.vmem [shape: f32[2,1,128], index: 7, kind: input, shape index: {}]
  %s8 = inlined_call_operand.vmem [shape: f32[2,1,128], index: 8, kind: input, shape index: {}]
  %s9 = inlined_call_operand.hbm [shape: bf16[2,128,256], index: 9, kind: input, shape index: {}]
  %s10 = inlined_call_operand.vmem [shape: f32[2,1,256], index: 10, kind: input, shape index: {}]
  %s11 = inlined_call_operand.hbm [shape: bf16[2,256,128], index: 11, kind: input, shape index: {}]
  %s12 = inlined_call_operand.vmem [shape: f32[2,1,128], index: 12, kind: input, shape index: {}]
  %s13 = inlined_call_operand.hbm [shape: f32[512,128], index: 13, kind: output, shape index: {}]
  %s14 = sld [smem:[#allocation0]]
  $region109: #{tpu_custom_call.1} parent=0
    _
  %s16 = ssub.s32 1, %s14
  %s17 = scalar_select 0, %s16, %s14
  $region1: #{tpu_custom_call.1} parent=0
    #allocation2 [shape = 'u8[1024]{0}', space=vmem, size = 0x400, scoped, tag = 'input window, operand 1']
    #allocation3 [shape = 's32[2]{0}', space=sflag, size = 0x8, scoped, tag = 'scoped memory for tpu_custom_call.1']
    #allocation4 [shape = 's32[2]{0}', space=sflag, size = 0x8, scoped, tag = 'scoped memory for tpu_custom_call.1']
    #allocation5 [shape = 'u8[65536]{0}', space=vmem, size = 0x10000, scoped, tag = 'input window, operand 3']
    #allocation6 [shape = 's32[2]{0}', space=sflag, size = 0x8, scoped, tag = 'scoped memory for tpu_custom_call.1']
    #allocation7 [shape = 'u8[65536]{0}', space=vmem, size = 0x10000, scoped, tag = 'input window, operand 5']
    #allocation8 [shape = 'u8[131072]{0}', space=vmem, size = 0x20000, scoped, tag = 'input window, operand 9']
    #allocation9 [shape = 's32[2]{0}', space=sflag, size = 0x8, scoped, tag = 'scoped memory for tpu_custom_call.1']
    #allocation10 [shape = 'u8[131072]{0}', space=vmem, size = 0x20000, scoped, tag = 'input window, operand 11']
    #allocation11 [shape = 'u8[262144]{0}', space=vmem, size = 0x40000, scoped, tag = 'output window, operand 0']
    %18 = vsyncpa [#allocation3], 0
    %s19 = scalar_lea.sflag [#allocation3], 1
    %20 = vsyncpa %s19, 0
    %21 = vsyncpa [#allocation6], 0
    %s22 = scalar_lea.sflag [#allocation6], 1
    %23 = vsyncpa %s22, 0
    %24 = vsyncpa [#allocation9], 0
    %s25 = scalar_lea.sflag [#allocation9], 1
    %26 = vsyncpa %s25, 0
    %27 = vsyncpa [#allocation4], 0
    %s28 = scalar_lea.sflag [#allocation4], 1
    %29 = vsyncpa %s28, 0
    loop: start=0, step=1, limit=6
    $region2: #{tpu_custom_call.1} parent=1 // loop_pre_header
      _
    $region3: #{tpu_custom_call.1} parent=1 // loop_header
      %s31 = sphi 0, %s35
      %p32 = scmp.ge.s32.totalorder %s31, 6
      %s38 = sphi 0, %s50
      %s39 = sphi 0, %s46
      %s40 = sphi 0, %s38
      %s41 = sphi 0, %s39
      %s42 = sphi 0, %s40
      %s43 = sphi 0, %s41
      %s53 = sphi 0, %s55
      %s56 = sphi 0, %s53
      %s57 = sphi 0, %s56
      %s73 = sphi 0, %s57
      %s79 = sphi 0, %s81
      %s82 = sphi 0, %s79
      %s83 = sphi 0, %s82
      %s99 = sphi 0, %s83
      %s105 = sphi 0, %s107
      %s108 = sphi 0, %s105
      %s109 = sphi 0, %s108
      %s125 = sphi 0, %s109
      %s131 = sphi 0, %s133
      %s134 = sphi 0, %s131
      %s135 = sphi 0, %s134
      %s151 = sphi 0, %s135
      %s157 = sphi 0, %s159
      %s160 = sphi 0, %s157
      %s161 = sphi 0, %s160
      %s177 = sphi 0, %s161
      %s183 = sphi 0, %s185
      %s186 = sphi 0, %s183
      %s187 = sphi 0, %s186
      %s203 = sphi 0, %s187
      %s209 = sphi 0, %s211
      %s212 = sphi 0, %s209
      %s213 = sphi 0, %s212
      %s229 = sphi 0, %s213
      %s235 = sphi 0, %s237
      %s238 = sphi 0, %s235
      %s239 = sphi 0, %s238
      %s255 = sphi 0, %s239
      %s261 = sphi 0, %s263
      %s264 = sphi 0, %s261
      %s265 = sphi 0, %s264
      %s281 = sphi 0, %s265
      %s287 = sphi 0, %s289
      %s290 = sphi 0, %s287
      %s291 = sphi 0, %s290
      %s307 = sphi 0, %s291
      %s313 = sphi 0, %s315
      %s316 = sphi 0, %s313
      %s317 = sphi 0, %s316
      %s333 = sphi 0, %s317
      %s339 = sphi 0, %s341
      %s342 = sphi 0, %s339
      %s343 = sphi 0, %s342
      %s359 = sphi 0, %s343
      %s365 = sphi 0, %s367
      %s368 = sphi 0, %s365
      %s369 = sphi 0, %s368
      %s385 = sphi 0, %s369
      %s391 = sphi 0, %s393
      %s394 = sphi 0, %s391
      %s395 = sphi 0, %s394
      %s411 = sphi 0, %s395
    $region4: #{tpu_custom_call.1} parent=1 // loop_header_branch
      %34 = sbr.rel (%p32) target = $region8
    $region5: #{tpu_custom_call.1} parent=1 // loop_body
      %s36 = ssub.s32 %s31, 1
      %s37 = ssub.s32 %s31, 2
      %s44 = sadd.s32 1, %s39
      %p45 = scmp.ge.s32.totalorder %s44, 2
      %s46 = scalar_select %p45, 0, %s44
      %s47 = sadd.s32 1, %s38
      %s48 = scalar_select %p45, %s47, %s38
      %p49 = scmp.ge.s32.totalorder %s48, 2
      %s50 = scalar_select %p49, 0, %s48
      %s51 = ssub.s32 %s38, %s50
      %p52 = scmp.eq.s32.totalorder %s51, 0
      %s54 = sadd.s32 %s53, 1
      %s55 = scalar_select %p52, %s53, %s54
      %p58 = pneg %p52
      %p59 = scmp.eq.s32.totalorder %s31, 3
      %p60 = por %p58, %p59
      %p61 = scmp.ne.s32.totalorder %s53, %s56
      %p62 = scmp.eq.s32.totalorder %s31, 0
      %p63 = por %p61, %p62
      %p64 = scmp.ne.s32.totalorder %s53, %s56
      %p65 = scmp.eq.s32.totalorder %s36, 3
      %p66 = por %p64, %p65
      %p67 = scmp.ne.s32.totalorder %s56, %s57
      %p68 = scmp.eq.s32.totalorder %s36, 0
      %p69 = por %p67, %p68
      %p70 = scmp.ne.s32.totalorder %s56, %s57
      %p71 = scmp.eq.s32.totalorder %s37, 3
      %p72 = por %p70, %p71
      %p74 = scmp.ne.s32.totalorder %s57, %s73
      %p75 = scmp.eq.s32.totalorder %s37, 0
      %p76 = por %p74, %p75
      %s77 = ssub.s32 %s39, %s46
      %p78 = scmp.eq.s32.totalorder %s77, 0
      %s80 = sadd.s32 %s79, 1
      %s81 = scalar_select %p78, %s79, %s80
      %p84 = pneg %p78
      %p85 = scmp.eq.s32.totalorder %s31, 3
      %p86 = por %p84, %p85
      %p87 = scmp.ne.s32.totalorder %s79, %s82
      %p88 = scmp.eq.s32.totalorder %s31, 0
      %p89 = por %p87, %p88
      %p90 = scmp.ne.s32.totalorder %s79, %s82
      %p91 = scmp.eq.s32.totalorder %s36, 3
      %p92 = por %p90, %p91
      %p93 = scmp.ne.s32.totalorder %s82, %s83
      %p94 = scmp.eq.s32.totalorder %s36, 0
      %p95 = por %p93, %p94
      %p96 = scmp.ne.s32.totalorder %s82, %s83
      %p97 = scmp.eq.s32.totalorder %s37, 3
      %p98 = por %p96, %p97
      %p100 = scmp.ne.s32.totalorder %s83, %s99
      %p101 = scmp.eq.s32.totalorder %s37, 0
      %p102 = por %p100, %p101
      %s103 = ssub.s32 %s39, %s46
      %p104 = scmp.eq.s32.totalorder %s103, 0
      %s106 = sadd.s32 %s105, 1
      %s107 = scalar_select %p104, %s105, %s106
      %p110 = pneg %p104
      %p111 = scmp.eq.s32.totalorder %s31, 3
      %p112 = por %p110, %p111
      %p113 = scmp.ne.s32.totalorder %s105, %s108
      %p114 = scmp.eq.s32.totalorder %s31, 0
      %p115 = por %p113, %p114
      %p116 = scmp.ne.s32.totalorder %s105, %s108
      %p117 = scmp.eq.s32.totalorder %s36, 3
      %p118 = por %p116, %p117
      %p119 = scmp.ne.s32.totalorder %s108, %s109
      %p120 = scmp.eq.s32.totalorder %s36, 0
      %p121 = por %p119, %p120
      %p122 = scmp.ne.s32.totalorder %s108, %s109
      %p123 = scmp.eq.s32.totalorder %s37, 3
      %p124 = por %p122, %p123
      %p126 = scmp.ne.s32.totalorder %s109, %s125
      %p127 = scmp.eq.s32.totalorder %s37, 0
      %p128 = por %p126, %p127
      %s129 = ssub.s32 %s39, %s46
      %p130 = scmp.eq.s32.totalorder %s129, 0
      %s132 = sadd.s32 %s131, 1
      %s133 = scalar_select %p130, %s131, %s132
      %p136 = pneg %p130
      %p137 = scmp.eq.s32.totalorder %s31, 3
      %p138 = por %p136, %p137
      %p139 = scmp.ne.s32.totalorder %s131, %s134
      %p140 = scmp.eq.s32.totalorder %s31, 0
      %p141 = por %p139, %p140
      %p142 = scmp.ne.s32.totalorder %s131, %s134
      %p143 = scmp.eq.s32.totalorder %s36, 3
      %p144 = por %p142, %p143
      %p145 = scmp.ne.s32.totalorder %s134, %s135
      %p146 = scmp.eq.s32.totalorder %s36, 0
      %p147 = por %p145, %p146
      %p148 = scmp.ne.s32.totalorder %s134, %s135
      %p149 = scmp.eq.s32.totalorder %s37, 3
      %p150 = por %p148, %p149
      %p152 = scmp.ne.s32.totalorder %s135, %s151
      %p153 = scmp.eq.s32.totalorder %s37, 0
      %p154 = por %p152, %p153
      %s155 = ssub.s32 %s39, %s46
      %p156 = scmp.eq.s32.totalorder %s155, 0
      %s158 = sadd.s32 %s157, 1
      %s159 = scalar_select %p156, %s157, %s158
      %p162 = pneg %p156
      %p163 = scmp.eq.s32.totalorder %s31, 3
      %p164 = por %p162, %p163
      %p165 = scmp.ne.s32.totalorder %s157, %s160
      %p166 = scmp.eq.s32.totalorder %s31, 0
      %p167 = por %p165, %p166
      %p168 = scmp.ne.s32.totalorder %s157, %s160
      %p169 = scmp.eq.s32.totalorder %s36, 3
      %p170 = por %p168, %p169
      %p171 = scmp.ne.s32.totalorder %s160, %s161
      %p172 = scmp.eq.s32.totalorder %s36, 0
      %p173 = por %p171, %p172
      %p174 = scmp.ne.s32.totalorder %s160, %s161
      %p175 = scmp.eq.s32.totalorder %s37, 3
      %p176 = por %p174, %p175
      %p178 = scmp.ne.s32.totalorder %s161, %s177
      %p179 = scmp.eq.s32.totalorder %s37, 0
      %p180 = por %p178, %p179
      %s181 = ssub.s32 %s39, %s46
      %p182 = scmp.eq.s32.totalorder %s181, 0
      %s184 = sadd.s32 %s183, 1
      %s185 = scalar_select %p182, %s183, %s184
      %p188 = pneg %p182
      %p189 = scmp.eq.s32.totalorder %s31, 3
      %p190 = por %p188, %p189
      %p191 = scmp.ne.s32.totalorder %s183, %s186
      %p192 = scmp.eq.s32.totalorder %s31, 0
      %p193 = por %p191, %p192
      %p194 = scmp.ne.s32.totalorder %s183, %s186
      %p195 = scmp.eq.s32.totalorder %s36, 3
      %p196 = por %p194, %p195
      %p197 = scmp.ne.s32.totalorder %s186, %s187
      %p198 = scmp.eq.s32.totalorder %s36, 0
      %p199 = por %p197, %p198
      %p200 = scmp.ne.s32.totalorder %s186, %s187
      %p201 = scmp.eq.s32.totalorder %s37, 3
      %p202 = por %p200, %p201
      %p204 = scmp.ne.s32.totalorder %s187, %s203
      %p205 = scmp.eq.s32.totalorder %s37, 0
      %p206 = por %p204, %p205
      %s207 = ssub.s32 %s39, %s46
      %p208 = scmp.eq.s32.totalorder %s207, 0
      %s210 = sadd.s32 %s209, 1
      %s211 = scalar_select %p208, %s209, %s210
      %p214 = pneg %p208
      %p215 = scmp.eq.s32.totalorder %s31, 3
      %p216 = por %p214, %p215
      %p217 = scmp.ne.s32.totalorder %s209, %s212
      %p218 = scmp.eq.s32.totalorder %s31, 0
      %p219 = por %p217, %p218
      %p220 = scmp.ne.s32.totalorder %s209, %s212
      %p221 = scmp.eq.s32.totalorder %s36, 3
      %p222 = por %p220, %p221
      %p223 = scmp.ne.s32.totalorder %s212, %s213
      %p224 = scmp.eq.s32.totalorder %s36, 0
      %p225 = por %p223, %p224
      %p226 = scmp.ne.s32.totalorder %s212, %s213
      %p227 = scmp.eq.s32.totalorder %s37, 3
      %p228 = por %p226, %p227
      %p230 = scmp.ne.s32.totalorder %s213, %s229
      %p231 = scmp.eq.s32.totalorder %s37, 0
      %p232 = por %p230, %p231
      %s233 = ssub.s32 %s39, %s46
      %p234 = scmp.eq.s32.totalorder %s233, 0
      %s236 = sadd.s32 %s235, 1
      %s237 = scalar_select %p234, %s235, %s236
      %p240 = pneg %p234
      %p241 = scmp.eq.s32.totalorder %s31, 3
      %p242 = por %p240, %p241
      %p243 = scmp.ne.s32.totalorder %s235, %s238
      %p244 = scmp.eq.s32.totalorder %s31, 0
      %p245 = por %p243, %p244
      %p246 = scmp.ne.s32.totalorder %s235, %s238
      %p247 = scmp.eq.s32.totalorder %s36, 3
      %p248 = por %p246, %p247
      %p249 = scmp.ne.s32.totalorder %s238, %s239
      %p250 = scmp.eq.s32.totalorder %s36, 0
      %p251 = por %p249, %p250
      %p252 = scmp.ne.s32.totalorder %s238, %s239
      %p253 = scmp.eq.s32.totalorder %s37, 3
      %p254 = por %p252, %p253
      %p256 = scmp.ne.s32.totalorder %s239, %s255
      %p257 = scmp.eq.s32.totalorder %s37, 0
      %p258 = por %p256, %p257
      %s259 = ssub.s32 %s39, %s46
      %p260 = scmp.eq.s32.totalorder %s259, 0
      %s262 = sadd.s32 %s261, 1
      %s263 = scalar_select %p260, %s261, %s262
      %p266 = pneg %p260
      %p267 = scmp.eq.s32.totalorder %s31, 3
      %p268 = por %p266, %p267
      %p269 = scmp.ne.s32.totalorder %s261, %s264
      %p270 = scmp.eq.s32.totalorder %s31, 0
      %p271 = por %p269, %p270
      %p272 = scmp.ne.s32.totalorder %s261, %s264
      %p273 = scmp.eq.s32.totalorder %s36, 3
      %p274 = por %p272, %p273
      %p275 = scmp.ne.s32.totalorder %s264, %s265
      %p276 = scmp.eq.s32.totalorder %s36, 0
      %p277 = por %p275, %p276
      %p278 = scmp.ne.s32.totalorder %s264, %s265
      %p279 = scmp.eq.s32.totalorder %s37, 3
      %p280 = por %p278, %p279
      %p282 = scmp.ne.s32.totalorder %s265, %s281
      %p283 = scmp.eq.s32.totalorder %s37, 0
      %p284 = por %p282, %p283
      %s285 = ssub.s32 %s39, %s46
      %p286 = scmp.eq.s32.totalorder %s285, 0
      %s288 = sadd.s32 %s287, 1
      %s289 = scalar_select %p286, %s287, %s288
      %p292 = pneg %p286
      %p293 = scmp.eq.s32.totalorder %s31, 3
      %p294 = por %p292, %p293
      %p295 = scmp.ne.s32.totalorder %s287, %s290
      %p296 = scmp.eq.s32.totalorder %s31, 0
      %p297 = por %p295, %p296
      %p298 = scmp.ne.s32.totalorder %s287, %s290
      %p299 = scmp.eq.s32.totalorder %s36, 3
      %p300 = por %p298, %p299
      %p301 = scmp.ne.s32.totalorder %s290, %s291
      %p302 = scmp.eq.s32.totalorder %s36, 0
      %p303 = por %p301, %p302
      %p304 = scmp.ne.s32.totalorder %s290, %s291
      %p305 = scmp.eq.s32.totalorder %s37, 3
      %p306 = por %p304, %p305
      %p308 = scmp.ne.s32.totalorder %s291, %s307
      %p309 = scmp.eq.s32.totalorder %s37, 0
      %p310 = por %p308, %p309
      %s311 = ssub.s32 %s39, %s46
      %p312 = scmp.eq.s32.totalorder %s311, 0
      %s314 = sadd.s32 %s313, 1
      %s315 = scalar_select %p312, %s313, %s314
      %p318 = pneg %p312
      %p319 = scmp.eq.s32.totalorder %s31, 3
      %p320 = por %p318, %p319
      %p321 = scmp.ne.s32.totalorder %s313, %s316
      %p322 = scmp.eq.s32.totalorder %s31, 0
      %p323 = por %p321, %p322
      %p324 = scmp.ne.s32.totalorder %s313, %s316
      %p325 = scmp.eq.s32.totalorder %s36, 3
      %p326 = por %p324, %p325
      %p327 = scmp.ne.s32.totalorder %s316, %s317
      %p328 = scmp.eq.s32.totalorder %s36, 0
      %p329 = por %p327, %p328
      %p330 = scmp.ne.s32.totalorder %s316, %s317
      %p331 = scmp.eq.s32.totalorder %s37, 3
      %p332 = por %p330, %p331
      %p334 = scmp.ne.s32.totalorder %s317, %s333
      %p335 = scmp.eq.s32.totalorder %s37, 0
      %p336 = por %p334, %p335
      %s337 = ssub.s32 %s39, %s46
      %p338 = scmp.eq.s32.totalorder %s337, 0
      %s340 = sadd.s32 %s339, 1
      %s341 = scalar_select %p338, %s339, %s340
      %p344 = pneg %p338
      %p345 = scmp.eq.s32.totalorder %s31, 3
      %p346 = por %p344, %p345
      %p347 = scmp.ne.s32.totalorder %s339, %s342
      %p348 = scmp.eq.s32.totalorder %s31, 0
      %p349 = por %p347, %p348
      %p350 = scmp.ne.s32.totalorder %s339, %s342
      %p351 = scmp.eq.s32.totalorder %s36, 3
      %p352 = por %p350, %p351
      %p353 = scmp.ne.s32.totalorder %s342, %s343
      %p354 = scmp.eq.s32.totalorder %s36, 0
      %p355 = por %p353, %p354
      %p356 = scmp.ne.s32.totalorder %s342, %s343
      %p357 = scmp.eq.s32.totalorder %s37, 3
      %p358 = por %p356, %p357
      %p360 = scmp.ne.s32.totalorder %s343, %s359
      %p361 = scmp.eq.s32.totalorder %s37, 0
      %p362 = por %p360, %p361
      %s363 = ssub.s32 %s39, %s46
      %p364 = scmp.eq.s32.totalorder %s363, 0
      %s366 = sadd.s32 %s365, 1
      %s367 = scalar_select %p364, %s365, %s366
      %p370 = pneg %p364
      %p371 = scmp.eq.s32.totalorder %s31, 3
      %p372 = por %p370, %p371
      %p373 = scmp.ne.s32.totalorder %s365, %s368
      %p374 = scmp.eq.s32.totalorder %s31, 0
      %p375 = por %p373, %p374
      %p376 = scmp.ne.s32.totalorder %s365, %s368
      %p377 = scmp.eq.s32.totalorder %s36, 3
      %p378 = por %p376, %p377
      %p379 = scmp.ne.s32.totalorder %s368, %s369
      %p380 = scmp.eq.s32.totalorder %s36, 0
      %p381 = por %p379, %p380
      %p382 = scmp.ne.s32.totalorder %s368, %s369
      %p383 = scmp.eq.s32.totalorder %s37, 3
      %p384 = por %p382, %p383
      %p386 = scmp.ne.s32.totalorder %s369, %s385
      %p387 = scmp.eq.s32.totalorder %s37, 0
      %p388 = por %p386, %p387
      %s389 = ssub.s32 %s38, %s50
      %p390 = scmp.eq.s32.totalorder %s389, 0
      %s392 = sadd.s32 %s391, 1
      %s393 = scalar_select %p390, %s391, %s392
      %p396 = pneg %p390
      %p397 = scmp.eq.s32.totalorder %s31, 3
      %p398 = por %p396, %p397
      %p399 = scmp.ne.s32.totalorder %s391, %s394
      %p400 = scmp.eq.s32.totalorder %s31, 0
      %p401 = por %p399, %p400
      %p402 = scmp.ne.s32.totalorder %s391, %s394
      %p403 = scmp.eq.s32.totalorder %s36, 3
      %p404 = por %p402, %p403
      %p405 = scmp.ne.s32.totalorder %s394, %s395
      %p406 = scmp.eq.s32.totalorder %s36, 0
      %p407 = por %p405, %p406
      %p408 = scmp.ne.s32.totalorder %s394, %s395
      %p409 = scmp.eq.s32.totalorder %s37, 3
      %p410 = por %p408, %p409
      %p412 = scmp.ne.s32.totalorder %s395, %s411
      %p413 = scmp.eq.s32.totalorder %s37, 0
      %p414 = por %p412, %p413
      %p415 = scmp.le.s32.totalorder 1, %s31
      %p416 = scmp.lt.s32.totalorder %s31, 5
      %p417 = pnand %p415, %p416
      %p418 = pneg %p417
      // Predicated region
      $region9: #{tpu_custom_call.1} parent=5 // pred_check
        _
      $region10: #{tpu_custom_call.1} parent=5 // pred_check_branch
        %420 = sbr.rel (%p417) target = $region12
      $region11: #{tpu_custom_call.1} parent=5 // pred_region
        %s421 = ssub.s32 %s31, 1
      $region12: #{tpu_custom_call.1} parent=5 // pred_fallthru
        _
      %p422 = scmp.lt.s32.totalorder %s31, 4
      // Predicated region
      $region13: #{tpu_custom_call.1} parent=5 // pred_check
        %p423 = pneg %p422
      $region14: #{tpu_custom_call.1} parent=5 // pred_check_branch
        %425 = sbr.rel (%p423) target = $region16
      $region15: #{tpu_custom_call.1} parent=5 // pred_region
        // Predicated region
        $region17: #{tpu_custom_call.1} parent=15 // pred_check
          %p426 = pneg %p63
        $region18: #{tpu_custom_call.1} parent=15 // pred_check_branch
          %428 = sbr.rel (%p426) target = $region20
        $region19: #{tpu_custom_call.1} parent=15 // pred_region
          %s429 = smul.u32 32, %s38
          %p430 = scmp.lt.s32.totalorder %s429, 63
          %s431 = scalar_select %p430, %s429, 63
          %s432 = smul.addr %s431, 8
          %s433 = scalar_lea.vmem %s0, %s432
          %s434 = smul.u32 32, %s38
        $region20: #{tpu_custom_call.1} parent=15 // pred_fallthru
          _
        // Predicated region
        $region21: #{tpu_custom_call.1} parent=15 // pred_check
          %p435 = pneg %p89
        $region22: #{tpu_custom_call.1} parent=15 // pred_check_branch
          %437 = sbr.rel (%p435) target = $region24
        $region23: #{tpu_custom_call.1} parent=15 // pred_region
          %s438 = sand.u32 %s79, 1
          %s439 = scalar_lea.sflag [#allocation3], %s438
          %s440 = sand.u32 %s79, 1
          %s441 = scalar_lea.vmem [#allocation2], %s440
          %s443 = ssub.s32 16, 16
          %444 = vsyncadd %s439, %s443
          %s445 = smul.addr %s39, 16
          %s446 = scalar_lea.hbm %s1, %s445
          %s448 = sshll.u32 %s441, 4
          %s449 = int_to_ptr.vmem [resolvable:$true] %s448
          %451 = dma.hbm_to_vmem [thread:$0]  %s446, 16, %s449, %s439
        $region24: #{tpu_custom_call.1} parent=15 // pred_fallthru
          _
        // Predicated region
        $region25: #{tpu_custom_call.1} parent=15 // pred_check
          %p452 = pneg %p115
        $region26: #{tpu_custom_call.1} parent=15 // pred_check_branch
          %454 = sbr.rel (%p452) target = $region28
        $region27: #{tpu_custom_call.1} parent=15 // pred_region
          %p455 = scmp.lt.s32.totalorder %s39, 1
          %s456 = scalar_select %p455, %s39, 1
          %s457 = scalar_lea.vmem %s2, %s456
        $region28: #{tpu_custom_call.1} parent=15 // pred_fallthru
          _
        // Predicated region
        $region29: #{tpu_custom_call.1} parent=15 // pred_check
          %p458 = pneg %p141
        $region30: #{tpu_custom_call.1} parent=15 // pred_check_branch
          %460 = sbr.rel (%p458) target = $region32
        $region31: #{tpu_custom_call.1} parent=15 // pred_region
          %s461 = sand.u32 %s31, 1
          %s462 = scalar_lea.sflag [#allocation6], %s461
          %s463 = sand.u32 %s131, 1
          %s464 = smul.addr %s463, 64
          %s465 = scalar_lea.vmem [#allocation5], %s464
          %s467 = ssub.s32 1024, 1024
          %468 = vsyncadd %s462, %s467
          %s469 = smul.addr %s39, 16
          %s470 = smul.addr %s469, 64
          %s471 = scalar_lea.hbm %s3, %s470
          %s472 = sshll.u32 %s465, 4
          %s473 = int_to_ptr.vmem [resolvable:$true] %s472
          %478 = dma.hbm_to_vmem [thread:$0]  %s471, 1024, %s473, %s462, 64, 64, 4
        $region32: #{tpu_custom_call.1} parent=15 // pred_fallthru
          _
        // Predicated region
        $region33: #{tpu_custom_call.1} parent=15 // pred_check
          %p479 = pneg %p167
        $region34: #{tpu_custom_call.1} parent=15 // pred_check_branch
          %481 = sbr.rel (%p479) target = $region36
        $region35: #{tpu_custom_call.1} parent=15 // pred_region
          %p482 = scmp.lt.s32.totalorder %s39, 1
          %s483 = scalar_select %p482, %s39, 1
          %s484 = smul.addr %s483, 16
          %s485 = smul.addr %s484, 8
          %s486 = scalar_lea.vmem %s4, %s485
        $region36: #{tpu_custom_call.1} parent=15 // pred_fallthru
          _
        // Predicated region
        $region37: #{tpu_custom_call.1} parent=15 // pred_check
          %p487 = pneg %p193
        $region38: #{tpu_custom_call.1} parent=15 // pred_check_branch
          %489 = sbr.rel (%p487) target = $region40
        $region39: #{tpu_custom_call.1} parent=15 // pred_region
          %s490 = sand.u32 %s31, 1
          %s491 = scalar_lea.sflag [#allocation6], %s490
          %s492 = sand.u32 %s183, 1
          %s493 = smul.addr %s492, 64
          %s494 = scalar_lea.vmem [#allocation7], %s493
          %s496 = ssub.s32 1024, 1024
          %497 = vsyncadd %s491, %s496
          %s498 = smul.addr %s39, 16
          %s499 = smul.addr %s498, 64
          %s500 = scalar_lea.hbm %s5, %s499
          %s501 = sshll.u32 %s494, 4
          %s502 = int_to_ptr.vmem [resolvable:$true] %s501
          %507 = dma.hbm_to_vmem [thread:$0]  %s500, 1024, %s502, %s491, 64, 64, 4
        $region40: #{tpu_custom_call.1} parent=15 // pred_fallthru
          _
        // Predicated region
        $region41: #{tpu_custom_call.1} parent=15 // pred_check
          %p508 = pneg %p219
        $region42: #{tpu_custom_call.1} parent=15 // pred_check_branch
          %510 = sbr.rel (%p508) target = $region44
        $region43: #{tpu_custom_call.1} parent=15 // pred_region
          %p511 = scmp.lt.s32.totalorder %s39, 1
          %s512 = scalar_select %p511, %s39, 1
          %s513 = smul.addr %s512, 16
          %s514 = smul.addr %s513, 8
          %s515 = scalar_lea.vmem %s6, %s514
        $region44: #{tpu_custom_call.1} parent=15 // pred_fallthru
          _
        // Predicated region
        $region45: #{tpu_custom_call.1} parent=15 // pred_check
          %p516 = pneg %p245
        $region46: #{tpu_custom_call.1} parent=15 // pred_check_branch
          %518 = sbr.rel (%p516) target = $region48
        $region47: #{tpu_custom_call.1} parent=15 // pred_region
          %p519 = scmp.lt.s32.totalorder %s39, 1
          %s520 = scalar_select %p519, %s39, 1
          %s521 = scalar_lea.vmem %s7, %s520
        $region48: #{tpu_custom_call.1} parent=15 // pred_fallthru
          _
        // Predicated region
        $region49: #{tpu_custom_call.1} parent=15 // pred_check
          %p522 = pneg %p271
        $region50: #{tpu_custom_call.1} parent=15 // pred_check_branch
          %524 = sbr.rel (%p522) target = $region52
        $region51: #{tpu_custom_call.1} parent=15 // pred_region
          %p525 = scmp.lt.s32.totalorder %s39, 1
          %s526 = scalar_select %p525, %s39, 1
          %s527 = scalar_lea.vmem %s8, %s526
        $region52: #{tpu_custom_call.1} parent=15 // pred_fallthru
          _
        // Predicated region
        $region53: #{tpu_custom_call.1} parent=15 // pred_check
          %p528 = pneg %p297
        $region54: #{tpu_custom_call.1} parent=15 // pred_check_branch
          %530 = sbr.rel (%p528) target = $region56
        $region55: #{tpu_custom_call.1} parent=15 // pred_region
          %s531 = sand.u32 %s31, 1
          %s532 = scalar_lea.sflag [#allocation9], %s531
          %s533 = sand.u32 %s287, 1
          %s534 = smul.addr %s533, 128
          %s535 = scalar_lea.vmem [#allocation8], %s534
          %s537 = ssub.s32 2048, 2048
          %538 = vsyncadd %s532, %s537
          %s539 = smul.addr %s39, 32
          %s540 = smul.addr %s539, 64
          %s541 = scalar_lea.hbm %s9, %s540
          %s542 = sshll.u32 %s535, 4
          %s543 = int_to_ptr.vmem [resolvable:$true] %s542
          %548 = dma.hbm_to_vmem [thread:$0]  %s541, 2048, %s543, %s532, 128, 128, 8
        $region56: #{tpu_custom_call.1} parent=15 // pred_fallthru
          _
        // Predicated region
        $region57: #{tpu_custom_call.1} parent=15 // pred_check
          %p549 = pneg %p323
        $region58: #{tpu_custom_call.1} parent=15 // pred_check_branch
          %551 = sbr.rel (%p549) target = $region60
        $region59: #{tpu_custom_call.1} parent=15 // pred_region
          %p552 = scmp.lt.s32.totalorder %s39, 1
          %s553 = scalar_select %p552, %s39, 1
          %s554 = smul.addr %s553, 2
          %s555 = scalar_lea.vmem %s10, %s554
        $region60: #{tpu_custom_call.1} parent=15 // pred_fallthru
          _
        // Predicated region
        $region61: #{tpu_custom_call.1} parent=15 // pred_check
          %p556 = pneg %p349
        $region62: #{tpu_custom_call.1} parent=15 // pred_check_branch
          %558 = sbr.rel (%p556) target = $region64
        $region63: #{tpu_custom_call.1} parent=15 // pred_region
          %s559 = sand.u32 %s31, 1
          %s560 = scalar_lea.sflag [#allocation9], %s559
          %s561 = sand.u32 %s339, 1
          %s562 = smul.addr %s561, 128
          %s563 = scalar_lea.vmem [#allocation10], %s562
          %s565 = ssub.s32 2048, 2048
          %566 = vsyncadd %s560, %s565
          %s567 = smul.addr %s39, 32
          %s568 = smul.addr %s567, 64
          %s569 = scalar_lea.hbm %s11, %s568
          %s570 = sshll.u32 %s563, 4
          %s571 = int_to_ptr.vmem [resolvable:$true] %s570
          %576 = dma.hbm_to_vmem [thread:$0]  %s569, 2048, %s571, %s560, 64, 64, 4
        $region64: #{tpu_custom_call.1} parent=15 // pred_fallthru
          _
        // Predicated region
        $region65: #{tpu_custom_call.1} parent=15 // pred_check
          %p577 = pneg %p375
        $region66: #{tpu_custom_call.1} parent=15 // pred_check_branch
          %579 = sbr.rel (%p577) target = $region68
        $region67: #{tpu_custom_call.1} parent=15 // pred_region
          %p580 = scmp.lt.s32.totalorder %s39, 1
          %s581 = scalar_select %p580, %s39, 1
          %s582 = scalar_lea.vmem %s12, %s581
        $region68: #{tpu_custom_call.1} parent=15 // pred_fallthru
          _
      $region16: #{tpu_custom_call.1} parent=5 // pred_fallthru
        _
      %p583 = scmp.le.s32.totalorder 1, %s31
      %p584 = scmp.lt.s32.totalorder %s31, 5
      %p585 = pnand %p583, %p584
      %p586 = pneg %p585
      // Predicated region
      $region69: #{tpu_custom_call.1} parent=5 // pred_check
        _
      $region70: #{tpu_custom_call.1} parent=5 // pred_check_branch
        %588 = sbr.rel (%p585) target = $region72
      $region71: #{tpu_custom_call.1} parent=5 // pred_region
        %s589 = ssub.s32 %s31, 1
        %s590 = sand.u32 %s82, 1
        %s591 = scalar_lea.sflag [#allocation3], %s590
        %s592 = sand.u32 %s82, 1
        %s593 = scalar_lea.vmem [#allocation2], %s592
        // Predicated region
        $region73: #{tpu_custom_call.1} parent=71 // pred_check
          %p594 = pneg %p95
        $region74: #{tpu_custom_call.1} parent=71 // pred_check_branch
          %596 = sbr.rel (%p594) target = $region76
        $region75: #{tpu_custom_call.1} parent=71 // pred_region
          %597 = dma.done %s591, 16
        $region76: #{tpu_custom_call.1} parent=71 // pred_fallthru
          _
        %s598 = sand.u32 %s36, 1
        %s599 = scalar_lea.sflag [#allocation6], %s598
        %s600 = sand.u32 %s134, 1
        %s601 = smul.addr %s600, 64
        %s602 = scalar_lea.vmem [#allocation5], %s601
        // Predicated region
        $region77: #{tpu_custom_call.1} parent=71 // pred_check
          %p603 = pneg %p147
        $region78: #{tpu_custom_call.1} parent=71 // pred_check_branch
          %605 = sbr.rel (%p603) target = $region80
        $region79: #{tpu_custom_call.1} parent=71 // pred_region
          %606 = dma.done %s599, 1024
        $region80: #{tpu_custom_call.1} parent=71 // pred_fallthru
          _
        %s607 = sand.u32 %s36, 1
        %s608 = scalar_lea.sflag [#allocation6], %s607
        %s609 = sand.u32 %s186, 1
        %s610 = smul.addr %s609, 64
        %s611 = scalar_lea.vmem [#allocation7], %s610
        // Predicated region
        $region81: #{tpu_custom_call.1} parent=71 // pred_check
          %p612 = pneg %p199
        $region82: #{tpu_custom_call.1} parent=71 // pred_check_branch
          %614 = sbr.rel (%p612) target = $region84
        $region83: #{tpu_custom_call.1} parent=71 // pred_region
          %615 = dma.done %s608, 1024
        $region84: #{tpu_custom_call.1} parent=71 // pred_fallthru
          _
        %s616 = sand.u32 %s36, 1
        %s617 = scalar_lea.sflag [#allocation9], %s616
        %s618 = sand.u32 %s290, 1
        %s619 = smul.addr %s618, 128
        %s620 = scalar_lea.vmem [#allocation8], %s619
        // Predicated region
        $region85: #{tpu_custom_call.1} parent=71 // pred_check
          %p621 = pneg %p303
        $region86: #{tpu_custom_call.1} parent=71 // pred_check_branch
          %623 = sbr.rel (%p621) target = $region88
        $region87: #{tpu_custom_call.1} parent=71 // pred_region
          %624 = dma.done %s617, 2048
        $region88: #{tpu_custom_call.1} parent=71 // pred_fallthru
          _
        %s625 = sand.u32 %s36, 1
        %s626 = scalar_lea.sflag [#allocation9], %s625
        %s627 = sand.u32 %s342, 1
        %s628 = smul.addr %s627, 128
        %s629 = scalar_lea.vmem [#allocation10], %s628
        // Predicated region
        $region89: #{tpu_custom_call.1} parent=71 // pred_check
          %p630 = pneg %p355
        $region90: #{tpu_custom_call.1} parent=71 // pred_check_branch
          %632 = sbr.rel (%p630) target = $region92
        $region91: #{tpu_custom_call.1} parent=71 // pred_region
          %633 = dma.done %s626, 2048
        $region92: #{tpu_custom_call.1} parent=71 // pred_fallthru
          _
        %s634 = smul.u32 32, %s40
        %p635 = scmp.lt.s32.totalorder %s634, 63
        %s636 = scalar_select %p635, %s634, 63
        %s637 = smul.addr %s636, 8
        %s638 = scalar_lea.vmem %s0, %s637
        %p639 = pneg %p69
        %p640 = pneg %p66
        %s641 = sand.u32 %s82, 1
        %s642 = scalar_lea.sflag [#allocation3], %s641
        %s643 = sand.u32 %s82, 1
        %s644 = scalar_lea.vmem [#allocation2], %s643
        %p645 = pneg %p95
        %p646 = pneg %p92
        %p647 = scmp.lt.s32.totalorder %s41, 1
        %s648 = scalar_select %p647, %s41, 1
        %s649 = scalar_lea.vmem %s2, %s648
        %p650 = pneg %p121
        %p651 = pneg %p118
        %s652 = sand.u32 %s36, 1
        %s653 = scalar_lea.sflag [#allocation6], %s652
        %s654 = sand.u32 %s134, 1
        %s655 = smul.addr %s654, 64
        %s656 = scalar_lea.vmem [#allocation5], %s655
        %p657 = pneg %p147
        %p658 = pneg %p144
        %p659 = scmp.lt.s32.totalorder %s41, 1
        %s660 = scalar_select %p659, %s41, 1
        %s661 = smul.addr %s660, 16
        %s662 = smul.addr %s661, 8
        %s663 = scalar_lea.vmem %s4, %s662
        %p664 = pneg %p173
        %p665 = pneg %p170
        %s666 = sand.u32 %s36, 1
        %s667 = scalar_lea.sflag [#allocation6], %s666
        %s668 = sand.u32 %s186, 1
        %s669 = smul.addr %s668, 64
        %s670 = scalar_lea.vmem [#allocation7], %s669
        %p671 = pneg %p199
        %p672 = pneg %p196
        %p673 = scmp.lt.s32.totalorder %s41, 1
        %s674 = scalar_select %p673, %s41, 1
        %s675 = smul.addr %s674, 16
        %s676 = smul.addr %s675, 8
        %s677 = scalar_lea.vmem %s6, %s676
        %p678 = pneg %p225
        %p679 = pneg %p222
        %p680 = scmp.lt.s32.totalorder %s41, 1
        %s681 = scalar_select %p680, %s41, 1
        %s682 = scalar_lea.vmem %s7, %s681
        %p683 = pneg %p251
        %p684 = pneg %p248
        %p685 = scmp.lt.s32.totalorder %s41, 1
        %s686 = scalar_select %p685, %s41, 1
        %s687 = scalar_lea.vmem %s8, %s686
        %p688 = pneg %p277
        %p689 = pneg %p274
        %s690 = sand.u32 %s36, 1
        %s691 = scalar_lea.sflag [#allocation9], %s690
        %s692 = sand.u32 %s290, 1
        %s693 = smul.addr %s692, 128
        %s694 = scalar_lea.vmem [#allocation8], %s693
        %p695 = pneg %p303
        %p696 = pneg %p300
        %p697 = scmp.lt.s32.totalorder %s41, 1
        %s698 = scalar_select %p697, %s41, 1
        %s699 = smul.addr %s698, 2
        %s700 = scalar_lea.vmem %s10, %s699
        %p701 = pneg %p329
        %p702 = pneg %p326
        %s703 = sand.u32 %s36, 1
        %s704 = scalar_lea.sflag [#allocation9], %s703
        %s705 = sand.u32 %s342, 1
        %s706 = smul.addr %s705, 128
        %s707 = scalar_lea.vmem [#allocation10], %s706
        %p708 = pneg %p355
        %p709 = pneg %p352
        %p710 = scmp.lt.s32.totalorder %s41, 1
        %s711 = scalar_select %p710, %s41, 1
        %s712 = scalar_lea.vmem %s12, %s711
        %p713 = pneg %p381
        %p714 = pneg %p378
        %p715 = pneg %p407
        %p716 = pneg %p404
        %s717 = sand.u32 %s394, 1
        %s718 = scalar_lea.sflag [#allocation4], %s717
        %s719 = sand.u32 %s394, 1
        %s720 = smul.addr %s719, 256
        %s721 = scalar_lea.vmem [#allocation11], %s720
        %s722 = smul.u32 32, %s40
        %p723 = scmp.lt.s32.totalorder %s722, 63
        %s724 = scalar_select %p723, %s722, 63
        %s725 = smul.addr %s724, 8
        %s726 = scalar_lea.vmem %s0, %s725
        %s727 = smul.u32 32, %s40
        %p728 = scmp.lt.s32.totalorder %s41, 1
        %s729 = scalar_select %p728, %s41, 1
        %s730 = scalar_lea.vmem %s2, %s729
        %p731 = scmp.lt.s32.totalorder %s41, 1
        %s732 = scalar_select %p731, %s41, 1
        %s733 = smul.addr %s732, 16
        %s734 = smul.addr %s733, 8
        %s735 = scalar_lea.vmem %s4, %s734
        %p736 = scmp.lt.s32.totalorder %s41, 1
        %s737 = scalar_select %p736, %s41, 1
        %s738 = smul.addr %s737, 16
        %s739 = smul.addr %s738, 8
        %s740 = scalar_lea.vmem %s6, %s739
        %p741 = scmp.lt.s32.totalorder %s41, 1
        %s742 = scalar_select %p741, %s41, 1
        %s743 = scalar_lea.vmem %s7, %s742
        %p744 = scmp.lt.s32.totalorder %s41, 1
        %s745 = scalar_select %p744, %s41, 1
        %s746 = scalar_lea.vmem %s8, %s745
        %p747 = scmp.lt.s32.totalorder %s41, 1
        %s748 = scalar_select %p747, %s41, 1
        %s749 = smul.addr %s748, 2
        %s750 = scalar_lea.vmem %s10, %s749
        %p751 = scmp.lt.s32.totalorder %s41, 1
        %s752 = scalar_select %p751, %s41, 1
        %s753 = scalar_lea.vmem %s12, %s752
        %s754 = smul.u32 32, %s40
        %p756 = scmp.eq.s32.totalorder %s41, 0
        // Predicated region
        $region93: #{tpu_custom_call.1} parent=71 // pred_check
          %p757 = pneg %p756
        $region94: #{tpu_custom_call.1} parent=71 // pred_check_branch
          %759 = sbr.rel (%p757) target = $region96
        $region95: #{tpu_custom_call.1} parent=71 // pred_region
          %v760 = vld [vmem:[%s726] sm:$0xff]
          %v761 = vld [vmem:[%s726 + $0x8] sm:$0xff]
          %v762 = vld [vmem:[%s726 + $0x10] sm:$0xff]
          %v763 = vld [vmem:[%s726 + $0x18] sm:$0xff]
          %v764 = vld [vmem:[%s726 + $0x20] sm:$0xff]
          %v765 = vld [vmem:[%s726 + $0x28] sm:$0xff]
          %v766 = vld [vmem:[%s726 + $0x30] sm:$0xff]
          %v767 = vld [vmem:[%s726 + $0x38] sm:$0xff]
          %v768 = vld [vmem:[%s726 + $0x40] sm:$0xff]
          %v769 = vld [vmem:[%s726 + $0x48] sm:$0xff]
          %v770 = vld [vmem:[%s726 + $0x50] sm:$0xff]
          %v771 = vld [vmem:[%s726 + $0x58] sm:$0xff]
          %v772 = vld [vmem:[%s726 + $0x60] sm:$0xff]
          %v773 = vld [vmem:[%s726 + $0x68] sm:$0xff]
          %v774 = vld [vmem:[%s726 + $0x70] sm:$0xff]
          %v775 = vld [vmem:[%s726 + $0x78] sm:$0xff]
          %v776 = vld [vmem:[%s726 + $0x80] sm:$0xff]
          %v777 = vld [vmem:[%s726 + $0x88] sm:$0xff]
          %v778 = vld [vmem:[%s726 + $0x90] sm:$0xff]
          %v779 = vld [vmem:[%s726 + $0x98] sm:$0xff]
          %v780 = vld [vmem:[%s726 + $0xa0] sm:$0xff]
          %v781 = vld [vmem:[%s726 + $0xa8] sm:$0xff]
          %v782 = vld [vmem:[%s726 + $0xb0] sm:$0xff]
          %v783 = vld [vmem:[%s726 + $0xb8] sm:$0xff]
          %v784 = vld [vmem:[%s726 + $0xc0] sm:$0xff]
          %v785 = vld [vmem:[%s726 + $0xc8] sm:$0xff]
          %v786 = vld [vmem:[%s726 + $0xd0] sm:$0xff]
          %v787 = vld [vmem:[%s726 + $0xd8] sm:$0xff]
          %v788 = vld [vmem:[%s726 + $0xe0] sm:$0xff]
          %v789 = vld [vmem:[%s726 + $0xe8] sm:$0xff]
          %v790 = vld [vmem:[%s726 + $0xf0] sm:$0xff]
          %v791 = vld [vmem:[%s726 + $0xf8] sm:$0xff]
          %792 = vst [vmem:[%s721] sm:$0xff] %v760
          %793 = vst [vmem:[%s721 + $0x8] sm:$0xff] %v761
          %794 = vst [vmem:[%s721 + $0x10] sm:$0xff] %v762
          %795 = vst [vmem:[%s721 + $0x18] sm:$0xff] %v763
          %796 = vst [vmem:[%s721 + $0x20] sm:$0xff] %v764
          %797 = vst [vmem:[%s721 + $0x28] sm:$0xff] %v765
          %798 = vst [vmem:[%s721 + $0x30] sm:$0xff] %v766
          %799 = vst [vmem:[%s721 + $0x38] sm:$0xff] %v767
          %800 = vst [vmem:[%s721 + $0x40] sm:$0xff] %v768
          %801 = vst [vmem:[%s721 + $0x48] sm:$0xff] %v769
          %802 = vst [vmem:[%s721 + $0x50] sm:$0xff] %v770
          %803 = vst [vmem:[%s721 + $0x58] sm:$0xff] %v771
          %804 = vst [vmem:[%s721 + $0x60] sm:$0xff] %v772
          %805 = vst [vmem:[%s721 + $0x68] sm:$0xff] %v773
          %806 = vst [vmem:[%s721 + $0x70] sm:$0xff] %v774
          %807 = vst [vmem:[%s721 + $0x78] sm:$0xff] %v775
          %808 = vst [vmem:[%s721 + $0x80] sm:$0xff] %v776
          %809 = vst [vmem:[%s721 + $0x88] sm:$0xff] %v777
          %810 = vst [vmem:[%s721 + $0x90] sm:$0xff] %v778
          %811 = vst [vmem:[%s721 + $0x98] sm:$0xff] %v779
          %812 = vst [vmem:[%s721 + $0xa0] sm:$0xff] %v780
          %813 = vst [vmem:[%s721 + $0xa8] sm:$0xff] %v781
          %814 = vst [vmem:[%s721 + $0xb0] sm:$0xff] %v782
          %815 = vst [vmem:[%s721 + $0xb8] sm:$0xff] %v783
          %816 = vst [vmem:[%s721 + $0xc0] sm:$0xff] %v784
          %817 = vst [vmem:[%s721 + $0xc8] sm:$0xff] %v785
          %818 = vst [vmem:[%s721 + $0xd0] sm:$0xff] %v786
          %819 = vst [vmem:[%s721 + $0xd8] sm:$0xff] %v787
          %820 = vst [vmem:[%s721 + $0xe0] sm:$0xff] %v788
          %821 = vst [vmem:[%s721 + $0xe8] sm:$0xff] %v789
          %822 = vst [vmem:[%s721 + $0xf0] sm:$0xff] %v790
          %823 = vst [vmem:[%s721 + $0xf8] sm:$0xff] %v791
        $region96: #{tpu_custom_call.1} parent=71 // pred_fallthru
          _
        %v824 = vld [vmem:[%s721] sm:$0xff]
        %v825 = vld [vmem:[%s721 + $0x8] sm:$0xff]
        %v826 = vld [vmem:[%s721 + $0x10] sm:$0xff]
        %v827 = vld [vmem:[%s721 + $0x18] sm:$0xff]
        %v828 = vld [vmem:[%s721 + $0x20] sm:$0xff]
        %v829 = vld [vmem:[%s721 + $0x28] sm:$0xff]
        %v830 = vld [vmem:[%s721 + $0x30] sm:$0xff]
        %v831 = vld [vmem:[%s721 + $0x38] sm:$0xff]
        %v832 = vld [vmem:[%s721 + $0x40] sm:$0xff]
        %v833 = vld [vmem:[%s721 + $0x48] sm:$0xff]
        %v834 = vld [vmem:[%s721 + $0x50] sm:$0xff]
        %v835 = vld [vmem:[%s721 + $0x58] sm:$0xff]
        %v836 = vld [vmem:[%s721 + $0x60] sm:$0xff]
        %v837 = vld [vmem:[%s721 + $0x68] sm:$0xff]
        %v838 = vld [vmem:[%s721 + $0x70] sm:$0xff]
        %v839 = vld [vmem:[%s721 + $0x78] sm:$0xff]
        %v840 = vld [vmem:[%s721 + $0x80] sm:$0xff]
        %v841 = vld [vmem:[%s721 + $0x88] sm:$0xff]
        %v842 = vld [vmem:[%s721 + $0x90] sm:$0xff]
        %v843 = vld [vmem:[%s721 + $0x98] sm:$0xff]
        %v844 = vld [vmem:[%s721 + $0xa0] sm:$0xff]
        %v845 = vld [vmem:[%s721 + $0xa8] sm:$0xff]
        %v846 = vld [vmem:[%s721 + $0xb0] sm:$0xff]
        %v847 = vld [vmem:[%s721 + $0xb8] sm:$0xff]
        %v848 = vld [vmem:[%s721 + $0xc0] sm:$0xff]
        %v849 = vld [vmem:[%s721 + $0xc8] sm:$0xff]
        %v850 = vld [vmem:[%s721 + $0xd0] sm:$0xff]
        %v851 = vld [vmem:[%s721 + $0xd8] sm:$0xff]
        %v852 = vld [vmem:[%s721 + $0xe0] sm:$0xff]
        %v853 = vld [vmem:[%s721 + $0xe8] sm:$0xff]
        %v854 = vld [vmem:[%s721 + $0xf0] sm:$0xff]
        %v855 = vld [vmem:[%s721 + $0xf8] sm:$0xff]
        %v856 = vld [vmem:[%s593] sm:$0x1]
        %v857 = vld [vmem:[%s730] sm:$0x1]
        %858 = vadd.xlane.f32.xlu0 %v824
        %v859 = vpop.xlane.xlu0 %858
        %860 = vadd.xlane.f32.xlu0 %v825
        %v861 = vpop.xlane.xlu0 %860
        %862 = vadd.xlane.f32.xlu0 %v826
        %v863 = vpop.xlane.xlu0 %862
        %864 = vadd.xlane.f32.xlu0 %v827
        %v865 = vpop.xlane.xlu0 %864
        %866 = vadd.xlane.f32.xlu0 %v828
        %v867 = vpop.xlane.xlu0 %866
        %868 = vadd.xlane.f32.xlu0 %v829
        %v869 = vpop.xlane.xlu0 %868
        %870 = vadd.xlane.f32.xlu0 %v830
        %v871 = vpop.xlane.xlu0 %870
        %872 = vadd.xlane.f32.xlu0 %v831
        %v873 = vpop.xlane.xlu0 %872
        %874 = vadd.xlane.f32.xlu0 %v832
        %v875 = vpop.xlane.xlu0 %874
        %876 = vadd.xlane.f32.xlu0 %v833
        %v877 = vpop.xlane.xlu0 %876
        %878 = vadd.xlane.f32.xlu0 %v834
        %v879 = vpop.xlane.xlu0 %878
        %880 = vadd.xlane.f32.xlu0 %v835
        %v881 = vpop.xlane.xlu0 %880
        %882 = vadd.xlane.f32.xlu0 %v836
        %v883 = vpop.xlane.xlu0 %882
        %884 = vadd.xlane.f32.xlu0 %v837
        %v885 = vpop.xlane.xlu0 %884
        %886 = vadd.xlane.f32.xlu0 %v838
        %v887 = vpop.xlane.xlu0 %886
        %888 = vadd.xlane.f32.xlu0 %v839
        %v889 = vpop.xlane.xlu0 %888
        %890 = vadd.xlane.f32.xlu0 %v840
        %v891 = vpop.xlane.xlu0 %890
        %892 = vadd.xlane.f32.xlu0 %v841
        %v893 = vpop.xlane.xlu0 %892
        %894 = vadd.xlane.f32.xlu0 %v842
        %v895 = vpop.xlane.xlu0 %894
        %896 = vadd.xlane.f32.xlu0 %v843
        %v897 = vpop.xlane.xlu0 %896
        %898 = vadd.xlane.f32.xlu0 %v844
        %v899 = vpop.xlane.xlu0 %898
        %900 = vadd.xlane.f32.xlu0 %v845
        %v901 = vpop.xlane.xlu0 %900
        %902 = vadd.xlane.f32.xlu0 %v846
        %v903 = vpop.xlane.xlu0 %902
        %904 = vadd.xlane.f32.xlu0 %v847
        %v905 = vpop.xlane.xlu0 %904
        %906 = vadd.xlane.f32.xlu0 %v848
        %v907 = vpop.xlane.xlu0 %906
        %908 = vadd.xlane.f32.xlu0 %v849
        %v909 = vpop.xlane.xlu0 %908
        %910 = vadd.xlane.f32.xlu0 %v850
        %v911 = vpop.xlane.xlu0 %910
        %912 = vadd.xlane.f32.xlu0 %v851
        %v913 = vpop.xlane.xlu0 %912
        %914 = vadd.xlane.f32.xlu0 %v852
        %v915 = vpop.xlane.xlu0 %914
        %916 = vadd.xlane.f32.xlu0 %v853
        %v917 = vpop.xlane.xlu0 %916
        %918 = vadd.xlane.f32.xlu0 %v854
        %v919 = vpop.xlane.xlu0 %918
        %920 = vadd.xlane.f32.xlu0 %v855
        %v921 = vpop.xlane.xlu0 %920
        %v922 = vrcp.pop 128.0
        %v923 = vmul.f32 %v859, %v922
        %v924 = vmul.f32 %v861, %v922
        %v925 = vmul.f32 %v863, %v922
        %v926 = vmul.f32 %v865, %v922
        %v927 = vmul.f32 %v867, %v922
        %v928 = vmul.f32 %v869, %v922
        %v929 = vmul.f32 %v871, %v922
        %v930 = vmul.f32 %v873, %v922
        %v931 = vmul.f32 %v875, %v922
        %v932 = vmul.f32 %v877, %v922
        %v933 = vmul.f32 %v879, %v922
        %v934 = vmul.f32 %v881, %v922
        %v935 = vmul.f32 %v883, %v922
        %v936 = vmul.f32 %v885, %v922
        %v937 = vmul.f32 %v887, %v922
        %v938 = vmul.f32 %v889, %v922
        %v939 = vmul.f32 %v891, %v922
        %v940 = vmul.f32 %v893, %v922
        %v941 = vmul.f32 %v895, %v922
        %v942 = vmul.f32 %v897, %v922
        %v943 = vmul.f32 %v899, %v922
        %v944 = vmul.f32 %v901, %v922
        %v945 = vmul.f32 %v903, %v922
        %v946 = vmul.f32 %v905, %v922
        %v947 = vmul.f32 %v907, %v922
        %v948 = vmul.f32 %v909, %v922
        %v949 = vmul.f32 %v911, %v922
        %v950 = vmul.f32 %v913, %v922
        %v951 = vmul.f32 %v915, %v922
        %v952 = vmul.f32 %v917, %v922
        %v953 = vmul.f32 %v919, %v922
        %v954 = vmul.f32 %v921, %v922
        %v955 = vmul.f32 %v824, %v824
        %v956 = vmul.f32 %v825, %v825
        %v957 = vmul.f32 %v826, %v826
        %v958 = vmul.f32 %v827, %v827
        %v959 = vmul.f32 %v828, %v828
        %v960 = vmul.f32 %v829, %v829
        %v961 = vmul.f32 %v830, %v830
        %v962 = vmul.f32 %v831, %v831
        %v963 = vmul.f32 %v832, %v832
        %v964 = vmul.f32 %v833, %v833
        %v965 = vmul.f32 %v834, %v834
        %v966 = vmul.f32 %v835, %v835
        %v967 = vmul.f32 %v836, %v836
        %v968 = vmul.f32 %v837, %v837
        %v969 = vmul.f32 %v838, %v838
        %v970 = vmul.f32 %v839, %v839
        %v971 = vmul.f32 %v840, %v840
        %v972 = vmul.f32 %v841, %v841
        %v973 = vmul.f32 %v842, %v842
        %v974 = vmul.f32 %v843, %v843
        %v975 = vmul.f32 %v844, %v844
        %v976 = vmul.f32 %v845, %v845
        %v977 = vmul.f32 %v846, %v846
        %v978 = vmul.f32 %v847, %v847
        %v979 = vmul.f32 %v848, %v848
        %v980 = vmul.f32 %v849, %v849
        %v981 = vmul.f32 %v850, %v850
        %v982 = vmul.f32 %v851, %v851
        %v983 = vmul.f32 %v852, %v852
        %v984 = vmul.f32 %v853, %v853
        %v985 = vmul.f32 %v854, %v854
        %v986 = vmul.f32 %v855, %v855
        %987 = vadd.xlane.f32.xlu0 %v955
        %v988 = vpop.xlane.xlu0 %987
        %989 = vadd.xlane.f32.xlu0 %v956
        %v990 = vpop.xlane.xlu0 %989
        %991 = vadd.xlane.f32.xlu0 %v957
        %v992 = vpop.xlane.xlu0 %991
        %993 = vadd.xlane.f32.xlu0 %v958
        %v994 = vpop.xlane.xlu0 %993
        %995 = vadd.xlane.f32.xlu0 %v959
        %v996 = vpop.xlane.xlu0 %995
        %997 = vadd.xlane.f32.xlu0 %v960
        %v998 = vpop.xlane.xlu0 %997
        %999 = vadd.xlane.f32.xlu0 %v961
        %v1000 = vpop.xlane.xlu0 %999
        %1001 = vadd.xlane.f32.xlu0 %v962
        %v1002 = vpop.xlane.xlu0 %1001
        %1003 = vadd.xlane.f32.xlu0 %v963
        %v1004 = vpop.xlane.xlu0 %1003
        %1005 = vadd.xlane.f32.xlu0 %v964
        %v1006 = vpop.xlane.xlu0 %1005
        %1007 = vadd.xlane.f32.xlu0 %v965
        %v1008 = vpop.xlane.xlu0 %1007
        %1009 = vadd.xlane.f32.xlu0 %v966
        %v1010 = vpop.xlane.xlu0 %1009
        %1011 = vadd.xlane.f32.xlu0 %v967
        %v1012 = vpop.xlane.xlu0 %1011
        %1013 = vadd.xlane.f32.xlu0 %v968
        %v1014 = vpop.xlane.xlu0 %1013
        %1015 = vadd.xlane.f32.xlu0 %v969
        %v1016 = vpop.xlane.xlu0 %1015
        %1017 = vadd.xlane.f32.xlu0 %v970
        %v1018 = vpop.xlane.xlu0 %1017
        %1019 = vadd.xlane.f32.xlu0 %v971
        %v1020 = vpop.xlane.xlu0 %1019
        %1021 = vadd.xlane.f32.xlu0 %v972
        %v1022 = vpop.xlane.xlu0 %1021
        %1023 = vadd.xlane.f32.xlu0 %v973
        %v1024 = vpop.xlane.xlu0 %1023
        %1025 = vadd.xlane.f32.xlu0 %v974
        %v1026 = vpop.xlane.xlu0 %1025
        %1027 = vadd.xlane.f32.xlu0 %v975
        %v1028 = vpop.xlane.xlu0 %1027
        %1029 = vadd.xlane.f32.xlu0 %v976
        %v1030 = vpop.xlane.xlu0 %1029
        %1031 = vadd.xlane.f32.xlu0 %v977
        %v1032 = vpop.xlane.xlu0 %1031
        %1033 = vadd.xlane.f32.xlu0 %v978
        %v1034 = vpop.xlane.xlu0 %1033
        %1035 = vadd.xlane.f32.xlu0 %v979
        %v1036 = vpop.xlane.xlu0 %1035
        %1037 = vadd.xlane.f32.xlu0 %v980
        %v1038 = vpop.xlane.xlu0 %1037
        %1039 = vadd.xlane.f32.xlu0 %v981
        %v1040 = vpop.xlane.xlu0 %1039
        %1041 = vadd.xlane.f32.xlu0 %v982
        %v1042 = vpop.xlane.xlu0 %1041
        %1043 = vadd.xlane.f32.xlu0 %v983
        %v1044 = vpop.xlane.xlu0 %1043
        %1045 = vadd.xlane.f32.xlu0 %v984
        %v1046 = vpop.xlane.xlu0 %1045
        %1047 = vadd.xlane.f32.xlu0 %v985
        %v1048 = vpop.xlane.xlu0 %1047
        %1049 = vadd.xlane.f32.xlu0 %v986
        %v1050 = vpop.xlane.xlu0 %1049
        %v1051 = vmul.f32 %v988, %v922
        %v1052 = vmul.f32 %v990, %v922
        %v1053 = vmul.f32 %v992, %v922
        %v1054 = vmul.f32 %v994, %v922
        %v1055 = vmul.f32 %v996, %v922
        %v1056 = vmul.f32 %v998, %v922
        %v1057 = vmul.f32 %v1000, %v922
        %v1058 = vmul.f32 %v1002, %v922
        %v1059 = vmul.f32 %v1004, %v922
        %v1060 = vmul.f32 %v1006, %v922
        %v1061 = vmul.f32 %v1008, %v922
        %v1062 = vmul.f32 %v1010, %v922
        %v1063 = vmul.f32 %v1012, %v922
        %v1064 = vmul.f32 %v1014, %v922
        %v1065 = vmul.f32 %v1016, %v922
        %v1066 = vmul.f32 %v1018, %v922
        %v1067 = vmul.f32 %v1020, %v922
        %v1068 = vmul.f32 %v1022, %v922
        %v1069 = vmul.f32 %v1024, %v922
        %v1070 = vmul.f32 %v1026, %v922
        %v1071 = vmul.f32 %v1028, %v922
        %v1072 = vmul.f32 %v1030, %v922
        %v1073 = vmul.f32 %v1032, %v922
        %v1074 = vmul.f32 %v1034, %v922
        %v1075 = vmul.f32 %v1036, %v922
        %v1076 = vmul.f32 %v1038, %v922
        %v1077 = vmul.f32 %v1040, %v922
        %v1078 = vmul.f32 %v1042, %v922
        %v1079 = vmul.f32 %v1044, %v922
        %v1080 = vmul.f32 %v1046, %v922
        %v1081 = vmul.f32 %v1048, %v922
        %v1082 = vmul.f32 %v1050, %v922
        %v1083 = vmul.f32 %v923, %v923
        %v1084 = vmul.f32 %v924, %v924
        %v1085 = vmul.f32 %v925, %v925
        %v1086 = vmul.f32 %v926, %v926
        %v1087 = vmul.f32 %v927, %v927
        %v1088 = vmul.f32 %v928, %v928
        %v1089 = vmul.f32 %v929, %v929
        %v1090 = vmul.f32 %v930, %v930
        %v1091 = vmul.f32 %v931, %v931
        %v1092 = vmul.f32 %v932, %v932
        %v1093 = vmul.f32 %v933, %v933
        %v1094 = vmul.f32 %v934, %v934
        %v1095 = vmul.f32 %v935, %v935
        %v1096 = vmul.f32 %v936, %v936
        %v1097 = vmul.f32 %v937, %v937
        %v1098 = vmul.f32 %v938, %v938
        %v1099 = vmul.f32 %v939, %v939
        %v1100 = vmul.f32 %v940, %v940
        %v1101 = vmul.f32 %v941, %v941
        %v1102 = vmul.f32 %v942, %v942
        %v1103 = vmul.f32 %v943, %v943
        %v1104 = vmul.f32 %v944, %v944
        %v1105 = vmul.f32 %v945, %v945
        %v1106 = vmul.f32 %v946, %v946
        %v1107 = vmul.f32 %v947, %v947
        %v1108 = vmul.f32 %v948, %v948
        %v1109 = vmul.f32 %v949, %v949
        %v1110 = vmul.f32 %v950, %v950
        %v1111 = vmul.f32 %v951, %v951
        %v1112 = vmul.f32 %v952, %v952
        %v1113 = vmul.f32 %v953, %v953
        %v1114 = vmul.f32 %v954, %v954
        %v1115 = vsub.f32 %v1051, %v1083
        %v1116 = vsub.f32 %v1052, %v1084
        %v1117 = vsub.f32 %v1053, %v1085
        %v1118 = vsub.f32 %v1054, %v1086
        %v1119 = vsub.f32 %v1055, %v1087
        %v1120 = vsub.f32 %v1056, %v1088
        %v1121 = vsub.f32 %v1057, %v1089
        %v1122 = vsub.f32 %v1058, %v1090
        %v1123 = vsub.f32 %v1059, %v1091
        %v1124 = vsub.f32 %v1060, %v1092
        %v1125 = vsub.f32 %v1061, %v1093
        %v1126 = vsub.f32 %v1062, %v1094
        %v1127 = vsub.f32 %v1063, %v1095
        %v1128 = vsub.f32 %v1064, %v1096
        %v1129 = vsub.f32 %v1065, %v1097
        %v1130 = vsub.f32 %v1066, %v1098
        %v1131 = vsub.f32 %v1067, %v1099
        %v1132 = vsub.f32 %v1068, %v1100
        %v1133 = vsub.f32 %v1069, %v1101
        %v1134 = vsub.f32 %v1070, %v1102
        %v1135 = vsub.f32 %v1071, %v1103
        %v1136 = vsub.f32 %v1072, %v1104
        %v1137 = vsub.f32 %v1073, %v1105
        %v1138 = vsub.f32 %v1074, %v1106
        %v1139 = vsub.f32 %v1075, %v1107
        %v1140 = vsub.f32 %v1076, %v1108
        %v1141 = vsub.f32 %v1077, %v1109
        %v1142 = vsub.f32 %v1078, %v1110
        %v1143 = vsub.f32 %v1079, %v1111
        %v1144 = vsub.f32 %v1080, %v1112
        %v1145 = vsub.f32 %v1081, %v1113
        %v1146 = vsub.f32 %v1082, %v1114
        %v1147 = vsub.f32 %v824, %v923
        %v1148 = vsub.f32 %v825, %v924
        %v1149 = vsub.f32 %v826, %v925
        %v1150 = vsub.f32 %v827, %v926
        %v1151 = vsub.f32 %v828, %v927
        %v1152 = vsub.f32 %v829, %v928
        %v1153 = vsub.f32 %v830, %v929
        %v1154 = vsub.f32 %v831, %v930
        %v1155 = vsub.f32 %v832, %v931
        %v1156 = vsub.f32 %v833, %v932
        %v1157 = vsub.f32 %v834, %v933
        %v1158 = vsub.f32 %v835, %v934
        %v1159 = vsub.f32 %v836, %v935
        %v1160 = vsub.f32 %v837, %v936
        %v1161 = vsub.f32 %v838, %v937
        %v1162 = vsub.f32 %v839, %v938
        %v1163 = vsub.f32 %v840, %v939
        %v1164 = vsub.f32 %v841, %v940
        %v1165 = vsub.f32 %v842, %v941
        %v1166 = vsub.f32 %v843, %v942
        %v1167 = vsub.f32 %v844, %v943
        %v1168 = vsub.f32 %v845, %v944
        %v1169 = vsub.f32 %v846, %v945
        %v1170 = vsub.f32 %v847, %v946
        %v1171 = vsub.f32 %v848, %v947
        %v1172 = vsub.f32 %v849, %v948
        %v1173 = vsub.f32 %v850, %v949
        %v1174 = vsub.f32 %v851, %v950
        %v1175 = vsub.f32 %v852, %v951
        %v1176 = vsub.f32 %v853, %v952
        %v1177 = vsub.f32 %v854, %v953
        %v1178 = vsub.f32 %v855, %v954
        %v1179 = vadd.f32 %v1115, 1e-05
        %v1180 = vadd.f32 %v1116, 1e-05
        %v1181 = vadd.f32 %v1117, 1e-05
        %v1182 = vadd.f32 %v1118, 1e-05
        %v1183 = vadd.f32 %v1119, 1e-05
        %v1184 = vadd.f32 %v1120, 1e-05
        %v1185 = vadd.f32 %v1121, 1e-05
        %v1186 = vadd.f32 %v1122, 1e-05
        %v1187 = vadd.f32 %v1123, 1e-05
        %v1188 = vadd.f32 %v1124, 1e-05
        %v1189 = vadd.f32 %v1125, 1e-05
        %v1190 = vadd.f32 %v1126, 1e-05
        %v1191 = vadd.f32 %v1127, 1e-05
        %v1192 = vadd.f32 %v1128, 1e-05
        %v1193 = vadd.f32 %v1129, 1e-05
        %v1194 = vadd.f32 %v1130, 1e-05
        %v1195 = vadd.f32 %v1131, 1e-05
        %v1196 = vadd.f32 %v1132, 1e-05
        %v1197 = vadd.f32 %v1133, 1e-05
        %v1198 = vadd.f32 %v1134, 1e-05
        %v1199 = vadd.f32 %v1135, 1e-05
        %v1200 = vadd.f32 %v1136, 1e-05
        %v1201 = vadd.f32 %v1137, 1e-05
        %v1202 = vadd.f32 %v1138, 1e-05
        %v1203 = vadd.f32 %v1139, 1e-05
        %v1204 = vadd.f32 %v1140, 1e-05
        %v1205 = vadd.f32 %v1141, 1e-05
        %v1206 = vadd.f32 %v1142, 1e-05
        %v1207 = vadd.f32 %v1143, 1e-05
        %v1208 = vadd.f32 %v1144, 1e-05
        %v1209 = vadd.f32 %v1145, 1e-05
        %v1210 = vadd.f32 %v1146, 1e-05
        %v1211 = vrsqrt.pop %v1179
        %v1212 = vrsqrt.pop %v1180
        %v1213 = vrsqrt.pop %v1181
        %v1214 = vrsqrt.pop %v1182
        %v1215 = vrsqrt.pop %v1183
        %v1216 = vrsqrt.pop %v1184
        %v1217 = vrsqrt.pop %v1185
        %v1218 = vrsqrt.pop %v1186
        %v1219 = vrsqrt.pop %v1187
        %v1220 = vrsqrt.pop %v1188
        %v1221 = vrsqrt.pop %v1189
        %v1222 = vrsqrt.pop %v1190
        %v1223 = vrsqrt.pop %v1191
        %v1224 = vrsqrt.pop %v1192
        %v1225 = vrsqrt.pop %v1193
        %v1226 = vrsqrt.pop %v1194
        %v1227 = vrsqrt.pop %v1195
        %v1228 = vrsqrt.pop %v1196
        %v1229 = vrsqrt.pop %v1197
        %v1230 = vrsqrt.pop %v1198
        %v1231 = vrsqrt.pop %v1199
        %v1232 = vrsqrt.pop %v1200
        %v1233 = vrsqrt.pop %v1201
        %v1234 = vrsqrt.pop %v1202
        %v1235 = vrsqrt.pop %v1203
        %v1236 = vrsqrt.pop %v1204
        %v1237 = vrsqrt.pop %v1205
        %v1238 = vrsqrt.pop %v1206
        %v1239 = vrsqrt.pop %v1207
        %v1240 = vrsqrt.pop %v1208
        %v1241 = vrsqrt.pop %v1209
        %v1242 = vrsqrt.pop %v1210
        %v1243 = vmul.f32 %v1147, %v1211
        %v1244 = vmul.f32 %v1148, %v1212
        %v1245 = vmul.f32 %v1149, %v1213
        %v1246 = vmul.f32 %v1150, %v1214
        %v1247 = vmul.f32 %v1151, %v1215
        %v1248 = vmul.f32 %v1152, %v1216
        %v1249 = vmul.f32 %v1153, %v1217
        %v1250 = vmul.f32 %v1154, %v1218
        %v1251 = vmul.f32 %v1155, %v1219
        %v1252 = vmul.f32 %v1156, %v1220
        %v1253 = vmul.f32 %v1157, %v1221
        %v1254 = vmul.f32 %v1158, %v1222
        %v1255 = vmul.f32 %v1159, %v1223
        %v1256 = vmul.f32 %v1160, %v1224
        %v1257 = vmul.f32 %v1161, %v1225
        %v1258 = vmul.f32 %v1162, %v1226
        %v1259 = vmul.f32 %v1163, %v1227
        %v1260 = vmul.f32 %v1164, %v1228
        %v1261 = vmul.f32 %v1165, %v1229
        %v1262 = vmul.f32 %v1166, %v1230
        %v1263 = vmul.f32 %v1167, %v1231
        %v1264 = vmul.f32 %v1168, %v1232
        %v1265 = vmul.f32 %v1169, %v1233
        %v1266 = vmul.f32 %v1170, %v1234
        %v1267 = vmul.f32 %v1171, %v1235
        %v1268 = vmul.f32 %v1172, %v1236
        %v1269 = vmul.f32 %v1173, %v1237
        %v1270 = vmul.f32 %v1174, %v1238
        %v1271 = vmul.f32 %v1175, %v1239
        %v1272 = vmul.f32 %v1176, %v1240
        %v1273 = vmul.f32 %v1177, %v1241
        %v1274 = vmul.f32 %v1178, %v1242
        %v1276 = vlaneseq
        %v1277 = vshrl.u32 %v1276, 7
        %v1278 = vsub.s32 0, %v1277
        %v1279 = vrot.slane %v856, %v1278
        %v1281 = vmul.f32 %v1243, %v1279
        %v1282 = vmul.f32 %v1244, %v1279
        %v1283 = vmul.f32 %v1245, %v1279
        %v1284 = vmul.f32 %v1246, %v1279
        %v1285 = vmul.f32 %v1247, %v1279
        %v1286 = vmul.f32 %v1248, %v1279
        %v1287 = vmul.f32 %v1249, %v1279
        %v1288 = vmul.f32 %v1250, %v1279
        %v1289 = vmul.f32 %v1251, %v1279
        %v1290 = vmul.f32 %v1252, %v1279
        %v1291 = vmul.f32 %v1253, %v1279
        %v1292 = vmul.f32 %v1254, %v1279
        %v1293 = vmul.f32 %v1255, %v1279
        %v1294 = vmul.f32 %v1256, %v1279
        %v1295 = vmul.f32 %v1257, %v1279
        %v1296 = vmul.f32 %v1258, %v1279
        %v1297 = vmul.f32 %v1259, %v1279
        %v1298 = vmul.f32 %v1260, %v1279
        %v1299 = vmul.f32 %v1261, %v1279
        %v1300 = vmul.f32 %v1262, %v1279
        %v1301 = vmul.f32 %v1263, %v1279
        %v1302 = vmul.f32 %v1264, %v1279
        %v1303 = vmul.f32 %v1265, %v1279
        %v1304 = vmul.f32 %v1266, %v1279
        %v1305 = vmul.f32 %v1267, %v1279
        %v1306 = vmul.f32 %v1268, %v1279
        %v1307 = vmul.f32 %v1269, %v1279
        %v1308 = vmul.f32 %v1270, %v1279
        %v1309 = vmul.f32 %v1271, %v1279
        %v1310 = vmul.f32 %v1272, %v1279
        %v1311 = vmul.f32 %v1273, %v1279
        %v1312 = vmul.f32 %v1274, %v1279
        %v1314 = vlaneseq
        %v1315 = vshrl.u32 %v1314, 7
        %v1316 = vsub.s32 0, %v1315
        %v1317 = vrot.slane %v857, %v1316
        %v1319 = vadd.f32 %v1281, %v1317
        %v1320 = vadd.f32 %v1282, %v1317
        %v1321 = vadd.f32 %v1283, %v1317
        %v1322 = vadd.f32 %v1284, %v1317
        %v1323 = vadd.f32 %v1285, %v1317
        %v1324 = vadd.f32 %v1286, %v1317
        %v1325 = vadd.f32 %v1287, %v1317
        %v1326 = vadd.f32 %v1288, %v1317
        %v1327 = vadd.f32 %v1289, %v1317
        %v1328 = vadd.f32 %v1290, %v1317
        %v1329 = vadd.f32 %v1291, %v1317
        %v1330 = vadd.f32 %v1292, %v1317
        %v1331 = vadd.f32 %v1293, %v1317
        %v1332 = vadd.f32 %v1294, %v1317
        %v1333 = vadd.f32 %v1295, %v1317
        %v1334 = vadd.f32 %v1296, %v1317
        %v1335 = vadd.f32 %v1297, %v1317
        %v1336 = vadd.f32 %v1298, %v1317
        %v1337 = vadd.f32 %v1299, %v1317
        %v1338 = vadd.f32 %v1300, %v1317
        %v1339 = vadd.f32 %v1301, %v1317
        %v1340 = vadd.f32 %v1302, %v1317
        %v1341 = vadd.f32 %v1303, %v1317
        %v1342 = vadd.f32 %v1304, %v1317
        %v1343 = vadd.f32 %v1305, %v1317
        %v1344 = vadd.f32 %v1306, %v1317
        %v1345 = vadd.f32 %v1307, %v1317
        %v1346 = vadd.f32 %v1308, %v1317
        %v1347 = vadd.f32 %v1309, %v1317
        %v1348 = vadd.f32 %v1310, %v1317
        %v1349 = vadd.f32 %v1311, %v1317
        %v1350 = vadd.f32 %v1312, %v1317
        %v1351 = vld [vmem:[%s602] sm:$0xf]
        %v1352 = vld [vmem:[%s602 + $0x4] sm:$0xf]
        %v1353 = vld [vmem:[%s602 + $0x8] sm:$0xf]
        %v1354 = vld [vmem:[%s602 + $0xc] sm:$0xf]
        %v1355 = vld [vmem:[%s602 + $0x10] sm:$0xf]
        %v1356 = vld [vmem:[%s602 + $0x14] sm:$0xf]
        %v1357 = vld [vmem:[%s602 + $0x18] sm:$0xf]
        %v1358 = vld [vmem:[%s602 + $0x1c] sm:$0xf]
        %v1359 = vld [vmem:[%s602 + $0x20] sm:$0xf]
        %v1360 = vld [vmem:[%s602 + $0x24] sm:$0xf]
        %v1361 = vld [vmem:[%s602 + $0x28] sm:$0xf]
        %v1362 = vld [vmem:[%s602 + $0x2c] sm:$0xf]
        %v1363 = vld [vmem:[%s602 + $0x30] sm:$0xf]
        %v1364 = vld [vmem:[%s602 + $0x34] sm:$0xf]
        %v1365 = vld [vmem:[%s602 + $0x38] sm:$0xf]
        %v1366 = vld [vmem:[%s602 + $0x3c] sm:$0xf]
        %v1367 = vld [vmem:[%s611] sm:$0xf]
        %v1368 = vld [vmem:[%s611 + $0x4] sm:$0xf]
        %v1369 = vld [vmem:[%s611 + $0x8] sm:$0xf]
        %v1370 = vld [vmem:[%s611 + $0xc] sm:$0xf]
        %v1371 = vld [vmem:[%s611 + $0x10] sm:$0xf]
        %v1372 = vld [vmem:[%s611 + $0x14] sm:$0xf]
        %v1373 = vld [vmem:[%s611 + $0x18] sm:$0xf]
        %v1374 = vld [vmem:[%s611 + $0x1c] sm:$0xf]
        %v1375 = vld [vmem:[%s611 + $0x20] sm:$0xf]
        %v1376 = vld [vmem:[%s611 + $0x24] sm:$0xf]
        %v1377 = vld [vmem:[%s611 + $0x28] sm:$0xf]
        %v1378 = vld [vmem:[%s611 + $0x2c] sm:$0xf]
        %v1379 = vld [vmem:[%s611 + $0x30] sm:$0xf]
        %v1380 = vld [vmem:[%s611 + $0x34] sm:$0xf]
        %v1381 = vld [vmem:[%s611 + $0x38] sm:$0xf]
        %v1382 = vld [vmem:[%s611 + $0x3c] sm:$0xf]
        %v1383 = vld [vmem:[%s735] sm:$0xff]
        %v1384 = vld [vmem:[%s735 + $0x8] sm:$0xff]
        %v1385 = vld [vmem:[%s735 + $0x10] sm:$0xff]
        %v1386 = vld [vmem:[%s735 + $0x18] sm:$0xff]
        %v1387 = vld [vmem:[%s735 + $0x20] sm:$0xff]
        %v1388 = vld [vmem:[%s735 + $0x28] sm:$0xff]
        %v1389 = vld [vmem:[%s735 + $0x30] sm:$0xff]
        %v1390 = vld [vmem:[%s735 + $0x38] sm:$0xff]
        %v1391 = vld [vmem:[%s735 + $0x40] sm:$0xff]
        %v1392 = vld [vmem:[%s735 + $0x48] sm:$0xff]
        %v1393 = vld [vmem:[%s735 + $0x50] sm:$0xff]
        %v1394 = vld [vmem:[%s735 + $0x58] sm:$0xff]
        %v1395 = vld [vmem:[%s735 + $0x60] sm:$0xff]
        %v1396 = vld [vmem:[%s735 + $0x68] sm:$0xff]
        %v1397 = vld [vmem:[%s735 + $0x70] sm:$0xff]
        %v1398 = vld [vmem:[%s735 + $0x78] sm:$0xff]
        %v1399 = vld [vmem:[%s740] sm:$0xff]
        %v1400 = vld [vmem:[%s740 + $0x8] sm:$0xff]
        %v1401 = vld [vmem:[%s740 + $0x10] sm:$0xff]
        %v1402 = vld [vmem:[%s740 + $0x18] sm:$0xff]
        %v1403 = vld [vmem:[%s740 + $0x20] sm:$0xff]
        %v1404 = vld [vmem:[%s740 + $0x28] sm:$0xff]
        %v1405 = vld [vmem:[%s740 + $0x30] sm:$0xff]
        %v1406 = vld [vmem:[%s740 + $0x38] sm:$0xff]
        %v1407 = vld [vmem:[%s740 + $0x40] sm:$0xff]
        %v1408 = vld [vmem:[%s740 + $0x48] sm:$0xff]
        %v1409 = vld [vmem:[%s740 + $0x50] sm:$0xff]
        %v1410 = vld [vmem:[%s740 + $0x58] sm:$0xff]
        %v1411 = vld [vmem:[%s740 + $0x60] sm:$0xff]
        %v1412 = vld [vmem:[%s740 + $0x68] sm:$0xff]
        %v1413 = vld [vmem:[%s740 + $0x70] sm:$0xff]
        %v1414 = vld [vmem:[%s740 + $0x78] sm:$0xff]
        %v1415 = vpack.c.bf16 %v1320, %v1319
        %v1416 = vpack.c.bf16 %v1322, %v1321
        %v1417 = vpack.c.bf16 %v1324, %v1323
        %v1418 = vpack.c.bf16 %v1326, %v1325
        %v1419 = vpack.c.bf16 %v1328, %v1327
        %v1420 = vpack.c.bf16 %v1330, %v1329
        %v1421 = vpack.c.bf16 %v1332, %v1331
        %v1422 = vpack.c.bf16 %v1334, %v1333
        %1424 = vset.pattern.permute.xlu0 0
        %1425 = vperm.xlu0 %1424, %v1383
        %v1426 = vpop.permute.xlu0 %1425
        %1429 = vset.pattern.permute.xlu0 0
        %1430 = vperm.xlu0 %1429, %v1384
        %v1431 = vpop.permute.xlu0 %1430
        %1434 = vset.pattern.permute.xlu0 0
        %1435 = vperm.xlu0 %1434, %v1385
        %v1436 = vpop.permute.xlu0 %1435
        %1439 = vset.pattern.permute.xlu0 0
        %1440 = vperm.xlu0 %1439, %v1386
        %v1441 = vpop.permute.xlu0 %1440
        %1444 = vset.pattern.permute.xlu0 0
        %1445 = vperm.xlu0 %1444, %v1387
        %v1446 = vpop.permute.xlu0 %1445
        %1449 = vset.pattern.permute.xlu0 0
        %1450 = vperm.xlu0 %1449, %v1388
        %v1451 = vpop.permute.xlu0 %1450
        %1454 = vset.pattern.permute.xlu0 0
        %1455 = vperm.xlu0 %1454, %v1389
        %v1456 = vpop.permute.xlu0 %1455
        %1459 = vset.pattern.permute.xlu0 0
        %1460 = vperm.xlu0 %1459, %v1390
        %v1461 = vpop.permute.xlu0 %1460
        %1464 = vset.pattern.permute.xlu0 0
        %1465 = vperm.xlu0 %1464, %v1391
        %v1466 = vpop.permute.xlu0 %1465
        %1469 = vset.pattern.permute.xlu0 0
        %1470 = vperm.xlu0 %1469, %v1392
        %v1471 = vpop.permute.xlu0 %1470
        %1474 = vset.pattern.permute.xlu0 0
        %1475 = vperm.xlu0 %1474, %v1393
        %v1476 = vpop.permute.xlu0 %1475
        %1479 = vset.pattern.permute.xlu0 0
        %1480 = vperm.xlu0 %1479, %v1394
        %v1481 = vpop.permute.xlu0 %1480
        %1484 = vset.pattern.permute.xlu0 0
        %1485 = vperm.xlu0 %1484, %v1395
        %v1486 = vpop.permute.xlu0 %1485
        %1489 = vset.pattern.permute.xlu0 0
        %1490 = vperm.xlu0 %1489, %v1396
        %v1491 = vpop.permute.xlu0 %1490
        %1494 = vset.pattern.permute.xlu0 0
        %1495 = vperm.xlu0 %1494, %v1397
        %v1496 = vpop.permute.xlu0 %1495
        %1499 = vset.pattern.permute.xlu0 0
        %1500 = vperm.xlu0 %1499, %v1398
        %v1501 = vpop.permute.xlu0 %1500
        %v1519 = vunpack.c.l.b16 %v1351
        %v1520 = vunpack.c.l.b16 %v1352
        %v1521 = vunpack.c.l.b16 %v1353
        %v1522 = vunpack.c.l.b16 %v1354
        %v1523 = vunpack.c.l.b16 %v1355
        %v1524 = vunpack.c.l.b16 %v1356
        %v1525 = vunpack.c.l.b16 %v1357
        %v1526 = vunpack.c.l.b16 %v1358
        %v1527 = vunpack.c.l.b16 %v1359
        %v1528 = vunpack.c.l.b16 %v1360
        %v1529 = vunpack.c.l.b16 %v1361
        %v1530 = vunpack.c.l.b16 %v1362
        %v1531 = vunpack.c.l.b16 %v1363
        %v1532 = vunpack.c.l.b16 %v1364
        %v1533 = vunpack.c.l.b16 %v1365
        %v1534 = vunpack.c.l.b16 %v1366
        %v1535 = vpack.c.b16 %v1520, %v1519
        %v1536 = vpack.c.b16 %v1522, %v1521
        %v1537 = vpack.c.b16 %v1524, %v1523
        %v1538 = vpack.c.b16 %v1526, %v1525
        %v1539 = vpack.c.b16 %v1528, %v1527
        %v1540 = vpack.c.b16 %v1530, %v1529
        %v1541 = vpack.c.b16 %v1532, %v1531
        %v1542 = vpack.c.b16 %v1534, %v1533
        %1551 = vmatprep.subr.bf16.mxu0 0
        %1552 = vmatpush1.bf16.msra.mxu0 %v1415
        %1553 = vmatprep.subr.bf16.mxu0 0
        %1554 = vmatpush1.bf16.msra.mxu0 %v1416
        %1555 = vmatprep.subr.bf16.mxu0 0
        %1556 = vmatpush1.bf16.msra.mxu0 %v1417
        %1557 = vmatprep.subr.bf16.mxu0 0
        %1558 = vmatpush1.bf16.msra.mxu0 %v1418
        %1559 = vmatprep.subr.bf16.mxu0 0
        %1560 = vmatpush1.bf16.msra.mxu0 %v1419
        %1561 = vmatprep.subr.bf16.mxu0 0
        %1562 = vmatpush1.bf16.msra.mxu0 %v1420
        %1563 = vmatprep.subr.bf16.mxu0 0
        %1564 = vmatpush1.bf16.msra.mxu0 %v1421
        %1565 = vmatprep.subr.bf16.mxu0 0
        %1566 = vmatpush1.bf16.msra.mxu0 %v1422
        %1567 = vmatprep.subr.bf16.mxu0 0
        %1568 = vmatpush1.bf16.msra.mxu0 0
        %1569 = vmatprep.subr.bf16.mxu0 0
        %1570 = vmatpush1.bf16.msra.mxu0 0
        %1571 = vmatprep.subr.bf16.mxu0 0
        %1572 = vmatpush1.bf16.msra.mxu0 0
        %1573 = vmatprep.subr.bf16.mxu0 0
        %1574 = vmatpush1.bf16.msra.mxu0 0
        %1575 = vmatprep.subr.bf16.mxu0 0
        %1576 = vmatpush1.bf16.msra.mxu0 0
        %1577 = vmatprep.subr.bf16.mxu0 0
        %1578 = vmatpush1.bf16.msra.mxu0 0
        %1579 = vmatprep.subr.bf16.mxu0 0
        %1580 = vmatpush1.bf16.msra.mxu0 0
        %1581 = vmatprep.subr.bf16.mxu0 0
        %1582 = vmatpush1.bf16.msra.mxu0 0
        %1583 = vmatprep.mubr.bf16.mxu0 0
        %1584 = vmatmul.mubr.bf16.gmra.mrb[0].mxu0 %v1535
        %v1585 = vpop.f32.mrb[0].mxu0
        %v1586 = vadd.f32 %v1426, %v1585
        %v1587 = vpop.f32.mrb[0].mxu0
        %v1588 = vpop.f32.mrb[0].mxu0
        %v1589 = vadd.f32 %v1431, %v1588
        %v1590 = vpop.f32.mrb[0].mxu0
        %1591 = vmatprep.mubr.bf16.mxu0 0
        %1592 = vmatmul.mubr.bf16.gmra.mrb[0].mxu0 %v1536
        %v1593 = vpop.f32.mrb[0].mxu0
        %v1594 = vadd.f32 %v1436, %v1593
        %v1595 = vpop.f32.mrb[0].mxu0
        %v1596 = vpop.f32.mrb[0].mxu0
        %v1597 = vadd.f32 %v1441, %v1596
        %v1598 = vpop.f32.mrb[0].mxu0
        %1599 = vmatprep.mubr.bf16.mxu0 0
        %1600 = vmatmul.mubr.bf16.gmra.mrb[0].mxu0 %v1537
        %v1601 = vpop.f32.mrb[0].mxu0
        %v1602 = vadd.f32 %v1446, %v1601
        %v1603 = vpop.f32.mrb[0].mxu0
        %v1604 = vpop.f32.mrb[0].mxu0
        %v1605 = vadd.f32 %v1451, %v1604
        %v1606 = vpop.f32.mrb[0].mxu0
        %1607 = vmatprep.mubr.bf16.mxu0 0
        %1608 = vmatmul.mubr.bf16.gmra.mrb[0].mxu0 %v1538
        %v1609 = vpop.f32.mrb[0].mxu0
        %v1610 = vadd.f32 %v1456, %v1609
        %v1611 = vpop.f32.mrb[0].mxu0
        %v1612 = vpop.f32.mrb[0].mxu0
        %v1613 = vadd.f32 %v1461, %v1612
        %v1614 = vpop.f32.mrb[0].mxu0
        %1615 = vmatprep.mubr.bf16.mxu0 0
        %1616 = vmatmul.mubr.bf16.gmra.mrb[0].mxu0 %v1539
        %v1617 = vpop.f32.mrb[0].mxu0
        %v1618 = vadd.f32 %v1466, %v1617
        %v1619 = vpop.f32.mrb[0].mxu0
        %v1620 = vpop.f32.mrb[0].mxu0
        %v1621 = vadd.f32 %v1471, %v1620
        %v1622 = vpop.f32.mrb[0].mxu0
        %1623 = vmatprep.mubr.bf16.mxu0 0
        %1624 = vmatmul.mubr.bf16.gmra.mrb[0].mxu0 %v1540
        %v1625 = vpop.f32.mrb[0].mxu0
        %v1626 = vadd.f32 %v1476, %v1625
        %v1627 = vpop.f32.mrb[0].mxu0
        %v1628 = vpop.f32.mrb[0].mxu0
        %v1629 = vadd.f32 %v1481, %v1628
        %v1630 = vpop.f32.mrb[0].mxu0
        %1631 = vmatprep.mubr.bf16.mxu0 0
        %1632 = vmatmul.mubr.bf16.gmra.mrb[0].mxu0 %v1541
        %v1633 = vpop.f32.mrb[0].mxu0
        %v1634 = vadd.f32 %v1486, %v1633
        %v1635 = vpop.f32.mrb[0].mxu0
        %v1636 = vpop.f32.mrb[0].mxu0
        %v1637 = vadd.f32 %v1491, %v1636
        %v1638 = vpop.f32.mrb[0].mxu0
        %1639 = vmatprep.mubr.bf16.mxu0 0
        %1640 = vmatmul.mubr.bf16.gmra.mrb[0].mxu0 %v1542
        %v1641 = vpop.f32.mrb[0].mxu0
        %v1642 = vadd.f32 %v1496, %v1641
        %v1643 = vpop.f32.mrb[0].mxu0
        %v1644 = vpop.f32.mrb[0].mxu0
        %v1645 = vadd.f32 %v1501, %v1644
        %v1646 = vpop.f32.mrb[0].mxu0
        %1647 = vdwg.mxu0
        %v1648 = vmul.f32 %v1586, 0.5
        %v1649 = vmul.f32 %v1589, 0.5
        %v1650 = vmul.f32 %v1594, 0.5
        %v1651 = vmul.f32 %v1597, 0.5
        %v1652 = vmul.f32 %v1602, 0.5
        %v1653 = vmul.f32 %v1605, 0.5
        %v1654 = vmul.f32 %v1610, 0.5
        %v1655 = vmul.f32 %v1613, 0.5
        %v1656 = vmul.f32 %v1618, 0.5
        %v1657 = vmul.f32 %v1621, 0.5
        %v1658 = vmul.f32 %v1626, 0.5
        %v1659 = vmul.f32 %v1629, 0.5
        %v1660 = vmul.f32 %v1634, 0.5
        %v1661 = vmul.f32 %v1637, 0.5
        %v1662 = vmul.f32 %v1642, 0.5
        %v1663 = vmul.f32 %v1645, 0.5
        %v1664 = vmul.f32 %v1586, 0.70710677
        %v1665 = vmul.f32 %v1589, 0.70710677
        %v1666 = vmul.f32 %v1594, 0.70710677
        %v1667 = vmul.f32 %v1597, 0.70710677
        %v1668 = vmul.f32 %v1602, 0.70710677
        %v1669 = vmul.f32 %v1605, 0.70710677
        %v1670 = vmul.f32 %v1610, 0.70710677
        %v1671 = vmul.f32 %v1613, 0.70710677
        %v1672 = vmul.f32 %v1618, 0.70710677
        %v1673 = vmul.f32 %v1621, 0.70710677
        %v1674 = vmul.f32 %v1626, 0.70710677
        %v1675 = vmul.f32 %v1629, 0.70710677
        %v1676 = vmul.f32 %v1634, 0.70710677
        %v1677 = vmul.f32 %v1637, 0.70710677
        %v1678 = vmul.f32 %v1642, 0.70710677
        %v1679 = vmul.f32 %v1645, 0.70710677
        %vm1680 = vcmp.ge.f32.partialorder %v1664, 0.0
        %vm1681 = vcmp.ge.f32.partialorder %v1665, 0.0
        %vm1682 = vcmp.ge.f32.partialorder %v1666, 0.0
        %vm1683 = vcmp.ge.f32.partialorder %v1667, 0.0
        %vm1684 = vcmp.ge.f32.partialorder %v1668, 0.0
        %vm1685 = vcmp.ge.f32.partialorder %v1669, 0.0
        %vm1686 = vcmp.ge.f32.partialorder %v1670, 0.0
        %vm1687 = vcmp.ge.f32.partialorder %v1671, 0.0
        %vm1688 = vcmp.ge.f32.partialorder %v1672, 0.0
        %vm1689 = vcmp.ge.f32.partialorder %v1673, 0.0
        %vm1690 = vcmp.ge.f32.partialorder %v1674, 0.0
        %vm1691 = vcmp.ge.f32.partialorder %v1675, 0.0
        %vm1692 = vcmp.ge.f32.partialorder %v1676, 0.0
        %vm1693 = vcmp.ge.f32.partialorder %v1677, 0.0
        %vm1694 = vcmp.ge.f32.partialorder %v1678, 0.0
        %vm1695 = vcmp.ge.f32.partialorder %v1679, 0.0
        %v1696 = vsel %vm1680, 1.0, -1.0
        %v1697 = vsel %vm1681, 1.0, -1.0
        %v1698 = vsel %vm1682, 1.0, -1.0
        %v1699 = vsel %vm1683, 1.0, -1.0
        %v1700 = vsel %vm1684, 1.0, -1.0
        %v1701 = vsel %vm1685, 1.0, -1.0
        %v1702 = vsel %vm1686, 1.0, -1.0
        %v1703 = vsel %vm1687, 1.0, -1.0
        %v1704 = vsel %vm1688, 1.0, -1.0
        %v1705 = vsel %vm1689, 1.0, -1.0
        %v1706 = vsel %vm1690, 1.0, -1.0
        %v1707 = vsel %vm1691, 1.0, -1.0
        %v1708 = vsel %vm1692, 1.0, -1.0
        %v1709 = vsel %vm1693, 1.0, -1.0
        %v1710 = vsel %vm1694, 1.0, -1.0
        %v1711 = vsel %vm1695, 1.0, -1.0
        %v1712 = vand.u32 2147483647, %v1664
        %v1713 = vand.u32 2147483647, %v1665
        %v1714 = vand.u32 2147483647, %v1666
        %v1715 = vand.u32 2147483647, %v1667
        %v1716 = vand.u32 2147483647, %v1668
        %v1717 = vand.u32 2147483647, %v1669
        %v1718 = vand.u32 2147483647, %v1670
        %v1719 = vand.u32 2147483647, %v1671
        %v1720 = vand.u32 2147483647, %v1672
        %v1721 = vand.u32 2147483647, %v1673
        %v1722 = vand.u32 2147483647, %v1674
        %v1723 = vand.u32 2147483647, %v1675
        %v1724 = vand.u32 2147483647, %v1676
        %v1725 = vand.u32 2147483647, %v1677
        %v1726 = vand.u32 2147483647, %v1678
        %v1727 = vand.u32 2147483647, %v1679
        %v1728 = vmul.f32 %v1712, 0.3275911
        %v1729 = vmul.f32 %v1713, 0.3275911
        %v1730 = vmul.f32 %v1714, 0.3275911
        %v1731 = vmul.f32 %v1715, 0.3275911
        %v1732 = vmul.f32 %v1716, 0.3275911
        %v1733 = vmul.f32 %v1717, 0.3275911
        %v1734 = vmul.f32 %v1718, 0.3275911
        %v1735 = vmul.f32 %v1719, 0.3275911
        %v1736 = vmul.f32 %v1720, 0.3275911
        %v1737 = vmul.f32 %v1721, 0.3275911
        %v1738 = vmul.f32 %v1722, 0.3275911
        %v1739 = vmul.f32 %v1723, 0.3275911
        %v1740 = vmul.f32 %v1724, 0.3275911
        %v1741 = vmul.f32 %v1725, 0.3275911
        %v1742 = vmul.f32 %v1726, 0.3275911
        %v1743 = vmul.f32 %v1727, 0.3275911
        %v1744 = vadd.f32 %v1728, 1.0
        %v1745 = vadd.f32 %v1729, 1.0
        %v1746 = vadd.f32 %v1730, 1.0
        %v1747 = vadd.f32 %v1731, 1.0
        %v1748 = vadd.f32 %v1732, 1.0
        %v1749 = vadd.f32 %v1733, 1.0
        %v1750 = vadd.f32 %v1734, 1.0
        %v1751 = vadd.f32 %v1735, 1.0
        %v1752 = vadd.f32 %v1736, 1.0
        %v1753 = vadd.f32 %v1737, 1.0
        %v1754 = vadd.f32 %v1738, 1.0
        %v1755 = vadd.f32 %v1739, 1.0
        %v1756 = vadd.f32 %v1740, 1.0
        %v1757 = vadd.f32 %v1741, 1.0
        %v1758 = vadd.f32 %v1742, 1.0
        %v1759 = vadd.f32 %v1743, 1.0
        %v1760 = vrcp.pop %v1744
        %v1761 = vmul.f32 1.0, %v1760
        %v1762 = vrcp.pop %v1745
        %v1763 = vmul.f32 1.0, %v1762
        %v1764 = vrcp.pop %v1746
        %v1765 = vmul.f32 1.0, %v1764
        %v1766 = vrcp.pop %v1747
        %v1767 = vmul.f32 1.0, %v1766
        %v1768 = vrcp.pop %v1748
        %v1769 = vmul.f32 1.0, %v1768
        %v1770 = vrcp.pop %v1749
        %v1771 = vmul.f32 1.0, %v1770
        %v1772 = vrcp.pop %v1750
        %v1773 = vmul.f32 1.0, %v1772
        %v1774 = vrcp.pop %v1751
        %v1775 = vmul.f32 1.0, %v1774
        %v1776 = vrcp.pop %v1752
        %v1777 = vmul.f32 1.0, %v1776
        %v1778 = vrcp.pop %v1753
        %v1779 = vmul.f32 1.0, %v1778
        %v1780 = vrcp.pop %v1754
        %v1781 = vmul.f32 1.0, %v1780
        %v1782 = vrcp.pop %v1755
        %v1783 = vmul.f32 1.0, %v1782
        %v1784 = vrcp.pop %v1756
        %v1785 = vmul.f32 1.0, %v1784
        %v1786 = vrcp.pop %v1757
        %v1787 = vmul.f32 1.0, %v1786
        %v1788 = vrcp.pop %v1758
        %v1789 = vmul.f32 1.0, %v1788
        %v1790 = vrcp.pop %v1759
        %v1791 = vmul.f32 1.0, %v1790
        %v1792 = vmul.f32 %v1761, 1.0614054
        %v1793 = vmul.f32 %v1763, 1.0614054
        %v1794 = vmul.f32 %v1765, 1.0614054
        %v1795 = vmul.f32 %v1767, 1.0614054
        %v1796 = vmul.f32 %v1769, 1.0614054
        %v1797 = vmul.f32 %v1771, 1.0614054
        %v1798 = vmul.f32 %v1773, 1.0614054
        %v1799 = vmul.f32 %v1775, 1.0614054
        %v1800 = vmul.f32 %v1777, 1.0614054
        %v1801 = vmul.f32 %v1779, 1.0614054
        %v1802 = vmul.f32 %v1781, 1.0614054
        %v1803 = vmul.f32 %v1783, 1.0614054
        %v1804 = vmul.f32 %v1785, 1.0614054
        %v1805 = vmul.f32 %v1787, 1.0614054
        %v1806 = vmul.f32 %v1789, 1.0614054
        %v1807 = vmul.f32 %v1791, 1.0614054
        %v1808 = vadd.f32 %v1792, -1.4531521
        %v1809 = vadd.f32 %v1793, -1.4531521
        %v1810 = vadd.f32 %v1794, -1.4531521
        %v1811 = vadd.f32 %v1795, -1.4531521
        %v1812 = vadd.f32 %v1796, -1.4531521
        %v1813 = vadd.f32 %v1797, -1.4531521
        %v1814 = vadd.f32 %v1798, -1.4531521
        %v1815 = vadd.f32 %v1799, -1.4531521
        %v1816 = vadd.f32 %v1800, -1.4531521
        %v1817 = vadd.f32 %v1801, -1.4531521
        %v1818 = vadd.f32 %v1802, -1.4531521
        %v1819 = vadd.f32 %v1803, -1.4531521
        %v1820 = vadd.f32 %v1804, -1.4531521
        %v1821 = vadd.f32 %v1805, -1.4531521
        %v1822 = vadd.f32 %v1806, -1.4531521
        %v1823 = vadd.f32 %v1807, -1.4531521
        %v1824 = vmul.f32 %v1808, %v1761
        %v1825 = vmul.f32 %v1809, %v1763
        %v1826 = vmul.f32 %v1810, %v1765
        %v1827 = vmul.f32 %v1811, %v1767
        %v1828 = vmul.f32 %v1812, %v1769
        %v1829 = vmul.f32 %v1813, %v1771
        %v1830 = vmul.f32 %v1814, %v1773
        %v1831 = vmul.f32 %v1815, %v1775
        %v1832 = vmul.f32 %v1816, %v1777
        %v1833 = vmul.f32 %v1817, %v1779
        %v1834 = vmul.f32 %v1818, %v1781
        %v1835 = vmul.f32 %v1819, %v1783
        %v1836 = vmul.f32 %v1820, %v1785
        %v1837 = vmul.f32 %v1821, %v1787
        %v1838 = vmul.f32 %v1822, %v1789
        %v1839 = vmul.f32 %v1823, %v1791
        %v1840 = vadd.f32 %v1824, 1.4214138
        %v1841 = vadd.f32 %v1825, 1.4214138
        %v1842 = vadd.f32 %v1826, 1.4214138
        %v1843 = vadd.f32 %v1827, 1.4214138
        %v1844 = vadd.f32 %v1828, 1.4214138
        %v1845 = vadd.f32 %v1829, 1.4214138
        %v1846 = vadd.f32 %v1830, 1.4214138
        %v1847 = vadd.f32 %v1831, 1.4214138
        %v1848 = vadd.f32 %v1832, 1.4214138
        %v1849 = vadd.f32 %v1833, 1.4214138
        %v1850 = vadd.f32 %v1834, 1.4214138
        %v1851 = vadd.f32 %v1835, 1.4214138
        %v1852 = vadd.f32 %v1836, 1.4214138
        %v1853 = vadd.f32 %v1837, 1.4214138
        %v1854 = vadd.f32 %v1838, 1.4214138
        %v1855 = vadd.f32 %v1839, 1.4214138
        %v1856 = vmul.f32 %v1840, %v1761
        %v1857 = vmul.f32 %v1841, %v1763
        %v1858 = vmul.f32 %v1842, %v1765
        %v1859 = vmul.f32 %v1843, %v1767
        %v1860 = vmul.f32 %v1844, %v1769
        %v1861 = vmul.f32 %v1845, %v1771
        %v1862 = vmul.f32 %v1846, %v1773
        %v1863 = vmul.f32 %v1847, %v1775
        %v1864 = vmul.f32 %v1848, %v1777
        %v1865 = vmul.f32 %v1849, %v1779
        %v1866 = vmul.f32 %v1850, %v1781
        %v1867 = vmul.f32 %v1851, %v1783
        %v1868 = vmul.f32 %v1852, %v1785
        %v1869 = vmul.f32 %v1853, %v1787
        %v1870 = vmul.f32 %v1854, %v1789
        %v1871 = vmul.f32 %v1855, %v1791
        %v1872 = vadd.f32 %v1856, -0.28449672
        %v1873 = vadd.f32 %v1857, -0.28449672
        %v1874 = vadd.f32 %v1858, -0.28449672
        %v1875 = vadd.f32 %v1859, -0.28449672
        %v1876 = vadd.f32 %v1860, -0.28449672
        %v1877 = vadd.f32 %v1861, -0.28449672
        %v1878 = vadd.f32 %v1862, -0.28449672
        %v1879 = vadd.f32 %v1863, -0.28449672
        %v1880 = vadd.f32 %v1864, -0.28449672
        %v1881 = vadd.f32 %v1865, -0.28449672
        %v1882 = vadd.f32 %v1866, -0.28449672
        %v1883 = vadd.f32 %v1867, -0.28449672
        %v1884 = vadd.f32 %v1868, -0.28449672
        %v1885 = vadd.f32 %v1869, -0.28449672
        %v1886 = vadd.f32 %v1870, -0.28449672
        %v1887 = vadd.f32 %v1871, -0.28449672
        %v1888 = vmul.f32 %v1872, %v1761
        %v1889 = vmul.f32 %v1873, %v1763
        %v1890 = vmul.f32 %v1874, %v1765
        %v1891 = vmul.f32 %v1875, %v1767
        %v1892 = vmul.f32 %v1876, %v1769
        %v1893 = vmul.f32 %v1877, %v1771
        %v1894 = vmul.f32 %v1878, %v1773
        %v1895 = vmul.f32 %v1879, %v1775
        %v1896 = vmul.f32 %v1880, %v1777
        %v1897 = vmul.f32 %v1881, %v1779
        %v1898 = vmul.f32 %v1882, %v1781
        %v1899 = vmul.f32 %v1883, %v1783
        %v1900 = vmul.f32 %v1884, %v1785
        %v1901 = vmul.f32 %v1885, %v1787
        %v1902 = vmul.f32 %v1886, %v1789
        %v1903 = vmul.f32 %v1887, %v1791
        %v1904 = vadd.f32 %v1888, 0.2548296
        %v1905 = vadd.f32 %v1889, 0.2548296
        %v1906 = vadd.f32 %v1890, 0.2548296
        %v1907 = vadd.f32 %v1891, 0.2548296
        %v1908 = vadd.f32 %v1892, 0.2548296
        %v1909 = vadd.f32 %v1893, 0.2548296
        %v1910 = vadd.f32 %v1894, 0.2548296
        %v1911 = vadd.f32 %v1895, 0.2548296
        %v1912 = vadd.f32 %v1896, 0.2548296
        %v1913 = vadd.f32 %v1897, 0.2548296
        %v1914 = vadd.f32 %v1898, 0.2548296
        %v1915 = vadd.f32 %v1899, 0.2548296
        %v1916 = vadd.f32 %v1900, 0.2548296
        %v1917 = vadd.f32 %v1901, 0.2548296
        %v1918 = vadd.f32 %v1902, 0.2548296
        %v1919 = vadd.f32 %v1903, 0.2548296
        %v1920 = vmul.f32 %v1904, %v1761
        %v1921 = vmul.f32 %v1905, %v1763
        %v1922 = vmul.f32 %v1906, %v1765
        %v1923 = vmul.f32 %v1907, %v1767
        %v1924 = vmul.f32 %v1908, %v1769
        %v1925 = vmul.f32 %v1909, %v1771
        %v1926 = vmul.f32 %v1910, %v1773
        %v1927 = vmul.f32 %v1911, %v1775
        %v1928 = vmul.f32 %v1912, %v1777
        %v1929 = vmul.f32 %v1913, %v1779
        %v1930 = vmul.f32 %v1914, %v1781
        %v1931 = vmul.f32 %v1915, %v1783
        %v1932 = vmul.f32 %v1916, %v1785
        %v1933 = vmul.f32 %v1917, %v1787
        %v1934 = vmul.f32 %v1918, %v1789
        %v1935 = vmul.f32 %v1919, %v1791
        %v1936 = vsub.f32 0.0, %v1712
        %v1937 = vsub.f32 0.0, %v1713
        %v1938 = vsub.f32 0.0, %v1714
        %v1939 = vsub.f32 0.0, %v1715
        %v1940 = vsub.f32 0.0, %v1716
        %v1941 = vsub.f32 0.0, %v1717
        %v1942 = vsub.f32 0.0, %v1718
        %v1943 = vsub.f32 0.0, %v1719
        %v1944 = vsub.f32 0.0, %v1720
        %v1945 = vsub.f32 0.0, %v1721
        %v1946 = vsub.f32 0.0, %v1722
        %v1947 = vsub.f32 0.0, %v1723
        %v1948 = vsub.f32 0.0, %v1724
        %v1949 = vsub.f32 0.0, %v1725
        %v1950 = vsub.f32 0.0, %v1726
        %v1951 = vsub.f32 0.0, %v1727
        %v1952 = vmul.f32 %v1936, %v1712
        %v1953 = vmul.f32 %v1937, %v1713
        %v1954 = vmul.f32 %v1938, %v1714
        %v1955 = vmul.f32 %v1939, %v1715
        %v1956 = vmul.f32 %v1940, %v1716
        %v1957 = vmul.f32 %v1941, %v1717
        %v1958 = vmul.f32 %v1942, %v1718
        %v1959 = vmul.f32 %v1943, %v1719
        %v1960 = vmul.f32 %v1944, %v1720
        %v1961 = vmul.f32 %v1945, %v1721
        %v1962 = vmul.f32 %v1946, %v1722
        %v1963 = vmul.f32 %v1947, %v1723
        %v1964 = vmul.f32 %v1948, %v1724
        %v1965 = vmul.f32 %v1949, %v1725
        %v1966 = vmul.f32 %v1950, %v1726
        %v1967 = vmul.f32 %v1951, %v1727
        %v1968 = vmul.f32 %v1952, 1.442695
        %v1969 = vpow.pop %v1968
        %v1970 = vmul.f32 %v1953, 1.442695
        %v1971 = vpow.pop %v1970
        %v1972 = vmul.f32 %v1954, 1.442695
        %v1973 = vpow.pop %v1972
        %v1974 = vmul.f32 %v1955, 1.442695
        %v1975 = vpow.pop %v1974
        %v1976 = vmul.f32 %v1956, 1.442695
        %v1977 = vpow.pop %v1976
        %v1978 = vmul.f32 %v1957, 1.442695
        %v1979 = vpow.pop %v1978
        %v1980 = vmul.f32 %v1958, 1.442695
        %v1981 = vpow.pop %v1980
        %v1982 = vmul.f32 %v1959, 1.442695
        %v1983 = vpow.pop %v1982
        %v1984 = vmul.f32 %v1960, 1.442695
        %v1985 = vpow.pop %v1984
        %v1986 = vmul.f32 %v1961, 1.442695
        %v1987 = vpow.pop %v1986
        %v1988 = vmul.f32 %v1962, 1.442695
        %v1989 = vpow.pop %v1988
        %v1990 = vmul.f32 %v1963, 1.442695
        %v1991 = vpow.pop %v1990
        %v1992 = vmul.f32 %v1964, 1.442695
        %v1993 = vpow.pop %v1992
        %v1994 = vmul.f32 %v1965, 1.442695
        %v1995 = vpow.pop %v1994
        %v1996 = vmul.f32 %v1966, 1.442695
        %v1997 = vpow.pop %v1996
        %v1998 = vmul.f32 %v1967, 1.442695
        %v1999 = vpow.pop %v1998
        %v2000 = vmul.f32 %v1920, %v1969
        %v2001 = vmul.f32 %v1921, %v1971
        %v2002 = vmul.f32 %v1922, %v1973
        %v2003 = vmul.f32 %v1923, %v1975
        %v2004 = vmul.f32 %v1924, %v1977
        %v2005 = vmul.f32 %v1925, %v1979
        %v2006 = vmul.f32 %v1926, %v1981
        %v2007 = vmul.f32 %v1927, %v1983
        %v2008 = vmul.f32 %v1928, %v1985
        %v2009 = vmul.f32 %v1929, %v1987
        %v2010 = vmul.f32 %v1930, %v1989
        %v2011 = vmul.f32 %v1931, %v1991
        %v2012 = vmul.f32 %v1932, %v1993
        %v2013 = vmul.f32 %v1933, %v1995
        %v2014 = vmul.f32 %v1934, %v1997
        %v2015 = vmul.f32 %v1935, %v1999
        %v2016 = vsub.f32 1.0, %v2000
        %v2017 = vsub.f32 1.0, %v2001
        %v2018 = vsub.f32 1.0, %v2002
        %v2019 = vsub.f32 1.0, %v2003
        %v2020 = vsub.f32 1.0, %v2004
        %v2021 = vsub.f32 1.0, %v2005
        %v2022 = vsub.f32 1.0, %v2006
        %v2023 = vsub.f32 1.0, %v2007
        %v2024 = vsub.f32 1.0, %v2008
        %v2025 = vsub.f32 1.0, %v2009
        %v2026 = vsub.f32 1.0, %v2010
        %v2027 = vsub.f32 1.0, %v2011
        %v2028 = vsub.f32 1.0, %v2012
        %v2029 = vsub.f32 1.0, %v2013
        %v2030 = vsub.f32 1.0, %v2014
        %v2031 = vsub.f32 1.0, %v2015
        %v2032 = vmul.f32 %v1696, %v2016
        %v2033 = vmul.f32 %v1697, %v2017
        %v2034 = vmul.f32 %v1698, %v2018
        %v2035 = vmul.f32 %v1699, %v2019
        %v2036 = vmul.f32 %v1700, %v2020
        %v2037 = vmul.f32 %v1701, %v2021
        %v2038 = vmul.f32 %v1702, %v2022
        %v2039 = vmul.f32 %v1703, %v2023
        %v2040 = vmul.f32 %v1704, %v2024
        %v2041 = vmul.f32 %v1705, %v2025
        %v2042 = vmul.f32 %v1706, %v2026
        %v2043 = vmul.f32 %v1707, %v2027
        %v2044 = vmul.f32 %v1708, %v2028
        %v2045 = vmul.f32 %v1709, %v2029
        %v2046 = vmul.f32 %v1710, %v2030
        %v2047 = vmul.f32 %v1711, %v2031
        %v2048 = vadd.f32 %v2032, 1.0
        %v2049 = vadd.f32 %v2033, 1.0
        %v2050 = vadd.f32 %v2034, 1.0
        %v2051 = vadd.f32 %v2035, 1.0
        %v2052 = vadd.f32 %v2036, 1.0
        %v2053 = vadd.f32 %v2037, 1.0
        %v2054 = vadd.f32 %v2038, 1.0
        %v2055 = vadd.f32 %v2039, 1.0
        %v2056 = vadd.f32 %v2040, 1.0
        %v2057 = vadd.f32 %v2041, 1.0
        %v2058 = vadd.f32 %v2042, 1.0
        %v2059 = vadd.f32 %v2043, 1.0
        %v2060 = vadd.f32 %v2044, 1.0
        %v2061 = vadd.f32 %v2045, 1.0
        %v2062 = vadd.f32 %v2046, 1.0
        %v2063 = vadd.f32 %v2047, 1.0
        %v2064 = vmul.f32 %v1648, %v2048
        %v2065 = vmul.f32 %v1649, %v2049
        %v2066 = vmul.f32 %v1650, %v2050
        %v2067 = vmul.f32 %v1651, %v2051
        %v2068 = vmul.f32 %v1652, %v2052
        %v2069 = vmul.f32 %v1653, %v2053
        %v2070 = vmul.f32 %v1654, %v2054
        %v2071 = vmul.f32 %v1655, %v2055
        %v2072 = vmul.f32 %v1656, %v2056
        %v2073 = vmul.f32 %v1657, %v2057
        %v2074 = vmul.f32 %v1658, %v2058
        %v2075 = vmul.f32 %v1659, %v2059
        %v2076 = vmul.f32 %v1660, %v2060
        %v2077 = vmul.f32 %v1661, %v2061
        %v2078 = vmul.f32 %v1662, %v2062
        %v2079 = vmul.f32 %v1663, %v2063
        %v2080 = vpack.c.bf16 %v2065, %v2064
        %v2081 = vpack.c.bf16 %v2067, %v2066
        %v2082 = vpack.c.bf16 %v2069, %v2068
        %v2083 = vpack.c.bf16 %v2071, %v2070
        %v2084 = vpack.c.bf16 %v2073, %v2072
        %v2085 = vpack.c.bf16 %v2075, %v2074
        %v2086 = vpack.c.bf16 %v2077, %v2076
        %v2087 = vpack.c.bf16 %v2079, %v2078
        %2089 = vset.pattern.permute.xlu0 0
        %2090 = vperm.xlu0 %2089, %v1399
        %v2091 = vpop.permute.xlu0 %2090
        %2094 = vset.pattern.permute.xlu0 0
        %2095 = vperm.xlu0 %2094, %v1400
        %v2096 = vpop.permute.xlu0 %2095
        %2099 = vset.pattern.permute.xlu0 0
        %2100 = vperm.xlu0 %2099, %v1401
        %v2101 = vpop.permute.xlu0 %2100
        %2104 = vset.pattern.permute.xlu0 0
        %2105 = vperm.xlu0 %2104, %v1402
        %v2106 = vpop.permute.xlu0 %2105
        %2109 = vset.pattern.permute.xlu0 0
        %2110 = vperm.xlu0 %2109, %v1403
        %v2111 = vpop.permute.xlu0 %2110
        %2114 = vset.pattern.permute.xlu0 0
        %2115 = vperm.xlu0 %2114, %v1404
        %v2116 = vpop.permute.xlu0 %2115
        %2119 = vset.pattern.permute.xlu0 0
        %2120 = vperm.xlu0 %2119, %v1405
        %v2121 = vpop.permute.xlu0 %2120
        %2124 = vset.pattern.permute.xlu0 0
        %2125 = vperm.xlu0 %2124, %v1406
        %v2126 = vpop.permute.xlu0 %2125
        %2129 = vset.pattern.permute.xlu0 0
        %2130 = vperm.xlu0 %2129, %v1407
        %v2131 = vpop.permute.xlu0 %2130
        %2134 = vset.pattern.permute.xlu0 0
        %2135 = vperm.xlu0 %2134, %v1408
        %v2136 = vpop.permute.xlu0 %2135
        %2139 = vset.pattern.permute.xlu0 0
        %2140 = vperm.xlu0 %2139, %v1409
        %v2141 = vpop.permute.xlu0 %2140
        %2144 = vset.pattern.permute.xlu0 0
        %2145 = vperm.xlu0 %2144, %v1410
        %v2146 = vpop.permute.xlu0 %2145
        %2149 = vset.pattern.permute.xlu0 0
        %2150 = vperm.xlu0 %2149, %v1411
        %v2151 = vpop.permute.xlu0 %2150
        %2154 = vset.pattern.permute.xlu0 0
        %2155 = vperm.xlu0 %2154, %v1412
        %v2156 = vpop.permute.xlu0 %2155
        %2159 = vset.pattern.permute.xlu0 0
        %2160 = vperm.xlu0 %2159, %v1413
        %v2161 = vpop.permute.xlu0 %2160
        %2164 = vset.pattern.permute.xlu0 0
        %2165 = vperm.xlu0 %2164, %v1414
        %v2166 = vpop.permute.xlu0 %2165
        %v2184 = vunpack.c.l.b16 %v1367
        %v2185 = vunpack.c.l.b16 %v1368
        %v2186 = vunpack.c.l.b16 %v1369
        %v2187 = vunpack.c.l.b16 %v1370
        %v2188 = vunpack.c.l.b16 %v1371
        %v2189 = vunpack.c.l.b16 %v1372
        %v2190 = vunpack.c.l.b16 %v1373
        %v2191 = vunpack.c.l.b16 %v1374
        %v2192 = vunpack.c.l.b16 %v1375
        %v2193 = vunpack.c.l.b16 %v1376
        %v2194 = vunpack.c.l.b16 %v1377
        %v2195 = vunpack.c.l.b16 %v1378
        %v2196 = vunpack.c.l.b16 %v1379
        %v2197 = vunpack.c.l.b16 %v1380
        %v2198 = vunpack.c.l.b16 %v1381
        %v2199 = vunpack.c.l.b16 %v1382
        %v2200 = vpack.c.b16 %v2185, %v2184
        %v2201 = vpack.c.b16 %v2187, %v2186
        %v2202 = vpack.c.b16 %v2189, %v2188
        %v2203 = vpack.c.b16 %v2191, %v2190
        %v2204 = vpack.c.b16 %v2193, %v2192
        %v2205 = vpack.c.b16 %v2195, %v2194
        %v2206 = vpack.c.b16 %v2197, %v2196
        %v2207 = vpack.c.b16 %v2199, %v2198
        %2216 = vmatprep.subr.bf16.mxu0 0
        %2217 = vmatpush1.bf16.msra.mxu0 %v2080
        %2218 = vmatprep.subr.bf16.mxu0 0
        %2219 = vmatpush1.bf16.msra.mxu0 %v2081
        %2220 = vmatprep.subr.bf16.mxu0 0
        %2221 = vmatpush1.bf16.msra.mxu0 %v2082
        %2222 = vmatprep.subr.bf16.mxu0 0
        %2223 = vmatpush1.bf16.msra.mxu0 %v2083
        %2224 = vmatprep.subr.bf16.mxu0 0
        %2225 = vmatpush1.bf16.msra.mxu0 %v2084
        %2226 = vmatprep.subr.bf16.mxu0 0
        %2227 = vmatpush1.bf16.msra.mxu0 %v2085
        %2228 = vmatprep.subr.bf16.mxu0 0
        %2229 = vmatpush1.bf16.msra.mxu0 %v2086
        %2230 = vmatprep.subr.bf16.mxu0 0
        %2231 = vmatpush1.bf16.msra.mxu0 %v2087
        %2232 = vmatprep.subr.bf16.mxu0 0
        %2233 = vmatpush1.bf16.msra.mxu0 0
        %2234 = vmatprep.subr.bf16.mxu0 0
        %2235 = vmatpush1.bf16.msra.mxu0 0
        %2236 = vmatprep.subr.bf16.mxu0 0
        %2237 = vmatpush1.bf16.msra.mxu0 0
        %2238 = vmatprep.subr.bf16.mxu0 0
        %2239 = vmatpush1.bf16.msra.mxu0 0
        %2240 = vmatprep.subr.bf16.mxu0 0
        %2241 = vmatpush1.bf16.msra.mxu0 0
        %2242 = vmatprep.subr.bf16.mxu0 0
        %2243 = vmatpush1.bf16.msra.mxu0 0
        %2244 = vmatprep.subr.bf16.mxu0 0
        %2245 = vmatpush1.bf16.msra.mxu0 0
        %2246 = vmatprep.subr.bf16.mxu0 0
        %2247 = vmatpush1.bf16.msra.mxu0 0
        %2248 = vmatprep.mubr.bf16.mxu0 0
        %2249 = vmatmul.mubr.bf16.gmra.mrb[0].mxu0 %v2200
        %v2250 = vpop.f32.mrb[0].mxu0
        %v2251 = vadd.f32 %v2091, %v2250
        %v2252 = vpop.f32.mrb[0].mxu0
        %v2253 = vpop.f32.mrb[0].mxu0
        %v2254 = vadd.f32 %v2096, %v2253
        %v2255 = vpop.f32.mrb[0].mxu0
        %2256 = vmatprep.mubr.bf16.mxu0 0
        %2257 = vmatmul.mubr.bf16.gmra.mrb[0].mxu0 %v2201
        %v2258 = vpop.f32.mrb[0].mxu0
        %v2259 = vadd.f32 %v2101, %v2258
        %v2260 = vpop.f32.mrb[0].mxu0
        %v2261 = vpop.f32.mrb[0].mxu0
        %v2262 = vadd.f32 %v2106, %v2261
        %v2263 = vpop.f32.mrb[0].mxu0
        %2264 = vmatprep.mubr.bf16.mxu0 0
        %2265 = vmatmul.mubr.bf16.gmra.mrb[0].mxu0 %v2202
        %v2266 = vpop.f32.mrb[0].mxu0
        %v2267 = vadd.f32 %v2111, %v2266
        %v2268 = vpop.f32.mrb[0].mxu0
        %v2269 = vpop.f32.mrb[0].mxu0
        %v2270 = vadd.f32 %v2116, %v2269
        %v2271 = vpop.f32.mrb[0].mxu0
        %2272 = vmatprep.mubr.bf16.mxu0 0
        %2273 = vmatmul.mubr.bf16.gmra.mrb[0].mxu0 %v2203
        %v2274 = vpop.f32.mrb[0].mxu0
        %v2275 = vadd.f32 %v2121, %v2274
        %v2276 = vpop.f32.mrb[0].mxu0
        %v2277 = vpop.f32.mrb[0].mxu0
        %v2278 = vadd.f32 %v2126, %v2277
        %v2279 = vpop.f32.mrb[0].mxu0
        %2280 = vmatprep.mubr.bf16.mxu0 0
        %2281 = vmatmul.mubr.bf16.gmra.mrb[0].mxu0 %v2204
        %v2282 = vpop.f32.mrb[0].mxu0
        %v2283 = vadd.f32 %v2131, %v2282
        %v2284 = vpop.f32.mrb[0].mxu0
        %v2285 = vpop.f32.mrb[0].mxu0
        %v2286 = vadd.f32 %v2136, %v2285
        %v2287 = vpop.f32.mrb[0].mxu0
        %2288 = vmatprep.mubr.bf16.mxu0 0
        %2289 = vmatmul.mubr.bf16.gmra.mrb[0].mxu0 %v2205
        %v2290 = vpop.f32.mrb[0].mxu0
        %v2291 = vadd.f32 %v2141, %v2290
        %v2292 = vpop.f32.mrb[0].mxu0
        %v2293 = vpop.f32.mrb[0].mxu0
        %v2294 = vadd.f32 %v2146, %v2293
        %v2295 = vpop.f32.mrb[0].mxu0
        %2296 = vmatprep.mubr.bf16.mxu0 0
        %2297 = vmatmul.mubr.bf16.gmra.mrb[0].mxu0 %v2206
        %v2298 = vpop.f32.mrb[0].mxu0
        %v2299 = vadd.f32 %v2151, %v2298
        %v2300 = vpop.f32.mrb[0].mxu0
        %v2301 = vpop.f32.mrb[0].mxu0
        %v2302 = vadd.f32 %v2156, %v2301
        %v2303 = vpop.f32.mrb[0].mxu0
        %2304 = vmatprep.mubr.bf16.mxu0 0
        %2305 = vmatmul.mubr.bf16.gmra.mrb[0].mxu0 %v2207
        %v2306 = vpop.f32.mrb[0].mxu0
        %v2307 = vadd.f32 %v2161, %v2306
        %v2308 = vpop.f32.mrb[0].mxu0
        %v2309 = vpop.f32.mrb[0].mxu0
        %v2310 = vadd.f32 %v2166, %v2309
        %v2311 = vpop.f32.mrb[0].mxu0
        %2312 = vdwg.mxu0
        %v2313 = vpack.c.bf16 %v1336, %v1335
        %v2314 = vpack.c.bf16 %v1338, %v1337
        %v2315 = vpack.c.bf16 %v1340, %v1339
        %v2316 = vpack.c.bf16 %v1342, %v1341
        %v2317 = vpack.c.bf16 %v1344, %v1343
        %v2318 = vpack.c.bf16 %v1346, %v1345
        %v2319 = vpack.c.bf16 %v1348, %v1347
        %v2320 = vpack.c.bf16 %v1350, %v1349
        %2321 = vmatprep.subr.bf16.mxu0 0
        %2322 = vmatpush1.bf16.msra.mxu0 %v2313
        %2323 = vmatprep.subr.bf16.mxu0 0
        %2324 = vmatpush1.bf16.msra.mxu0 %v2314
        %2325 = vmatprep.subr.bf16.mxu0 0
        %2326 = vmatpush1.bf16.msra.mxu0 %v2315
        %2327 = vmatprep.subr.bf16.mxu0 0
        %2328 = vmatpush1.bf16.msra.mxu0 %v2316
        %2329 = vmatprep.subr.bf16.mxu0 0
        %2330 = vmatpush1.bf16.msra.mxu0 %v2317
        %2331 = vmatprep.subr.bf16.mxu0 0
        %2332 = vmatpush1.bf16.msra.mxu0 %v2318
        %2333 = vmatprep.subr.bf16.mxu0 0
        %2334 = vmatpush1.bf16.msra.mxu0 %v2319
        %2335 = vmatprep.subr.bf16.mxu0 0
        %2336 = vmatpush1.bf16.msra.mxu0 %v2320
        %2337 = vmatprep.subr.bf16.mxu0 0
        %2338 = vmatpush1.bf16.msra.mxu0 0
        %2339 = vmatprep.subr.bf16.mxu0 0
        %2340 = vmatpush1.bf16.msra.mxu0 0
        %2341 = vmatprep.subr.bf16.mxu0 0
        %2342 = vmatpush1.bf16.msra.mxu0 0
        %2343 = vmatprep.subr.bf16.mxu0 0
        %2344 = vmatpush1.bf16.msra.mxu0 0
        %2345 = vmatprep.subr.bf16.mxu0 0
        %2346 = vmatpush1.bf16.msra.mxu0 0
        %2347 = vmatprep.subr.bf16.mxu0 0
        %2348 = vmatpush1.bf16.msra.mxu0 0
        %2349 = vmatprep.subr.bf16.mxu0 0
        %2350 = vmatpush1.bf16.msra.mxu0 0
        %2351 = vmatprep.subr.bf16.mxu0 0
        %2352 = vmatpush1.bf16.msra.mxu0 0
        %2353 = vmatprep.mubr.bf16.mxu0 0
        %2354 = vmatmul.mubr.bf16.gmra.mrb[0].mxu0 %v1535
        %v2355 = vpop.f32.mrb[0].mxu0
        %v2356 = vadd.f32 %v1426, %v2355
        %v2357 = vpop.f32.mrb[0].mxu0
        %v2358 = vpop.f32.mrb[0].mxu0
        %v2359 = vadd.f32 %v1431, %v2358
        %v2360 = vpop.f32.mrb[0].mxu0
        %2361 = vmatprep.mubr.bf16.mxu0 0
        %2362 = vmatmul.mubr.bf16.gmra.mrb[0].mxu0 %v1536
        %v2363 = vpop.f32.mrb[0].mxu0
        %v2364 = vadd.f32 %v1436, %v2363
        %v2365 = vpop.f32.mrb[0].mxu0
        %v2366 = vpop.f32.mrb[0].mxu0
        %v2367 = vadd.f32 %v1441, %v2366
        %v2368 = vpop.f32.mrb[0].mxu0
        %2369 = vmatprep.mubr.bf16.mxu0 0
        %2370 = vmatmul.mubr.bf16.gmra.mrb[0].mxu0 %v1537
        %v2371 = vpop.f32.mrb[0].mxu0
        %v2372 = vadd.f32 %v1446, %v2371
        %v2373 = vpop.f32.mrb[0].mxu0
        %v2374 = vpop.f32.mrb[0].mxu0
        %v2375 = vadd.f32 %v1451, %v2374
        %v2376 = vpop.f32.mrb[0].mxu0
        %2377 = vmatprep.mubr.bf16.mxu0 0
        %2378 = vmatmul.mubr.bf16.gmra.mrb[0].mxu0 %v1538
        %v2379 = vpop.f32.mrb[0].mxu0
        %v2380 = vadd.f32 %v1456, %v2379
        %v2381 = vpop.f32.mrb[0].mxu0
        %v2382 = vpop.f32.mrb[0].mxu0
        %v2383 = vadd.f32 %v1461, %v2382
        %v2384 = vpop.f32.mrb[0].mxu0
        %2385 = vmatprep.mubr.bf16.mxu0 0
        %2386 = vmatmul.mubr.bf16.gmra.mrb[0].mxu0 %v1539
        %v2387 = vpop.f32.mrb[0].mxu0
        %v2388 = vadd.f32 %v1466, %v2387
        %v2389 = vpop.f32.mrb[0].mxu0
        %v2390 = vpop.f32.mrb[0].mxu0
        %v2391 = vadd.f32 %v1471, %v2390
        %v2392 = vpop.f32.mrb[0].mxu0
        %2393 = vmatprep.mubr.bf16.mxu0 0
        %2394 = vmatmul.mubr.bf16.gmra.mrb[0].mxu0 %v1540
        %v2395 = vpop.f32.mrb[0].mxu0
        %v2396 = vadd.f32 %v1476, %v2395
        %v2397 = vpop.f32.mrb[0].mxu0
        %v2398 = vpop.f32.mrb[0].mxu0
        %v2399 = vadd.f32 %v1481, %v2398
        %v2400 = vpop.f32.mrb[0].mxu0
        %2401 = vmatprep.mubr.bf16.mxu0 0
        %2402 = vmatmul.mubr.bf16.gmra.mrb[0].mxu0 %v1541
        %v2403 = vpop.f32.mrb[0].mxu0
        %v2404 = vadd.f32 %v1486, %v2403
        %v2405 = vpop.f32.mrb[0].mxu0
        %v2406 = vpop.f32.mrb[0].mxu0
        %v2407 = vadd.f32 %v1491, %v2406
        %v2408 = vpop.f32.mrb[0].mxu0
        %2409 = vmatprep.mubr.bf16.mxu0 0
        %2410 = vmatmul.mubr.bf16.gmra.mrb[0].mxu0 %v1542
        %v2411 = vpop.f32.mrb[0].mxu0
        %v2412 = vadd.f32 %v1496, %v2411
        %v2413 = vpop.f32.mrb[0].mxu0
        %v2414 = vpop.f32.mrb[0].mxu0
        %v2415 = vadd.f32 %v1501, %v2414
        %v2416 = vpop.f32.mrb[0].mxu0
        %2417 = vdwg.mxu0
        %v2418 = vmul.f32 %v2356, 0.5
        %v2419 = vmul.f32 %v2359, 0.5
        %v2420 = vmul.f32 %v2364, 0.5
        %v2421 = vmul.f32 %v2367, 0.5
        %v2422 = vmul.f32 %v2372, 0.5
        %v2423 = vmul.f32 %v2375, 0.5
        %v2424 = vmul.f32 %v2380, 0.5
        %v2425 = vmul.f32 %v2383, 0.5
        %v2426 = vmul.f32 %v2388, 0.5
        %v2427 = vmul.f32 %v2391, 0.5
        %v2428 = vmul.f32 %v2396, 0.5
        %v2429 = vmul.f32 %v2399, 0.5
        %v2430 = vmul.f32 %v2404, 0.5
        %v2431 = vmul.f32 %v2407, 0.5
        %v2432 = vmul.f32 %v2412, 0.5
        %v2433 = vmul.f32 %v2415, 0.5
        %v2434 = vmul.f32 %v2356, 0.70710677
        %v2435 = vmul.f32 %v2359, 0.70710677
        %v2436 = vmul.f32 %v2364, 0.70710677
        %v2437 = vmul.f32 %v2367, 0.70710677
        %v2438 = vmul.f32 %v2372, 0.70710677
        %v2439 = vmul.f32 %v2375, 0.70710677
        %v2440 = vmul.f32 %v2380, 0.70710677
        %v2441 = vmul.f32 %v2383, 0.70710677
        %v2442 = vmul.f32 %v2388, 0.70710677
        %v2443 = vmul.f32 %v2391, 0.70710677
        %v2444 = vmul.f32 %v2396, 0.70710677
        %v2445 = vmul.f32 %v2399, 0.70710677
        %v2446 = vmul.f32 %v2404, 0.70710677
        %v2447 = vmul.f32 %v2407, 0.70710677
        %v2448 = vmul.f32 %v2412, 0.70710677
        %v2449 = vmul.f32 %v2415, 0.70710677
        %vm2450 = vcmp.ge.f32.partialorder %v2434, 0.0
        %vm2451 = vcmp.ge.f32.partialorder %v2435, 0.0
        %vm2452 = vcmp.ge.f32.partialorder %v2436, 0.0
        %vm2453 = vcmp.ge.f32.partialorder %v2437, 0.0
        %vm2454 = vcmp.ge.f32.partialorder %v2438, 0.0
        %vm2455 = vcmp.ge.f32.partialorder %v2439, 0.0
        %vm2456 = vcmp.ge.f32.partialorder %v2440, 0.0
        %vm2457 = vcmp.ge.f32.partialorder %v2441, 0.0
        %vm2458 = vcmp.ge.f32.partialorder %v2442, 0.0
        %vm2459 = vcmp.ge.f32.partialorder %v2443, 0.0
        %vm2460 = vcmp.ge.f32.partialorder %v2444, 0.0
        %vm2461 = vcmp.ge.f32.partialorder %v2445, 0.0
        %vm2462 = vcmp.ge.f32.partialorder %v2446, 0.0
        %vm2463 = vcmp.ge.f32.partialorder %v2447, 0.0
        %vm2464 = vcmp.ge.f32.partialorder %v2448, 0.0
        %vm2465 = vcmp.ge.f32.partialorder %v2449, 0.0
        %v2466 = vsel %vm2450, 1.0, -1.0
        %v2467 = vsel %vm2451, 1.0, -1.0
        %v2468 = vsel %vm2452, 1.0, -1.0
        %v2469 = vsel %vm2453, 1.0, -1.0
        %v2470 = vsel %vm2454, 1.0, -1.0
        %v2471 = vsel %vm2455, 1.0, -1.0
        %v2472 = vsel %vm2456, 1.0, -1.0
        %v2473 = vsel %vm2457, 1.0, -1.0
        %v2474 = vsel %vm2458, 1.0, -1.0
        %v2475 = vsel %vm2459, 1.0, -1.0
        %v2476 = vsel %vm2460, 1.0, -1.0
        %v2477 = vsel %vm2461, 1.0, -1.0
        %v2478 = vsel %vm2462, 1.0, -1.0
        %v2479 = vsel %vm2463, 1.0, -1.0
        %v2480 = vsel %vm2464, 1.0, -1.0
        %v2481 = vsel %vm2465, 1.0, -1.0
        %v2482 = vand.u32 2147483647, %v2434
        %v2483 = vand.u32 2147483647, %v2435
        %v2484 = vand.u32 2147483647, %v2436
        %v2485 = vand.u32 2147483647, %v2437
        %v2486 = vand.u32 2147483647, %v2438
        %v2487 = vand.u32 2147483647, %v2439
        %v2488 = vand.u32 2147483647, %v2440
        %v2489 = vand.u32 2147483647, %v2441
        %v2490 = vand.u32 2147483647, %v2442
        %v2491 = vand.u32 2147483647, %v2443
        %v2492 = vand.u32 2147483647, %v2444
        %v2493 = vand.u32 2147483647, %v2445
        %v2494 = vand.u32 2147483647, %v2446
        %v2495 = vand.u32 2147483647, %v2447
        %v2496 = vand.u32 2147483647, %v2448
        %v2497 = vand.u32 2147483647, %v2449
        %v2498 = vmul.f32 %v2482, 0.3275911
        %v2499 = vmul.f32 %v2483, 0.3275911
        %v2500 = vmul.f32 %v2484, 0.3275911
        %v2501 = vmul.f32 %v2485, 0.3275911
        %v2502 = vmul.f32 %v2486, 0.3275911
        %v2503 = vmul.f32 %v2487, 0.3275911
        %v2504 = vmul.f32 %v2488, 0.3275911
        %v2505 = vmul.f32 %v2489, 0.3275911
        %v2506 = vmul.f32 %v2490, 0.3275911
        %v2507 = vmul.f32 %v2491, 0.3275911
        %v2508 = vmul.f32 %v2492, 0.3275911
        %v2509 = vmul.f32 %v2493, 0.3275911
        %v2510 = vmul.f32 %v2494, 0.3275911
        %v2511 = vmul.f32 %v2495, 0.3275911
        %v2512 = vmul.f32 %v2496, 0.3275911
        %v2513 = vmul.f32 %v2497, 0.3275911
        %v2514 = vadd.f32 %v2498, 1.0
        %v2515 = vadd.f32 %v2499, 1.0
        %v2516 = vadd.f32 %v2500, 1.0
        %v2517 = vadd.f32 %v2501, 1.0
        %v2518 = vadd.f32 %v2502, 1.0
        %v2519 = vadd.f32 %v2503, 1.0
        %v2520 = vadd.f32 %v2504, 1.0
        %v2521 = vadd.f32 %v2505, 1.0
        %v2522 = vadd.f32 %v2506, 1.0
        %v2523 = vadd.f32 %v2507, 1.0
        %v2524 = vadd.f32 %v2508, 1.0
        %v2525 = vadd.f32 %v2509, 1.0
        %v2526 = vadd.f32 %v2510, 1.0
        %v2527 = vadd.f32 %v2511, 1.0
        %v2528 = vadd.f32 %v2512, 1.0
        %v2529 = vadd.f32 %v2513, 1.0
        %v2530 = vrcp.pop %v2514
        %v2531 = vmul.f32 1.0, %v2530
        %v2532 = vrcp.pop %v2515
        %v2533 = vmul.f32 1.0, %v2532
        %v2534 = vrcp.pop %v2516
        %v2535 = vmul.f32 1.0, %v2534
        %v2536 = vrcp.pop %v2517
        %v2537 = vmul.f32 1.0, %v2536
        %v2538 = vrcp.pop %v2518
        %v2539 = vmul.f32 1.0, %v2538
        %v2540 = vrcp.pop %v2519
        %v2541 = vmul.f32 1.0, %v2540
        %v2542 = vrcp.pop %v2520
        %v2543 = vmul.f32 1.0, %v2542
        %v2544 = vrcp.pop %v2521
        %v2545 = vmul.f32 1.0, %v2544
        %v2546 = vrcp.pop %v2522
        %v2547 = vmul.f32 1.0, %v2546
        %v2548 = vrcp.pop %v2523
        %v2549 = vmul.f32 1.0, %v2548
        %v2550 = vrcp.pop %v2524
        %v2551 = vmul.f32 1.0, %v2550
        %v2552 = vrcp.pop %v2525
        %v2553 = vmul.f32 1.0, %v2552
        %v2554 = vrcp.pop %v2526
        %v2555 = vmul.f32 1.0, %v2554
        %v2556 = vrcp.pop %v2527
        %v2557 = vmul.f32 1.0, %v2556
        %v2558 = vrcp.pop %v2528
        %v2559 = vmul.f32 1.0, %v2558
        %v2560 = vrcp.pop %v2529
        %v2561 = vmul.f32 1.0, %v2560
        %v2562 = vmul.f32 %v2531, 1.0614054
        %v2563 = vmul.f32 %v2533, 1.0614054
        %v2564 = vmul.f32 %v2535, 1.0614054
        %v2565 = vmul.f32 %v2537, 1.0614054
        %v2566 = vmul.f32 %v2539, 1.0614054
        %v2567 = vmul.f32 %v2541, 1.0614054
        %v2568 = vmul.f32 %v2543, 1.0614054
        %v2569 = vmul.f32 %v2545, 1.0614054
        %v2570 = vmul.f32 %v2547, 1.0614054
        %v2571 = vmul.f32 %v2549, 1.0614054
        %v2572 = vmul.f32 %v2551, 1.0614054
        %v2573 = vmul.f32 %v2553, 1.0614054
        %v2574 = vmul.f32 %v2555, 1.0614054
        %v2575 = vmul.f32 %v2557, 1.0614054
        %v2576 = vmul.f32 %v2559, 1.0614054
        %v2577 = vmul.f32 %v2561, 1.0614054
        %v2578 = vadd.f32 %v2562, -1.4531521
        %v2579 = vadd.f32 %v2563, -1.4531521
        %v2580 = vadd.f32 %v2564, -1.4531521
        %v2581 = vadd.f32 %v2565, -1.4531521
        %v2582 = vadd.f32 %v2566, -1.4531521
        %v2583 = vadd.f32 %v2567, -1.4531521
        %v2584 = vadd.f32 %v2568, -1.4531521
        %v2585 = vadd.f32 %v2569, -1.4531521
        %v2586 = vadd.f32 %v2570, -1.4531521
        %v2587 = vadd.f32 %v2571, -1.4531521
        %v2588 = vadd.f32 %v2572, -1.4531521
        %v2589 = vadd.f32 %v2573, -1.4531521
        %v2590 = vadd.f32 %v2574, -1.4531521
        %v2591 = vadd.f32 %v2575, -1.4531521
        %v2592 = vadd.f32 %v2576, -1.4531521
        %v2593 = vadd.f32 %v2577, -1.4531521
        %v2594 = vmul.f32 %v2578, %v2531
        %v2595 = vmul.f32 %v2579, %v2533
        %v2596 = vmul.f32 %v2580, %v2535
        %v2597 = vmul.f32 %v2581, %v2537
        %v2598 = vmul.f32 %v2582, %v2539
        %v2599 = vmul.f32 %v2583, %v2541
        %v2600 = vmul.f32 %v2584, %v2543
        %v2601 = vmul.f32 %v2585, %v2545
        %v2602 = vmul.f32 %v2586, %v2547
        %v2603 = vmul.f32 %v2587, %v2549
        %v2604 = vmul.f32 %v2588, %v2551
        %v2605 = vmul.f32 %v2589, %v2553
        %v2606 = vmul.f32 %v2590, %v2555
        %v2607 = vmul.f32 %v2591, %v2557
        %v2608 = vmul.f32 %v2592, %v2559
        %v2609 = vmul.f32 %v2593, %v2561
        %v2610 = vadd.f32 %v2594, 1.4214138
        %v2611 = vadd.f32 %v2595, 1.4214138
        %v2612 = vadd.f32 %v2596, 1.4214138
        %v2613 = vadd.f32 %v2597, 1.4214138
        %v2614 = vadd.f32 %v2598, 1.4214138
        %v2615 = vadd.f32 %v2599, 1.4214138
        %v2616 = vadd.f32 %v2600, 1.4214138
        %v2617 = vadd.f32 %v2601, 1.4214138
        %v2618 = vadd.f32 %v2602, 1.4214138
        %v2619 = vadd.f32 %v2603, 1.4214138
        %v2620 = vadd.f32 %v2604, 1.4214138
        %v2621 = vadd.f32 %v2605, 1.4214138
        %v2622 = vadd.f32 %v2606, 1.4214138
        %v2623 = vadd.f32 %v2607, 1.4214138
        %v2624 = vadd.f32 %v2608, 1.4214138
        %v2625 = vadd.f32 %v2609, 1.4214138
        %v2626 = vmul.f32 %v2610, %v2531
        %v2627 = vmul.f32 %v2611, %v2533
        %v2628 = vmul.f32 %v2612, %v2535
        %v2629 = vmul.f32 %v2613, %v2537
        %v2630 = vmul.f32 %v2614, %v2539
        %v2631 = vmul.f32 %v2615, %v2541
        %v2632 = vmul.f32 %v2616, %v2543
        %v2633 = vmul.f32 %v2617, %v2545
        %v2634 = vmul.f32 %v2618, %v2547
        %v2635 = vmul.f32 %v2619, %v2549
        %v2636 = vmul.f32 %v2620, %v2551
        %v2637 = vmul.f32 %v2621, %v2553
        %v2638 = vmul.f32 %v2622, %v2555
        %v2639 = vmul.f32 %v2623, %v2557
        %v2640 = vmul.f32 %v2624, %v2559
        %v2641 = vmul.f32 %v2625, %v2561
        %v2642 = vadd.f32 %v2626, -0.28449672
        %v2643 = vadd.f32 %v2627, -0.28449672
        %v2644 = vadd.f32 %v2628, -0.28449672
        %v2645 = vadd.f32 %v2629, -0.28449672
        %v2646 = vadd.f32 %v2630, -0.28449672
        %v2647 = vadd.f32 %v2631, -0.28449672
        %v2648 = vadd.f32 %v2632, -0.28449672
        %v2649 = vadd.f32 %v2633, -0.28449672
        %v2650 = vadd.f32 %v2634, -0.28449672
        %v2651 = vadd.f32 %v2635, -0.28449672
        %v2652 = vadd.f32 %v2636, -0.28449672
        %v2653 = vadd.f32 %v2637, -0.28449672
        %v2654 = vadd.f32 %v2638, -0.28449672
        %v2655 = vadd.f32 %v2639, -0.28449672
        %v2656 = vadd.f32 %v2640, -0.28449672
        %v2657 = vadd.f32 %v2641, -0.28449672
        %v2658 = vmul.f32 %v2642, %v2531
        %v2659 = vmul.f32 %v2643, %v2533
        %v2660 = vmul.f32 %v2644, %v2535
        %v2661 = vmul.f32 %v2645, %v2537
        %v2662 = vmul.f32 %v2646, %v2539
        %v2663 = vmul.f32 %v2647, %v2541
        %v2664 = vmul.f32 %v2648, %v2543
        %v2665 = vmul.f32 %v2649, %v2545
        %v2666 = vmul.f32 %v2650, %v2547
        %v2667 = vmul.f32 %v2651, %v2549
        %v2668 = vmul.f32 %v2652, %v2551
        %v2669 = vmul.f32 %v2653, %v2553
        %v2670 = vmul.f32 %v2654, %v2555
        %v2671 = vmul.f32 %v2655, %v2557
        %v2672 = vmul.f32 %v2656, %v2559
        %v2673 = vmul.f32 %v2657, %v2561
        %v2674 = vadd.f32 %v2658, 0.2548296
        %v2675 = vadd.f32 %v2659, 0.2548296
        %v2676 = vadd.f32 %v2660, 0.2548296
        %v2677 = vadd.f32 %v2661, 0.2548296
        %v2678 = vadd.f32 %v2662, 0.2548296
        %v2679 = vadd.f32 %v2663, 0.2548296
        %v2680 = vadd.f32 %v2664, 0.2548296
        %v2681 = vadd.f32 %v2665, 0.2548296
        %v2682 = vadd.f32 %v2666, 0.2548296
        %v2683 = vadd.f32 %v2667, 0.2548296
        %v2684 = vadd.f32 %v2668, 0.2548296
        %v2685 = vadd.f32 %v2669, 0.2548296
        %v2686 = vadd.f32 %v2670, 0.2548296
        %v2687 = vadd.f32 %v2671, 0.2548296
        %v2688 = vadd.f32 %v2672, 0.2548296
        %v2689 = vadd.f32 %v2673, 0.2548296
        %v2690 = vmul.f32 %v2674, %v2531
        %v2691 = vmul.f32 %v2675, %v2533
        %v2692 = vmul.f32 %v2676, %v2535
        %v2693 = vmul.f32 %v2677, %v2537
        %v2694 = vmul.f32 %v2678, %v2539
        %v2695 = vmul.f32 %v2679, %v2541
        %v2696 = vmul.f32 %v2680, %v2543
        %v2697 = vmul.f32 %v2681, %v2545
        %v2698 = vmul.f32 %v2682, %v2547
        %v2699 = vmul.f32 %v2683, %v2549
        %v2700 = vmul.f32 %v2684, %v2551
        %v2701 = vmul.f32 %v2685, %v2553
        %v2702 = vmul.f32 %v2686, %v2555
        %v2703 = vmul.f32 %v2687, %v2557
        %v2704 = vmul.f32 %v2688, %v2559
        %v2705 = vmul.f32 %v2689, %v2561
        %v2706 = vsub.f32 0.0, %v2482
        %v2707 = vsub.f32 0.0, %v2483
        %v2708 = vsub.f32 0.0, %v2484
        %v2709 = vsub.f32 0.0, %v2485
        %v2710 = vsub.f32 0.0, %v2486
        %v2711 = vsub.f32 0.0, %v2487
        %v2712 = vsub.f32 0.0, %v2488
        %v2713 = vsub.f32 0.0, %v2489
        %v2714 = vsub.f32 0.0, %v2490
        %v2715 = vsub.f32 0.0, %v2491
        %v2716 = vsub.f32 0.0, %v2492
        %v2717 = vsub.f32 0.0, %v2493
        %v2718 = vsub.f32 0.0, %v2494
        %v2719 = vsub.f32 0.0, %v2495
        %v2720 = vsub.f32 0.0, %v2496
        %v2721 = vsub.f32 0.0, %v2497
        %v2722 = vmul.f32 %v2706, %v2482
        %v2723 = vmul.f32 %v2707, %v2483
        %v2724 = vmul.f32 %v2708, %v2484
        %v2725 = vmul.f32 %v2709, %v2485
        %v2726 = vmul.f32 %v2710, %v2486
        %v2727 = vmul.f32 %v2711, %v2487
        %v2728 = vmul.f32 %v2712, %v2488
        %v2729 = vmul.f32 %v2713, %v2489
        %v2730 = vmul.f32 %v2714, %v2490
        %v2731 = vmul.f32 %v2715, %v2491
        %v2732 = vmul.f32 %v2716, %v2492
        %v2733 = vmul.f32 %v2717, %v2493
        %v2734 = vmul.f32 %v2718, %v2494
        %v2735 = vmul.f32 %v2719, %v2495
        %v2736 = vmul.f32 %v2720, %v2496
        %v2737 = vmul.f32 %v2721, %v2497
        %v2738 = vmul.f32 %v2722, 1.442695
        %v2739 = vpow.pop %v2738
        %v2740 = vmul.f32 %v2723, 1.442695
        %v2741 = vpow.pop %v2740
        %v2742 = vmul.f32 %v2724, 1.442695
        %v2743 = vpow.pop %v2742
        %v2744 = vmul.f32 %v2725, 1.442695
        %v2745 = vpow.pop %v2744
        %v2746 = vmul.f32 %v2726, 1.442695
        %v2747 = vpow.pop %v2746
        %v2748 = vmul.f32 %v2727, 1.442695
        %v2749 = vpow.pop %v2748
        %v2750 = vmul.f32 %v2728, 1.442695
        %v2751 = vpow.pop %v2750
        %v2752 = vmul.f32 %v2729, 1.442695
        %v2753 = vpow.pop %v2752
        %v2754 = vmul.f32 %v2730, 1.442695
        %v2755 = vpow.pop %v2754
        %v2756 = vmul.f32 %v2731, 1.442695
        %v2757 = vpow.pop %v2756
        %v2758 = vmul.f32 %v2732, 1.442695
        %v2759 = vpow.pop %v2758
        %v2760 = vmul.f32 %v2733, 1.442695
        %v2761 = vpow.pop %v2760
        %v2762 = vmul.f32 %v2734, 1.442695
        %v2763 = vpow.pop %v2762
        %v2764 = vmul.f32 %v2735, 1.442695
        %v2765 = vpow.pop %v2764
        %v2766 = vmul.f32 %v2736, 1.442695
        %v2767 = vpow.pop %v2766
        %v2768 = vmul.f32 %v2737, 1.442695
        %v2769 = vpow.pop %v2768
        %v2770 = vmul.f32 %v2690, %v2739
        %v2771 = vmul.f32 %v2691, %v2741
        %v2772 = vmul.f32 %v2692, %v2743
        %v2773 = vmul.f32 %v2693, %v2745
        %v2774 = vmul.f32 %v2694, %v2747
        %v2775 = vmul.f32 %v2695, %v2749
        %v2776 = vmul.f32 %v2696, %v2751
        %v2777 = vmul.f32 %v2697, %v2753
        %v2778 = vmul.f32 %v2698, %v2755
        %v2779 = vmul.f32 %v2699, %v2757
        %v2780 = vmul.f32 %v2700, %v2759
        %v2781 = vmul.f32 %v2701, %v2761
        %v2782 = vmul.f32 %v2702, %v2763
        %v2783 = vmul.f32 %v2703, %v2765
        %v2784 = vmul.f32 %v2704, %v2767
        %v2785 = vmul.f32 %v2705, %v2769
        %v2786 = vsub.f32 1.0, %v2770
        %v2787 = vsub.f32 1.0, %v2771
        %v2788 = vsub.f32 1.0, %v2772
        %v2789 = vsub.f32 1.0, %v2773
        %v2790 = vsub.f32 1.0, %v2774
        %v2791 = vsub.f32 1.0, %v2775
        %v2792 = vsub.f32 1.0, %v2776
        %v2793 = vsub.f32 1.0, %v2777
        %v2794 = vsub.f32 1.0, %v2778
        %v2795 = vsub.f32 1.0, %v2779
        %v2796 = vsub.f32 1.0, %v2780
        %v2797 = vsub.f32 1.0, %v2781
        %v2798 = vsub.f32 1.0, %v2782
        %v2799 = vsub.f32 1.0, %v2783
        %v2800 = vsub.f32 1.0, %v2784
        %v2801 = vsub.f32 1.0, %v2785
        %v2802 = vmul.f32 %v2466, %v2786
        %v2803 = vmul.f32 %v2467, %v2787
        %v2804 = vmul.f32 %v2468, %v2788
        %v2805 = vmul.f32 %v2469, %v2789
        %v2806 = vmul.f32 %v2470, %v2790
        %v2807 = vmul.f32 %v2471, %v2791
        %v2808 = vmul.f32 %v2472, %v2792
        %v2809 = vmul.f32 %v2473, %v2793
        %v2810 = vmul.f32 %v2474, %v2794
        %v2811 = vmul.f32 %v2475, %v2795
        %v2812 = vmul.f32 %v2476, %v2796
        %v2813 = vmul.f32 %v2477, %v2797
        %v2814 = vmul.f32 %v2478, %v2798
        %v2815 = vmul.f32 %v2479, %v2799
        %v2816 = vmul.f32 %v2480, %v2800
        %v2817 = vmul.f32 %v2481, %v2801
        %v2818 = vadd.f32 %v2802, 1.0
        %v2819 = vadd.f32 %v2803, 1.0
        %v2820 = vadd.f32 %v2804, 1.0
        %v2821 = vadd.f32 %v2805, 1.0
        %v2822 = vadd.f32 %v2806, 1.0
        %v2823 = vadd.f32 %v2807, 1.0
        %v2824 = vadd.f32 %v2808, 1.0
        %v2825 = vadd.f32 %v2809, 1.0
        %v2826 = vadd.f32 %v2810, 1.0
        %v2827 = vadd.f32 %v2811, 1.0
        %v2828 = vadd.f32 %v2812, 1.0
        %v2829 = vadd.f32 %v2813, 1.0
        %v2830 = vadd.f32 %v2814, 1.0
        %v2831 = vadd.f32 %v2815, 1.0
        %v2832 = vadd.f32 %v2816, 1.0
        %v2833 = vadd.f32 %v2817, 1.0
        %v2834 = vmul.f32 %v2418, %v2818
        %v2835 = vmul.f32 %v2419, %v2819
        %v2836 = vmul.f32 %v2420, %v2820
        %v2837 = vmul.f32 %v2421, %v2821
        %v2838 = vmul.f32 %v2422, %v2822
        %v2839 = vmul.f32 %v2423, %v2823
        %v2840 = vmul.f32 %v2424, %v2824
        %v2841 = vmul.f32 %v2425, %v2825
        %v2842 = vmul.f32 %v2426, %v2826
        %v2843 = vmul.f32 %v2427, %v2827
        %v2844 = vmul.f32 %v2428, %v2828
        %v2845 = vmul.f32 %v2429, %v2829
        %v2846 = vmul.f32 %v2430, %v2830
        %v2847 = vmul.f32 %v2431, %v2831
        %v2848 = vmul.f32 %v2432, %v2832
        %v2849 = vmul.f32 %v2433, %v2833
        %v2850 = vpack.c.bf16 %v2835, %v2834
        %v2851 = vpack.c.bf16 %v2837, %v2836
        %v2852 = vpack.c.bf16 %v2839, %v2838
        %v2853 = vpack.c.bf16 %v2841, %v2840
        %v2854 = vpack.c.bf16 %v2843, %v2842
        %v2855 = vpack.c.bf16 %v2845, %v2844
        %v2856 = vpack.c.bf16 %v2847, %v2846
        %v2857 = vpack.c.bf16 %v2849, %v2848
        %2858 = vmatprep.subr.bf16.mxu0 0
        %2859 = vmatpush1.bf16.msra.mxu0 %v2850
        %2860 = vmatprep.subr.bf16.mxu0 0
        %2861 = vmatpush1.bf16.msra.mxu0 %v2851
        %2862 = vmatprep.subr.bf16.mxu0 0
        %2863 = vmatpush1.bf16.msra.mxu0 %v2852
        %2864 = vmatprep.subr.bf16.mxu0 0
        %2865 = vmatpush1.bf16.msra.mxu0 %v2853
        %2866 = vmatprep.subr.bf16.mxu0 0
        %2867 = vmatpush1.bf16.msra.mxu0 %v2854
        %2868 = vmatprep.subr.bf16.mxu0 0
        %2869 = vmatpush1.bf16.msra.mxu0 %v2855
        %2870 = vmatprep.subr.bf16.mxu0 0
        %2871 = vmatpush1.bf16.msra.mxu0 %v2856
        %2872 = vmatprep.subr.bf16.mxu0 0
        %2873 = vmatpush1.bf16.msra.mxu0 %v2857
        %2874 = vmatprep.subr.bf16.mxu0 0
        %2875 = vmatpush1.bf16.msra.mxu0 0
        %2876 = vmatprep.subr.bf16.mxu0 0
        %2877 = vmatpush1.bf16.msra.mxu0 0
        %2878 = vmatprep.subr.bf16.mxu0 0
        %2879 = vmatpush1.bf16.msra.mxu0 0
        %2880 = vmatprep.subr.bf16.mxu0 0
        %2881 = vmatpush1.bf16.msra.mxu0 0
        %2882 = vmatprep.subr.bf16.mxu0 0
        %2883 = vmatpush1.bf16.msra.mxu0 0
        %2884 = vmatprep.subr.bf16.mxu0 0
        %2885 = vmatpush1.bf16.msra.mxu0 0
        %2886 = vmatprep.subr.bf16.mxu0 0
        %2887 = vmatpush1.bf16.msra.mxu0 0
        %2888 = vmatprep.subr.bf16.mxu0 0
        %2889 = vmatpush1.bf16.msra.mxu0 0
        %2890 = vmatprep.mubr.bf16.mxu0 0
        %2891 = vmatmul.mubr.bf16.gmra.mrb[0].mxu0 %v2200
        %v2892 = vpop.f32.mrb[0].mxu0
        %v2893 = vadd.f32 %v2091, %v2892
        %v2894 = vpop.f32.mrb[0].mxu0
        %v2895 = vpop.f32.mrb[0].mxu0
        %v2896 = vadd.f32 %v2096, %v2895
        %v2897 = vpop.f32.mrb[0].mxu0
        %2898 = vmatprep.mubr.bf16.mxu0 0
        %2899 = vmatmul.mubr.bf16.gmra.mrb[0].mxu0 %v2201
        %v2900 = vpop.f32.mrb[0].mxu0
        %v2901 = vadd.f32 %v2101, %v2900
        %v2902 = vpop.f32.mrb[0].mxu0
        %v2903 = vpop.f32.mrb[0].mxu0
        %v2904 = vadd.f32 %v2106, %v2903
        %v2905 = vpop.f32.mrb[0].mxu0
        %2906 = vmatprep.mubr.bf16.mxu0 0
        %2907 = vmatmul.mubr.bf16.gmra.mrb[0].mxu0 %v2202
        %v2908 = vpop.f32.mrb[0].mxu0
        %v2909 = vadd.f32 %v2111, %v2908
        %v2910 = vpop.f32.mrb[0].mxu0
        %v2911 = vpop.f32.mrb[0].mxu0
        %v2912 = vadd.f32 %v2116, %v2911
        %v2913 = vpop.f32.mrb[0].mxu0
        %2914 = vmatprep.mubr.bf16.mxu0 0
        %2915 = vmatmul.mubr.bf16.gmra.mrb[0].mxu0 %v2203
        %v2916 = vpop.f32.mrb[0].mxu0
        %v2917 = vadd.f32 %v2121, %v2916
        %v2918 = vpop.f32.mrb[0].mxu0
        %v2919 = vpop.f32.mrb[0].mxu0
        %v2920 = vadd.f32 %v2126, %v2919
        %v2921 = vpop.f32.mrb[0].mxu0
        %2922 = vmatprep.mubr.bf16.mxu0 0
        %2923 = vmatmul.mubr.bf16.gmra.mrb[0].mxu0 %v2204
        %v2924 = vpop.f32.mrb[0].mxu0
        %v2925 = vadd.f32 %v2131, %v2924
        %v2926 = vpop.f32.mrb[0].mxu0
        %v2927 = vpop.f32.mrb[0].mxu0
        %v2928 = vadd.f32 %v2136, %v2927
        %v2929 = vpop.f32.mrb[0].mxu0
        %2930 = vmatprep.mubr.bf16.mxu0 0
        %2931 = vmatmul.mubr.bf16.gmra.mrb[0].mxu0 %v2205
        %v2932 = vpop.f32.mrb[0].mxu0
        %v2933 = vadd.f32 %v2141, %v2932
        %v2934 = vpop.f32.mrb[0].mxu0
        %v2935 = vpop.f32.mrb[0].mxu0
        %v2936 = vadd.f32 %v2146, %v2935
        %v2937 = vpop.f32.mrb[0].mxu0
        %2938 = vmatprep.mubr.bf16.mxu0 0
        %2939 = vmatmul.mubr.bf16.gmra.mrb[0].mxu0 %v2206
        %v2940 = vpop.f32.mrb[0].mxu0
        %v2941 = vadd.f32 %v2151, %v2940
        %v2942 = vpop.f32.mrb[0].mxu0
        %v2943 = vpop.f32.mrb[0].mxu0
        %v2944 = vadd.f32 %v2156, %v2943
        %v2945 = vpop.f32.mrb[0].mxu0
        %2946 = vmatprep.mubr.bf16.mxu0 0
        %2947 = vmatmul.mubr.bf16.gmra.mrb[0].mxu0 %v2207
        %v2948 = vpop.f32.mrb[0].mxu0
        %v2949 = vadd.f32 %v2161, %v2948
        %v2950 = vpop.f32.mrb[0].mxu0
        %v2951 = vpop.f32.mrb[0].mxu0
        %v2952 = vadd.f32 %v2166, %v2951
        %v2953 = vpop.f32.mrb[0].mxu0
        %2954 = vdwg.mxu0
        %v2955 = vadd.f32 %v824, %v2251
        %v2956 = vadd.f32 %v825, %v2254
        %v2957 = vadd.f32 %v826, %v2259
        %v2958 = vadd.f32 %v827, %v2262
        %v2959 = vadd.f32 %v828, %v2267
        %v2960 = vadd.f32 %v829, %v2270
        %v2961 = vadd.f32 %v830, %v2275
        %v2962 = vadd.f32 %v831, %v2278
        %v2963 = vadd.f32 %v832, %v2283
        %v2964 = vadd.f32 %v833, %v2286
        %v2965 = vadd.f32 %v834, %v2291
        %v2966 = vadd.f32 %v835, %v2294
        %v2967 = vadd.f32 %v836, %v2299
        %v2968 = vadd.f32 %v837, %v2302
        %v2969 = vadd.f32 %v838, %v2307
        %v2970 = vadd.f32 %v839, %v2310
        %v2971 = vadd.f32 %v840, %v2893
        %v2972 = vadd.f32 %v841, %v2896
        %v2973 = vadd.f32 %v842, %v2901
        %v2974 = vadd.f32 %v843, %v2904
        %v2975 = vadd.f32 %v844, %v2909
        %v2976 = vadd.f32 %v845, %v2912
        %v2977 = vadd.f32 %v846, %v2917
        %v2978 = vadd.f32 %v847, %v2920
        %v2979 = vadd.f32 %v848, %v2925
        %v2980 = vadd.f32 %v849, %v2928
        %v2981 = vadd.f32 %v850, %v2933
        %v2982 = vadd.f32 %v851, %v2936
        %v2983 = vadd.f32 %v852, %v2941
        %v2984 = vadd.f32 %v853, %v2944
        %v2985 = vadd.f32 %v854, %v2949
        %v2986 = vadd.f32 %v855, %v2952
        %v2987 = vld [vmem:[%s743] sm:$0x1]
        %v2988 = vld [vmem:[%s746] sm:$0x1]
        %2989 = vadd.xlane.f32.xlu0 %v2955
        %v2990 = vpop.xlane.xlu0 %2989
        %2991 = vadd.xlane.f32.xlu0 %v2956
        %v2992 = vpop.xlane.xlu0 %2991
        %2993 = vadd.xlane.f32.xlu0 %v2957
        %v2994 = vpop.xlane.xlu0 %2993
        %2995 = vadd.xlane.f32.xlu0 %v2958
        %v2996 = vpop.xlane.xlu0 %2995
        %2997 = vadd.xlane.f32.xlu0 %v2959
        %v2998 = vpop.xlane.xlu0 %2997
        %2999 = vadd.xlane.f32.xlu0 %v2960
        %v3000 = vpop.xlane.xlu0 %2999
        %3001 = vadd.xlane.f32.xlu0 %v2961
        %v3002 = vpop.xlane.xlu0 %3001
        %3003 = vadd.xlane.f32.xlu0 %v2962
        %v3004 = vpop.xlane.xlu0 %3003
        %3005 = vadd.xlane.f32.xlu0 %v2963
        %v3006 = vpop.xlane.xlu0 %3005
        %3007 = vadd.xlane.f32.xlu0 %v2964
        %v3008 = vpop.xlane.xlu0 %3007
        %3009 = vadd.xlane.f32.xlu0 %v2965
        %v3010 = vpop.xlane.xlu0 %3009
        %3011 = vadd.xlane.f32.xlu0 %v2966
        %v3012 = vpop.xlane.xlu0 %3011
        %3013 = vadd.xlane.f32.xlu0 %v2967
        %v3014 = vpop.xlane.xlu0 %3013
        %3015 = vadd.xlane.f32.xlu0 %v2968
        %v3016 = vpop.xlane.xlu0 %3015
        %3017 = vadd.xlane.f32.xlu0 %v2969
        %v3018 = vpop.xlane.xlu0 %3017
        %3019 = vadd.xlane.f32.xlu0 %v2970
        %v3020 = vpop.xlane.xlu0 %3019
        %3021 = vadd.xlane.f32.xlu0 %v2971
        %v3022 = vpop.xlane.xlu0 %3021
        %3023 = vadd.xlane.f32.xlu0 %v2972
        %v3024 = vpop.xlane.xlu0 %3023
        %3025 = vadd.xlane.f32.xlu0 %v2973
        %v3026 = vpop.xlane.xlu0 %3025
        %3027 = vadd.xlane.f32.xlu0 %v2974
        %v3028 = vpop.xlane.xlu0 %3027
        %3029 = vadd.xlane.f32.xlu0 %v2975
        %v3030 = vpop.xlane.xlu0 %3029
        %3031 = vadd.xlane.f32.xlu0 %v2976
        %v3032 = vpop.xlane.xlu0 %3031
        %3033 = vadd.xlane.f32.xlu0 %v2977
        %v3034 = vpop.xlane.xlu0 %3033
        %3035 = vadd.xlane.f32.xlu0 %v2978
        %v3036 = vpop.xlane.xlu0 %3035
        %3037 = vadd.xlane.f32.xlu0 %v2979
        %v3038 = vpop.xlane.xlu0 %3037
        %3039 = vadd.xlane.f32.xlu0 %v2980
        %v3040 = vpop.xlane.xlu0 %3039
        %3041 = vadd.xlane.f32.xlu0 %v2981
        %v3042 = vpop.xlane.xlu0 %3041
        %3043 = vadd.xlane.f32.xlu0 %v2982
        %v3044 = vpop.xlane.xlu0 %3043
        %3045 = vadd.xlane.f32.xlu0 %v2983
        %v3046 = vpop.xlane.xlu0 %3045
        %3047 = vadd.xlane.f32.xlu0 %v2984
        %v3048 = vpop.xlane.xlu0 %3047
        %3049 = vadd.xlane.f32.xlu0 %v2985
        %v3050 = vpop.xlane.xlu0 %3049
        %3051 = vadd.xlane.f32.xlu0 %v2986
        %v3052 = vpop.xlane.xlu0 %3051
        %v3053 = vmul.f32 %v2990, %v922
        %v3054 = vmul.f32 %v2992, %v922
        %v3055 = vmul.f32 %v2994, %v922
        %v3056 = vmul.f32 %v2996, %v922
        %v3057 = vmul.f32 %v2998, %v922
        %v3058 = vmul.f32 %v3000, %v922
        %v3059 = vmul.f32 %v3002, %v922
        %v3060 = vmul.f32 %v3004, %v922
        %v3061 = vmul.f32 %v3006, %v922
        %v3062 = vmul.f32 %v3008, %v922
        %v3063 = vmul.f32 %v3010, %v922
        %v3064 = vmul.f32 %v3012, %v922
        %v3065 = vmul.f32 %v3014, %v922
        %v3066 = vmul.f32 %v3016, %v922
        %v3067 = vmul.f32 %v3018, %v922
        %v3068 = vmul.f32 %v3020, %v922
        %v3069 = vmul.f32 %v3022, %v922
        %v3070 = vmul.f32 %v3024, %v922
        %v3071 = vmul.f32 %v3026, %v922
        %v3072 = vmul.f32 %v3028, %v922
        %v3073 = vmul.f32 %v3030, %v922
        %v3074 = vmul.f32 %v3032, %v922
        %v3075 = vmul.f32 %v3034, %v922
        %v3076 = vmul.f32 %v3036, %v922
        %v3077 = vmul.f32 %v3038, %v922
        %v3078 = vmul.f32 %v3040, %v922
        %v3079 = vmul.f32 %v3042, %v922
        %v3080 = vmul.f32 %v3044, %v922
        %v3081 = vmul.f32 %v3046, %v922
        %v3082 = vmul.f32 %v3048, %v922
        %v3083 = vmul.f32 %v3050, %v922
        %v3084 = vmul.f32 %v3052, %v922
        %v3085 = vmul.f32 %v2955, %v2955
        %v3086 = vmul.f32 %v2956, %v2956
        %v3087 = vmul.f32 %v2957, %v2957
        %v3088 = vmul.f32 %v2958, %v2958
        %v3089 = vmul.f32 %v2959, %v2959
        %v3090 = vmul.f32 %v2960, %v2960
        %v3091 = vmul.f32 %v2961, %v2961
        %v3092 = vmul.f32 %v2962, %v2962
        %v3093 = vmul.f32 %v2963, %v2963
        %v3094 = vmul.f32 %v2964, %v2964
        %v3095 = vmul.f32 %v2965, %v2965
        %v3096 = vmul.f32 %v2966, %v2966
        %v3097 = vmul.f32 %v2967, %v2967
        %v3098 = vmul.f32 %v2968, %v2968
        %v3099 = vmul.f32 %v2969, %v2969
        %v3100 = vmul.f32 %v2970, %v2970
        %v3101 = vmul.f32 %v2971, %v2971
        %v3102 = vmul.f32 %v2972, %v2972
        %v3103 = vmul.f32 %v2973, %v2973
        %v3104 = vmul.f32 %v2974, %v2974
        %v3105 = vmul.f32 %v2975, %v2975
        %v3106 = vmul.f32 %v2976, %v2976
        %v3107 = vmul.f32 %v2977, %v2977
        %v3108 = vmul.f32 %v2978, %v2978
        %v3109 = vmul.f32 %v2979, %v2979
        %v3110 = vmul.f32 %v2980, %v2980
        %v3111 = vmul.f32 %v2981, %v2981
        %v3112 = vmul.f32 %v2982, %v2982
        %v3113 = vmul.f32 %v2983, %v2983
        %v3114 = vmul.f32 %v2984, %v2984
        %v3115 = vmul.f32 %v2985, %v2985
        %v3116 = vmul.f32 %v2986, %v2986
        %3117 = vadd.xlane.f32.xlu0 %v3085
        %v3118 = vpop.xlane.xlu0 %3117
        %3119 = vadd.xlane.f32.xlu0 %v3086
        %v3120 = vpop.xlane.xlu0 %3119
        %3121 = vadd.xlane.f32.xlu0 %v3087
        %v3122 = vpop.xlane.xlu0 %3121
        %3123 = vadd.xlane.f32.xlu0 %v3088
        %v3124 = vpop.xlane.xlu0 %3123
        %3125 = vadd.xlane.f32.xlu0 %v3089
        %v3126 = vpop.xlane.xlu0 %3125
        %3127 = vadd.xlane.f32.xlu0 %v3090
        %v3128 = vpop.xlane.xlu0 %3127
        %3129 = vadd.xlane.f32.xlu0 %v3091
        %v3130 = vpop.xlane.xlu0 %3129
        %3131 = vadd.xlane.f32.xlu0 %v3092
        %v3132 = vpop.xlane.xlu0 %3131
        %3133 = vadd.xlane.f32.xlu0 %v3093
        %v3134 = vpop.xlane.xlu0 %3133
        %3135 = vadd.xlane.f32.xlu0 %v3094
        %v3136 = vpop.xlane.xlu0 %3135
        %3137 = vadd.xlane.f32.xlu0 %v3095
        %v3138 = vpop.xlane.xlu0 %3137
        %3139 = vadd.xlane.f32.xlu0 %v3096
        %v3140 = vpop.xlane.xlu0 %3139
        %3141 = vadd.xlane.f32.xlu0 %v3097
        %v3142 = vpop.xlane.xlu0 %3141
        %3143 = vadd.xlane.f32.xlu0 %v3098
        %v3144 = vpop.xlane.xlu0 %3143
        %3145 = vadd.xlane.f32.xlu0 %v3099
        %v3146 = vpop.xlane.xlu0 %3145
        %3147 = vadd.xlane.f32.xlu0 %v3100
        %v3148 = vpop.xlane.xlu0 %3147
        %3149 = vadd.xlane.f32.xlu0 %v3101
        %v3150 = vpop.xlane.xlu0 %3149
        %3151 = vadd.xlane.f32.xlu0 %v3102
        %v3152 = vpop.xlane.xlu0 %3151
        %3153 = vadd.xlane.f32.xlu0 %v3103
        %v3154 = vpop.xlane.xlu0 %3153
        %3155 = vadd.xlane.f32.xlu0 %v3104
        %v3156 = vpop.xlane.xlu0 %3155
        %3157 = vadd.xlane.f32.xlu0 %v3105
        %v3158 = vpop.xlane.xlu0 %3157
        %3159 = vadd.xlane.f32.xlu0 %v3106
        %v3160 = vpop.xlane.xlu0 %3159
        %3161 = vadd.xlane.f32.xlu0 %v3107
        %v3162 = vpop.xlane.xlu0 %3161
        %3163 = vadd.xlane.f32.xlu0 %v3108
        %v3164 = vpop.xlane.xlu0 %3163
        %3165 = vadd.xlane.f32.xlu0 %v3109
        %v3166 = vpop.xlane.xlu0 %3165
        %3167 = vadd.xlane.f32.xlu0 %v3110
        %v3168 = vpop.xlane.xlu0 %3167
        %3169 = vadd.xlane.f32.xlu0 %v3111
        %v3170 = vpop.xlane.xlu0 %3169
        %3171 = vadd.xlane.f32.xlu0 %v3112
        %v3172 = vpop.xlane.xlu0 %3171
        %3173 = vadd.xlane.f32.xlu0 %v3113
        %v3174 = vpop.xlane.xlu0 %3173
        %3175 = vadd.xlane.f32.xlu0 %v3114
        %v3176 = vpop.xlane.xlu0 %3175
        %3177 = vadd.xlane.f32.xlu0 %v3115
        %v3178 = vpop.xlane.xlu0 %3177
        %3179 = vadd.xlane.f32.xlu0 %v3116
        %v3180 = vpop.xlane.xlu0 %3179
        %v3181 = vmul.f32 %v3118, %v922
        %v3182 = vmul.f32 %v3120, %v922
        %v3183 = vmul.f32 %v3122, %v922
        %v3184 = vmul.f32 %v3124, %v922
        %v3185 = vmul.f32 %v3126, %v922
        %v3186 = vmul.f32 %v3128, %v922
        %v3187 = vmul.f32 %v3130, %v922
        %v3188 = vmul.f32 %v3132, %v922
        %v3189 = vmul.f32 %v3134, %v922
        %v3190 = vmul.f32 %v3136, %v922
        %v3191 = vmul.f32 %v3138, %v922
        %v3192 = vmul.f32 %v3140, %v922
        %v3193 = vmul.f32 %v3142, %v922
        %v3194 = vmul.f32 %v3144, %v922
        %v3195 = vmul.f32 %v3146, %v922
        %v3196 = vmul.f32 %v3148, %v922
        %v3197 = vmul.f32 %v3150, %v922
        %v3198 = vmul.f32 %v3152, %v922
        %v3199 = vmul.f32 %v3154, %v922
        %v3200 = vmul.f32 %v3156, %v922
        %v3201 = vmul.f32 %v3158, %v922
        %v3202 = vmul.f32 %v3160, %v922
        %v3203 = vmul.f32 %v3162, %v922
        %v3204 = vmul.f32 %v3164, %v922
        %v3205 = vmul.f32 %v3166, %v922
        %v3206 = vmul.f32 %v3168, %v922
        %v3207 = vmul.f32 %v3170, %v922
        %v3208 = vmul.f32 %v3172, %v922
        %v3209 = vmul.f32 %v3174, %v922
        %v3210 = vmul.f32 %v3176, %v922
        %v3211 = vmul.f32 %v3178, %v922
        %v3212 = vmul.f32 %v3180, %v922
        %v3213 = vmul.f32 %v3053, %v3053
        %v3214 = vmul.f32 %v3054, %v3054
        %v3215 = vmul.f32 %v3055, %v3055
        %v3216 = vmul.f32 %v3056, %v3056
        %v3217 = vmul.f32 %v3057, %v3057
        %v3218 = vmul.f32 %v3058, %v3058
        %v3219 = vmul.f32 %v3059, %v3059
        %v3220 = vmul.f32 %v3060, %v3060
        %v3221 = vmul.f32 %v3061, %v3061
        %v3222 = vmul.f32 %v3062, %v3062
        %v3223 = vmul.f32 %v3063, %v3063
        %v3224 = vmul.f32 %v3064, %v3064
        %v3225 = vmul.f32 %v3065, %v3065
        %v3226 = vmul.f32 %v3066, %v3066
        %v3227 = vmul.f32 %v3067, %v3067
        %v3228 = vmul.f32 %v3068, %v3068
        %v3229 = vmul.f32 %v3069, %v3069
        %v3230 = vmul.f32 %v3070, %v3070
        %v3231 = vmul.f32 %v3071, %v3071
        %v3232 = vmul.f32 %v3072, %v3072
        %v3233 = vmul.f32 %v3073, %v3073
        %v3234 = vmul.f32 %v3074, %v3074
        %v3235 = vmul.f32 %v3075, %v3075
        %v3236 = vmul.f32 %v3076, %v3076
        %v3237 = vmul.f32 %v3077, %v3077
        %v3238 = vmul.f32 %v3078, %v3078
        %v3239 = vmul.f32 %v3079, %v3079
        %v3240 = vmul.f32 %v3080, %v3080
        %v3241 = vmul.f32 %v3081, %v3081
        %v3242 = vmul.f32 %v3082, %v3082
        %v3243 = vmul.f32 %v3083, %v3083
        %v3244 = vmul.f32 %v3084, %v3084
        %v3245 = vsub.f32 %v3181, %v3213
        %v3246 = vsub.f32 %v3182, %v3214
        %v3247 = vsub.f32 %v3183, %v3215
        %v3248 = vsub.f32 %v3184, %v3216
        %v3249 = vsub.f32 %v3185, %v3217
        %v3250 = vsub.f32 %v3186, %v3218
        %v3251 = vsub.f32 %v3187, %v3219
        %v3252 = vsub.f32 %v3188, %v3220
        %v3253 = vsub.f32 %v3189, %v3221
        %v3254 = vsub.f32 %v3190, %v3222
        %v3255 = vsub.f32 %v3191, %v3223
        %v3256 = vsub.f32 %v3192, %v3224
        %v3257 = vsub.f32 %v3193, %v3225
        %v3258 = vsub.f32 %v3194, %v3226
        %v3259 = vsub.f32 %v3195, %v3227
        %v3260 = vsub.f32 %v3196, %v3228
        %v3261 = vsub.f32 %v3197, %v3229
        %v3262 = vsub.f32 %v3198, %v3230
        %v3263 = vsub.f32 %v3199, %v3231
        %v3264 = vsub.f32 %v3200, %v3232
        %v3265 = vsub.f32 %v3201, %v3233
        %v3266 = vsub.f32 %v3202, %v3234
        %v3267 = vsub.f32 %v3203, %v3235
        %v3268 = vsub.f32 %v3204, %v3236
        %v3269 = vsub.f32 %v3205, %v3237
        %v3270 = vsub.f32 %v3206, %v3238
        %v3271 = vsub.f32 %v3207, %v3239
        %v3272 = vsub.f32 %v3208, %v3240
        %v3273 = vsub.f32 %v3209, %v3241
        %v3274 = vsub.f32 %v3210, %v3242
        %v3275 = vsub.f32 %v3211, %v3243
        %v3276 = vsub.f32 %v3212, %v3244
        %v3277 = vsub.f32 %v2955, %v3053
        %v3278 = vsub.f32 %v2956, %v3054
        %v3279 = vsub.f32 %v2957, %v3055
        %v3280 = vsub.f32 %v2958, %v3056
        %v3281 = vsub.f32 %v2959, %v3057
        %v3282 = vsub.f32 %v2960, %v3058
        %v3283 = vsub.f32 %v2961, %v3059
        %v3284 = vsub.f32 %v2962, %v3060
        %v3285 = vsub.f32 %v2963, %v3061
        %v3286 = vsub.f32 %v2964, %v3062
        %v3287 = vsub.f32 %v2965, %v3063
        %v3288 = vsub.f32 %v2966, %v3064
        %v3289 = vsub.f32 %v2967, %v3065
        %v3290 = vsub.f32 %v2968, %v3066
        %v3291 = vsub.f32 %v2969, %v3067
        %v3292 = vsub.f32 %v2970, %v3068
        %v3293 = vsub.f32 %v2971, %v3069
        %v3294 = vsub.f32 %v2972, %v3070
        %v3295 = vsub.f32 %v2973, %v3071
        %v3296 = vsub.f32 %v2974, %v3072
        %v3297 = vsub.f32 %v2975, %v3073
        %v3298 = vsub.f32 %v2976, %v3074
        %v3299 = vsub.f32 %v2977, %v3075
        %v3300 = vsub.f32 %v2978, %v3076
        %v3301 = vsub.f32 %v2979, %v3077
        %v3302 = vsub.f32 %v2980, %v3078
        %v3303 = vsub.f32 %v2981, %v3079
        %v3304 = vsub.f32 %v2982, %v3080
        %v3305 = vsub.f32 %v2983, %v3081
        %v3306 = vsub.f32 %v2984, %v3082
        %v3307 = vsub.f32 %v2985, %v3083
        %v3308 = vsub.f32 %v2986, %v3084
        %v3309 = vadd.f32 %v3245, 1e-05
        %v3310 = vadd.f32 %v3246, 1e-05
        %v3311 = vadd.f32 %v3247, 1e-05
        %v3312 = vadd.f32 %v3248, 1e-05
        %v3313 = vadd.f32 %v3249, 1e-05
        %v3314 = vadd.f32 %v3250, 1e-05
        %v3315 = vadd.f32 %v3251, 1e-05
        %v3316 = vadd.f32 %v3252, 1e-05
        %v3317 = vadd.f32 %v3253, 1e-05
        %v3318 = vadd.f32 %v3254, 1e-05
        %v3319 = vadd.f32 %v3255, 1e-05
        %v3320 = vadd.f32 %v3256, 1e-05
        %v3321 = vadd.f32 %v3257, 1e-05
        %v3322 = vadd.f32 %v3258, 1e-05
        %v3323 = vadd.f32 %v3259, 1e-05
        %v3324 = vadd.f32 %v3260, 1e-05
        %v3325 = vadd.f32 %v3261, 1e-05
        %v3326 = vadd.f32 %v3262, 1e-05
        %v3327 = vadd.f32 %v3263, 1e-05
        %v3328 = vadd.f32 %v3264, 1e-05
        %v3329 = vadd.f32 %v3265, 1e-05
        %v3330 = vadd.f32 %v3266, 1e-05
        %v3331 = vadd.f32 %v3267, 1e-05
        %v3332 = vadd.f32 %v3268, 1e-05
        %v3333 = vadd.f32 %v3269, 1e-05
        %v3334 = vadd.f32 %v3270, 1e-05
        %v3335 = vadd.f32 %v3271, 1e-05
        %v3336 = vadd.f32 %v3272, 1e-05
        %v3337 = vadd.f32 %v3273, 1e-05
        %v3338 = vadd.f32 %v3274, 1e-05
        %v3339 = vadd.f32 %v3275, 1e-05
        %v3340 = vadd.f32 %v3276, 1e-05
        %v3341 = vrsqrt.pop %v3309
        %v3342 = vrsqrt.pop %v3310
        %v3343 = vrsqrt.pop %v3311
        %v3344 = vrsqrt.pop %v3312
        %v3345 = vrsqrt.pop %v3313
        %v3346 = vrsqrt.pop %v3314
        %v3347 = vrsqrt.pop %v3315
        %v3348 = vrsqrt.pop %v3316
        %v3349 = vrsqrt.pop %v3317
        %v3350 = vrsqrt.pop %v3318
        %v3351 = vrsqrt.pop %v3319
        %v3352 = vrsqrt.pop %v3320
        %v3353 = vrsqrt.pop %v3321
        %v3354 = vrsqrt.pop %v3322
        %v3355 = vrsqrt.pop %v3323
        %v3356 = vrsqrt.pop %v3324
        %v3357 = vrsqrt.pop %v3325
        %v3358 = vrsqrt.pop %v3326
        %v3359 = vrsqrt.pop %v3327
        %v3360 = vrsqrt.pop %v3328
        %v3361 = vrsqrt.pop %v3329
        %v3362 = vrsqrt.pop %v3330
        %v3363 = vrsqrt.pop %v3331
        %v3364 = vrsqrt.pop %v3332
        %v3365 = vrsqrt.pop %v3333
        %v3366 = vrsqrt.pop %v3334
        %v3367 = vrsqrt.pop %v3335
        %v3368 = vrsqrt.pop %v3336
        %v3369 = vrsqrt.pop %v3337
        %v3370 = vrsqrt.pop %v3338
        %v3371 = vrsqrt.pop %v3339
        %v3372 = vrsqrt.pop %v3340
        %v3373 = vmul.f32 %v3277, %v3341
        %v3374 = vmul.f32 %v3278, %v3342
        %v3375 = vmul.f32 %v3279, %v3343
        %v3376 = vmul.f32 %v3280, %v3344
        %v3377 = vmul.f32 %v3281, %v3345
        %v3378 = vmul.f32 %v3282, %v3346
        %v3379 = vmul.f32 %v3283, %v3347
        %v3380 = vmul.f32 %v3284, %v3348
        %v3381 = vmul.f32 %v3285, %v3349
        %v3382 = vmul.f32 %v3286, %v3350
        %v3383 = vmul.f32 %v3287, %v3351
        %v3384 = vmul.f32 %v3288, %v3352
        %v3385 = vmul.f32 %v3289, %v3353
        %v3386 = vmul.f32 %v3290, %v3354
        %v3387 = vmul.f32 %v3291, %v3355
        %v3388 = vmul.f32 %v3292, %v3356
        %v3389 = vmul.f32 %v3293, %v3357
        %v3390 = vmul.f32 %v3294, %v3358
        %v3391 = vmul.f32 %v3295, %v3359
        %v3392 = vmul.f32 %v3296, %v3360
        %v3393 = vmul.f32 %v3297, %v3361
        %v3394 = vmul.f32 %v3298, %v3362
        %v3395 = vmul.f32 %v3299, %v3363
        %v3396 = vmul.f32 %v3300, %v3364
        %v3397 = vmul.f32 %v3301, %v3365
        %v3398 = vmul.f32 %v3302, %v3366
        %v3399 = vmul.f32 %v3303, %v3367
        %v3400 = vmul.f32 %v3304, %v3368
        %v3401 = vmul.f32 %v3305, %v3369
        %v3402 = vmul.f32 %v3306, %v3370
        %v3403 = vmul.f32 %v3307, %v3371
        %v3404 = vmul.f32 %v3308, %v3372
        %v3406 = vlaneseq
        %v3407 = vshrl.u32 %v3406, 7
        %v3408 = vsub.s32 0, %v3407
        %v3409 = vrot.slane %v2987, %v3408
        %v3411 = vmul.f32 %v3373, %v3409
        %v3412 = vmul.f32 %v3374, %v3409
        %v3413 = vmul.f32 %v3375, %v3409
        %v3414 = vmul.f32 %v3376, %v3409
        %v3415 = vmul.f32 %v3377, %v3409
        %v3416 = vmul.f32 %v3378, %v3409
        %v3417 = vmul.f32 %v3379, %v3409
        %v3418 = vmul.f32 %v3380, %v3409
        %v3419 = vmul.f32 %v3381, %v3409
        %v3420 = vmul.f32 %v3382, %v3409
        %v3421 = vmul.f32 %v3383, %v3409
        %v3422 = vmul.f32 %v3384, %v3409
        %v3423 = vmul.f32 %v3385, %v3409
        %v3424 = vmul.f32 %v3386, %v3409
        %v3425 = vmul.f32 %v3387, %v3409
        %v3426 = vmul.f32 %v3388, %v3409
        %v3427 = vmul.f32 %v3389, %v3409
        %v3428 = vmul.f32 %v3390, %v3409
        %v3429 = vmul.f32 %v3391, %v3409
        %v3430 = vmul.f32 %v3392, %v3409
        %v3431 = vmul.f32 %v3393, %v3409
        %v3432 = vmul.f32 %v3394, %v3409
        %v3433 = vmul.f32 %v3395, %v3409
        %v3434 = vmul.f32 %v3396, %v3409
        %v3435 = vmul.f32 %v3397, %v3409
        %v3436 = vmul.f32 %v3398, %v3409
        %v3437 = vmul.f32 %v3399, %v3409
        %v3438 = vmul.f32 %v3400, %v3409
        %v3439 = vmul.f32 %v3401, %v3409
        %v3440 = vmul.f32 %v3402, %v3409
        %v3441 = vmul.f32 %v3403, %v3409
        %v3442 = vmul.f32 %v3404, %v3409
        %v3444 = vlaneseq
        %v3445 = vshrl.u32 %v3444, 7
        %v3446 = vsub.s32 0, %v3445
        %v3447 = vrot.slane %v2988, %v3446
        %v3449 = vadd.f32 %v3411, %v3447
        %v3450 = vadd.f32 %v3412, %v3447
        %v3451 = vadd.f32 %v3413, %v3447
        %v3452 = vadd.f32 %v3414, %v3447
        %v3453 = vadd.f32 %v3415, %v3447
        %v3454 = vadd.f32 %v3416, %v3447
        %v3455 = vadd.f32 %v3417, %v3447
        %v3456 = vadd.f32 %v3418, %v3447
        %v3457 = vadd.f32 %v3419, %v3447
        %v3458 = vadd.f32 %v3420, %v3447
        %v3459 = vadd.f32 %v3421, %v3447
        %v3460 = vadd.f32 %v3422, %v3447
        %v3461 = vadd.f32 %v3423, %v3447
        %v3462 = vadd.f32 %v3424, %v3447
        %v3463 = vadd.f32 %v3425, %v3447
        %v3464 = vadd.f32 %v3426, %v3447
        %v3465 = vadd.f32 %v3427, %v3447
        %v3466 = vadd.f32 %v3428, %v3447
        %v3467 = vadd.f32 %v3429, %v3447
        %v3468 = vadd.f32 %v3430, %v3447
        %v3469 = vadd.f32 %v3431, %v3447
        %v3470 = vadd.f32 %v3432, %v3447
        %v3471 = vadd.f32 %v3433, %v3447
        %v3472 = vadd.f32 %v3434, %v3447
        %v3473 = vadd.f32 %v3435, %v3447
        %v3474 = vadd.f32 %v3436, %v3447
        %v3475 = vadd.f32 %v3437, %v3447
        %v3476 = vadd.f32 %v3438, %v3447
        %v3477 = vadd.f32 %v3439, %v3447
        %v3478 = vadd.f32 %v3440, %v3447
        %v3479 = vadd.f32 %v3441, %v3447
        %v3480 = vadd.f32 %v3442, %v3447
        %v3481 = vpack.c.bf16 %v3450, %v3449
        %v3482 = vpack.c.bf16 %v3452, %v3451
        %v3483 = vpack.c.bf16 %v3454, %v3453
        %v3484 = vpack.c.bf16 %v3456, %v3455
        %v3485 = vpack.c.bf16 %v3458, %v3457
        %v3486 = vpack.c.bf16 %v3460, %v3459
        %v3487 = vpack.c.bf16 %v3462, %v3461
        %v3488 = vpack.c.bf16 %v3464, %v3463
        %v3489 = vpack.c.bf16 %v3466, %v3465
        %v3490 = vpack.c.bf16 %v3468, %v3467
        %v3491 = vpack.c.bf16 %v3470, %v3469
        %v3492 = vpack.c.bf16 %v3472, %v3471
        %v3493 = vpack.c.bf16 %v3474, %v3473
        %v3494 = vpack.c.bf16 %v3476, %v3475
        %v3495 = vpack.c.bf16 %v3478, %v3477
        %v3496 = vpack.c.bf16 %v3480, %v3479
        %v3497 = vld [vmem:[%s620] sm:$0xff]
        %v3498 = vld [vmem:[%s620 + $0x8] sm:$0xff]
        %v3499 = vld [vmem:[%s620 + $0x10] sm:$0xff]
        %v3500 = vld [vmem:[%s620 + $0x18] sm:$0xff]
        %v3501 = vld [vmem:[%s620 + $0x20] sm:$0xff]
        %v3502 = vld [vmem:[%s620 + $0x28] sm:$0xff]
        %v3503 = vld [vmem:[%s620 + $0x30] sm:$0xff]
        %v3504 = vld [vmem:[%s620 + $0x38] sm:$0xff]
        %v3505 = vld [vmem:[%s620 + $0x40] sm:$0xff]
        %v3506 = vld [vmem:[%s620 + $0x48] sm:$0xff]
        %v3507 = vld [vmem:[%s620 + $0x50] sm:$0xff]
        %v3508 = vld [vmem:[%s620 + $0x58] sm:$0xff]
        %v3509 = vld [vmem:[%s620 + $0x60] sm:$0xff]
        %v3510 = vld [vmem:[%s620 + $0x68] sm:$0xff]
        %v3511 = vld [vmem:[%s620 + $0x70] sm:$0xff]
        %v3512 = vld [vmem:[%s620 + $0x78] sm:$0xff]
        %v3513 = vld [vmem:[%s750] sm:$0x3]
        %v3515 = vlaneseq
        %v3516 = vshrl.u32 %v3515, 7
        %v3517 = vsub.s32 0, %v3516
        %v3518 = vrot.slane %v3513, %v3517
        %v3519 = vlaneseq
        %v3520 = vshrl.u32 %v3519, 7
        %v3521 = vsub.s32 1, %v3520
        %v3522 = vrot.slane %v3513, %v3521
        %v3541 = vunpack.c.l.b16 %v3497
        %v3542 = vunpack.c.h.b16 %v3497
        %v3543 = vunpack.c.l.b16 %v3498
        %v3544 = vunpack.c.h.b16 %v3498
        %v3545 = vunpack.c.l.b16 %v3499
        %v3546 = vunpack.c.h.b16 %v3499
        %v3547 = vunpack.c.l.b16 %v3500
        %v3548 = vunpack.c.h.b16 %v3500
        %v3549 = vunpack.c.l.b16 %v3501
        %v3550 = vunpack.c.h.b16 %v3501
        %v3551 = vunpack.c.l.b16 %v3502
        %v3552 = vunpack.c.h.b16 %v3502
        %v3553 = vunpack.c.l.b16 %v3503
        %v3554 = vunpack.c.h.b16 %v3503
        %v3555 = vunpack.c.l.b16 %v3504
        %v3556 = vunpack.c.h.b16 %v3504
        %v3557 = vunpack.c.l.b16 %v3505
        %v3558 = vunpack.c.h.b16 %v3505
        %v3559 = vunpack.c.l.b16 %v3506
        %v3560 = vunpack.c.h.b16 %v3506
        %v3561 = vunpack.c.l.b16 %v3507
        %v3562 = vunpack.c.h.b16 %v3507
        %v3563 = vunpack.c.l.b16 %v3508
        %v3564 = vunpack.c.h.b16 %v3508
        %v3565 = vunpack.c.l.b16 %v3509
        %v3566 = vunpack.c.h.b16 %v3509
        %v3567 = vunpack.c.l.b16 %v3510
        %v3568 = vunpack.c.h.b16 %v3510
        %v3569 = vunpack.c.l.b16 %v3511
        %v3570 = vunpack.c.h.b16 %v3511
        %v3571 = vunpack.c.l.b16 %v3512
        %v3572 = vunpack.c.h.b16 %v3512
        %v3573 = vpack.c.b16 %v3543, %v3541
        %v3574 = vpack.c.b16 %v3544, %v3542
        %v3575 = vpack.c.b16 %v3547, %v3545
        %v3576 = vpack.c.b16 %v3548, %v3546
        %v3577 = vpack.c.b16 %v3551, %v3549
        %v3578 = vpack.c.b16 %v3552, %v3550
        %v3579 = vpack.c.b16 %v3555, %v3553
        %v3580 = vpack.c.b16 %v3556, %v3554
        %v3581 = vpack.c.b16 %v3559, %v3557
        %v3582 = vpack.c.b16 %v3560, %v3558
        %v3583 = vpack.c.b16 %v3563, %v3561
        %v3584 = vpack.c.b16 %v3564, %v3562
        %v3585 = vpack.c.b16 %v3567, %v3565
        %v3586 = vpack.c.b16 %v3568, %v3566
        %v3587 = vpack.c.b16 %v3571, %v3569
        %v3588 = vpack.c.b16 %v3572, %v3570
        %3605 = vmatprep.subr.bf16.mxu0 %v3574
        %3606 = vmatpush1.bf16.msra.mxu0 %v3573
        %3607 = vmatprep.subr.bf16.mxu0 %v3576
        %3608 = vmatpush1.bf16.msra.mxu0 %v3575
        %3609 = vmatprep.subr.bf16.mxu0 %v3578
        %3610 = vmatpush1.bf16.msra.mxu0 %v3577
        %3611 = vmatprep.subr.bf16.mxu0 %v3580
        %3612 = vmatpush1.bf16.msra.mxu0 %v3579
        %3613 = vmatprep.subr.bf16.mxu0 %v3582
        %3614 = vmatpush1.bf16.msra.mxu0 %v3581
        %3615 = vmatprep.subr.bf16.mxu0 %v3584
        %3616 = vmatpush1.bf16.msra.mxu0 %v3583
        %3617 = vmatprep.subr.bf16.mxu0 %v3586
        %3618 = vmatpush1.bf16.msra.mxu0 %v3585
        %3619 = vmatprep.subr.bf16.mxu0 %v3588
        %3620 = vmatpush1.bf16.msra.mxu0 %v3587
        %3621 = vmatprep.subr.bf16.mxu0 0
        %3622 = vmatpush1.bf16.msra.mxu0 0
        %3623 = vmatprep.subr.bf16.mxu0 0
        %3624 = vmatpush1.bf16.msra.mxu0 0
        %3625 = vmatprep.subr.bf16.mxu0 0
        %3626 = vmatpush1.bf16.msra.mxu0 0
        %3627 = vmatprep.subr.bf16.mxu0 0
        %3628 = vmatpush1.bf16.msra.mxu0 0
        %3629 = vmatprep.subr.bf16.mxu0 0
        %3630 = vmatpush1.bf16.msra.mxu0 0
        %3631 = vmatprep.subr.bf16.mxu0 0
        %3632 = vmatpush1.bf16.msra.mxu0 0
        %3633 = vmatprep.subr.bf16.mxu0 0
        %3634 = vmatpush1.bf16.msra.mxu0 0
        %3635 = vmatprep.subr.bf16.mxu0 0
        %3636 = vmatpush1.bf16.msra.mxu0 0
        %3637 = vmatprep.mubr.bf16.mxu0 0
        %3638 = vmatmul.mubr.bf16.gmra.mrb[0].mxu0 %v3481
        %v3639 = vpop.f32.mrb[0].mxu0
        %v3640 = vadd.f32 %v3518, %v3639
        %v3641 = vpop.f32.mrb[0].mxu0
        %v3642 = vadd.f32 %v3522, %v3641
        %v3643 = vpop.f32.mrb[0].mxu0
        %v3644 = vadd.f32 %v3518, %v3643
        %v3645 = vpop.f32.mrb[0].mxu0
        %v3646 = vadd.f32 %v3522, %v3645
        %3647 = vmatprep.mubr.bf16.mxu0 0
        %3648 = vmatmul.mubr.bf16.gmra.mrb[0].mxu0 %v3482
        %v3649 = vpop.f32.mrb[0].mxu0
        %v3650 = vadd.f32 %v3518, %v3649
        %v3651 = vpop.f32.mrb[0].mxu0
        %v3652 = vadd.f32 %v3522, %v3651
        %v3653 = vpop.f32.mrb[0].mxu0
        %v3654 = vadd.f32 %v3518, %v3653
        %v3655 = vpop.f32.mrb[0].mxu0
        %v3656 = vadd.f32 %v3522, %v3655
        %3657 = vmatprep.mubr.bf16.mxu0 0
        %3658 = vmatmul.mubr.bf16.gmra.mrb[0].mxu0 %v3483
        %v3659 = vpop.f32.mrb[0].mxu0
        %v3660 = vadd.f32 %v3518, %v3659
        %v3661 = vpop.f32.mrb[0].mxu0
        %v3662 = vadd.f32 %v3522, %v3661
        %v3663 = vpop.f32.mrb[0].mxu0
        %v3664 = vadd.f32 %v3518, %v3663
        %v3665 = vpop.f32.mrb[0].mxu0
        %v3666 = vadd.f32 %v3522, %v3665
        %3667 = vmatprep.mubr.bf16.mxu0 0
        %3668 = vmatmul.mubr.bf16.gmra.mrb[0].mxu0 %v3484
        %v3669 = vpop.f32.mrb[0].mxu0
        %v3670 = vadd.f32 %v3518, %v3669
        %v3671 = vpop.f32.mrb[0].mxu0
        %v3672 = vadd.f32 %v3522, %v3671
        %v3673 = vpop.f32.mrb[0].mxu0
        %v3674 = vadd.f32 %v3518, %v3673
        %v3675 = vpop.f32.mrb[0].mxu0
        %v3676 = vadd.f32 %v3522, %v3675
        %3677 = vmatprep.mubr.bf16.mxu0 0
        %3678 = vmatmul.mubr.bf16.gmra.mrb[0].mxu0 %v3485
        %v3679 = vpop.f32.mrb[0].mxu0
        %v3680 = vadd.f32 %v3518, %v3679
        %v3681 = vpop.f32.mrb[0].mxu0
        %v3682 = vadd.f32 %v3522, %v3681
        %v3683 = vpop.f32.mrb[0].mxu0
        %v3684 = vadd.f32 %v3518, %v3683
        %v3685 = vpop.f32.mrb[0].mxu0
        %v3686 = vadd.f32 %v3522, %v3685
        %3687 = vmatprep.mubr.bf16.mxu0 0
        %3688 = vmatmul.mubr.bf16.gmra.mrb[0].mxu0 %v3486
        %v3689 = vpop.f32.mrb[0].mxu0
        %v3690 = vadd.f32 %v3518, %v3689
        %v3691 = vpop.f32.mrb[0].mxu0
        %v3692 = vadd.f32 %v3522, %v3691
        %v3693 = vpop.f32.mrb[0].mxu0
        %v3694 = vadd.f32 %v3518, %v3693
        %v3695 = vpop.f32.mrb[0].mxu0
        %v3696 = vadd.f32 %v3522, %v3695
        %3697 = vmatprep.mubr.bf16.mxu0 0
        %3698 = vmatmul.mubr.bf16.gmra.mrb[0].mxu0 %v3487
        %v3699 = vpop.f32.mrb[0].mxu0
        %v3700 = vadd.f32 %v3518, %v3699
        %v3701 = vpop.f32.mrb[0].mxu0
        %v3702 = vadd.f32 %v3522, %v3701
        %v3703 = vpop.f32.mrb[0].mxu0
        %v3704 = vadd.f32 %v3518, %v3703
        %v3705 = vpop.f32.mrb[0].mxu0
        %v3706 = vadd.f32 %v3522, %v3705
        %3707 = vmatprep.mubr.bf16.mxu0 0
        %3708 = vmatmul.mubr.bf16.gmra.mrb[0].mxu0 %v3488
        %v3709 = vpop.f32.mrb[0].mxu0
        %v3710 = vadd.f32 %v3518, %v3709
        %v3711 = vpop.f32.mrb[0].mxu0
        %v3712 = vadd.f32 %v3522, %v3711
        %v3713 = vpop.f32.mrb[0].mxu0
        %v3714 = vadd.f32 %v3518, %v3713
        %v3715 = vpop.f32.mrb[0].mxu0
        %v3716 = vadd.f32 %v3522, %v3715
        %3717 = vmatprep.mubr.bf16.mxu0 0
        %3718 = vmatmul.mubr.bf16.gmra.mrb[0].mxu0 %v3489
        %v3719 = vpop.f32.mrb[0].mxu0
        %v3720 = vadd.f32 %v3518, %v3719
        %v3721 = vpop.f32.mrb[0].mxu0
        %v3722 = vadd.f32 %v3522, %v3721
        %v3723 = vpop.f32.mrb[0].mxu0
        %v3724 = vadd.f32 %v3518, %v3723
        %v3725 = vpop.f32.mrb[0].mxu0
        %v3726 = vadd.f32 %v3522, %v3725
        %3727 = vmatprep.mubr.bf16.mxu0 0
        %3728 = vmatmul.mubr.bf16.gmra.mrb[0].mxu0 %v3490
        %v3729 = vpop.f32.mrb[0].mxu0
        %v3730 = vadd.f32 %v3518, %v3729
        %v3731 = vpop.f32.mrb[0].mxu0
        %v3732 = vadd.f32 %v3522, %v3731
        %v3733 = vpop.f32.mrb[0].mxu0
        %v3734 = vadd.f32 %v3518, %v3733
        %v3735 = vpop.f32.mrb[0].mxu0
        %v3736 = vadd.f32 %v3522, %v3735
        %3737 = vmatprep.mubr.bf16.mxu0 0
        %3738 = vmatmul.mubr.bf16.gmra.mrb[0].mxu0 %v3491
        %v3739 = vpop.f32.mrb[0].mxu0
        %v3740 = vadd.f32 %v3518, %v3739
        %v3741 = vpop.f32.mrb[0].mxu0
        %v3742 = vadd.f32 %v3522, %v3741
        %v3743 = vpop.f32.mrb[0].mxu0
        %v3744 = vadd.f32 %v3518, %v3743
        %v3745 = vpop.f32.mrb[0].mxu0
        %v3746 = vadd.f32 %v3522, %v3745
        %3747 = vmatprep.mubr.bf16.mxu0 0
        %3748 = vmatmul.mubr.bf16.gmra.mrb[0].mxu0 %v3492
        %v3749 = vpop.f32.mrb[0].mxu0
        %v3750 = vadd.f32 %v3518, %v3749
        %v3751 = vpop.f32.mrb[0].mxu0
        %v3752 = vadd.f32 %v3522, %v3751
        %v3753 = vpop.f32.mrb[0].mxu0
        %v3754 = vadd.f32 %v3518, %v3753
        %v3755 = vpop.f32.mrb[0].mxu0
        %v3756 = vadd.f32 %v3522, %v3755
        %3757 = vmatprep.mubr.bf16.mxu0 0
        %3758 = vmatmul.mubr.bf16.gmra.mrb[0].mxu0 %v3493
        %v3759 = vpop.f32.mrb[0].mxu0
        %v3760 = vadd.f32 %v3518, %v3759
        %v3761 = vpop.f32.mrb[0].mxu0
        %v3762 = vadd.f32 %v3522, %v3761
        %v3763 = vpop.f32.mrb[0].mxu0
        %v3764 = vadd.f32 %v3518, %v3763
        %v3765 = vpop.f32.mrb[0].mxu0
        %v3766 = vadd.f32 %v3522, %v3765
        %3767 = vmatprep.mubr.bf16.mxu0 0
        %3768 = vmatmul.mubr.bf16.gmra.mrb[0].mxu0 %v3494
        %v3769 = vpop.f32.mrb[0].mxu0
        %v3770 = vadd.f32 %v3518, %v3769
        %v3771 = vpop.f32.mrb[0].mxu0
        %v3772 = vadd.f32 %v3522, %v3771
        %v3773 = vpop.f32.mrb[0].mxu0
        %v3774 = vadd.f32 %v3518, %v3773
        %v3775 = vpop.f32.mrb[0].mxu0
        %v3776 = vadd.f32 %v3522, %v3775
        %3777 = vmatprep.mubr.bf16.mxu0 0
        %3778 = vmatmul.mubr.bf16.gmra.mrb[0].mxu0 %v3495
        %v3779 = vpop.f32.mrb[0].mxu0
        %v3780 = vadd.f32 %v3518, %v3779
        %v3781 = vpop.f32.mrb[0].mxu0
        %v3782 = vadd.f32 %v3522, %v3781
        %v3783 = vpop.f32.mrb[0].mxu0
        %v3784 = vadd.f32 %v3518, %v3783
        %v3785 = vpop.f32.mrb[0].mxu0
        %v3786 = vadd.f32 %v3522, %v3785
        %3787 = vmatprep.mubr.bf16.mxu0 0
        %3788 = vmatmul.mubr.bf16.gmra.mrb[0].mxu0 %v3496
        %v3789 = vpop.f32.mrb[0].mxu0
        %v3790 = vadd.f32 %v3518, %v3789
        %v3791 = vpop.f32.mrb[0].mxu0
        %v3792 = vadd.f32 %v3522, %v3791
        %v3793 = vpop.f32.mrb[0].mxu0
        %v3794 = vadd.f32 %v3518, %v3793
        %v3795 = vpop.f32.mrb[0].mxu0
        %v3796 = vadd.f32 %v3522, %v3795
        %3797 = vdwg.mxu0
        %v3798 = vmul.f32 %v3640, 0.5
        %v3799 = vmul.f32 %v3642, 0.5
        %v3800 = vmul.f32 %v3644, 0.5
        %v3801 = vmul.f32 %v3646, 0.5
        %v3802 = vmul.f32 %v3650, 0.5
        %v3803 = vmul.f32 %v3652, 0.5
        %v3804 = vmul.f32 %v3654, 0.5
        %v3805 = vmul.f32 %v3656, 0.5
        %v3806 = vmul.f32 %v3660, 0.5
        %v3807 = vmul.f32 %v3662, 0.5
        %v3808 = vmul.f32 %v3664, 0.5
        %v3809 = vmul.f32 %v3666, 0.5
        %v3810 = vmul.f32 %v3670, 0.5
        %v3811 = vmul.f32 %v3672, 0.5
        %v3812 = vmul.f32 %v3674, 0.5
        %v3813 = vmul.f32 %v3676, 0.5
        %v3814 = vmul.f32 %v3680, 0.5
        %v3815 = vmul.f32 %v3682, 0.5
        %v3816 = vmul.f32 %v3684, 0.5
        %v3817 = vmul.f32 %v3686, 0.5
        %v3818 = vmul.f32 %v3690, 0.5
        %v3819 = vmul.f32 %v3692, 0.5
        %v3820 = vmul.f32 %v3694, 0.5
        %v3821 = vmul.f32 %v3696, 0.5
        %v3822 = vmul.f32 %v3700, 0.5
        %v3823 = vmul.f32 %v3702, 0.5
        %v3824 = vmul.f32 %v3704, 0.5
        %v3825 = vmul.f32 %v3706, 0.5
        %v3826 = vmul.f32 %v3710, 0.5
        %v3827 = vmul.f32 %v3712, 0.5
        %v3828 = vmul.f32 %v3714, 0.5
        %v3829 = vmul.f32 %v3716, 0.5
        %v3830 = vmul.f32 %v3720, 0.5
        %v3831 = vmul.f32 %v3722, 0.5
        %v3832 = vmul.f32 %v3724, 0.5
        %v3833 = vmul.f32 %v3726, 0.5
        %v3834 = vmul.f32 %v3730, 0.5
        %v3835 = vmul.f32 %v3732, 0.5
        %v3836 = vmul.f32 %v3734, 0.5
        %v3837 = vmul.f32 %v3736, 0.5
        %v3838 = vmul.f32 %v3740, 0.5
        %v3839 = vmul.f32 %v3742, 0.5
        %v3840 = vmul.f32 %v3744, 0.5
        %v3841 = vmul.f32 %v3746, 0.5
        %v3842 = vmul.f32 %v3750, 0.5
        %v3843 = vmul.f32 %v3752, 0.5
        %v3844 = vmul.f32 %v3754, 0.5
        %v3845 = vmul.f32 %v3756, 0.5
        %v3846 = vmul.f32 %v3760, 0.5
        %v3847 = vmul.f32 %v3762, 0.5
        %v3848 = vmul.f32 %v3764, 0.5
        %v3849 = vmul.f32 %v3766, 0.5
        %v3850 = vmul.f32 %v3770, 0.5
        %v3851 = vmul.f32 %v3772, 0.5
        %v3852 = vmul.f32 %v3774, 0.5
        %v3853 = vmul.f32 %v3776, 0.5
        %v3854 = vmul.f32 %v3780, 0.5
        %v3855 = vmul.f32 %v3782, 0.5
        %v3856 = vmul.f32 %v3784, 0.5
        %v3857 = vmul.f32 %v3786, 0.5
        %v3858 = vmul.f32 %v3790, 0.5
        %v3859 = vmul.f32 %v3792, 0.5
        %v3860 = vmul.f32 %v3794, 0.5
        %v3861 = vmul.f32 %v3796, 0.5
        %v3862 = vmul.f32 %v3640, 0.70710677
        %v3863 = vmul.f32 %v3642, 0.70710677
        %v3864 = vmul.f32 %v3644, 0.70710677
        %v3865 = vmul.f32 %v3646, 0.70710677
        %v3866 = vmul.f32 %v3650, 0.70710677
        %v3867 = vmul.f32 %v3652, 0.70710677
        %v3868 = vmul.f32 %v3654, 0.70710677
        %v3869 = vmul.f32 %v3656, 0.70710677
        %v3870 = vmul.f32 %v3660, 0.70710677
        %v3871 = vmul.f32 %v3662, 0.70710677
        %v3872 = vmul.f32 %v3664, 0.70710677
        %v3873 = vmul.f32 %v3666, 0.70710677
        %v3874 = vmul.f32 %v3670, 0.70710677
        %v3875 = vmul.f32 %v3672, 0.70710677
        %v3876 = vmul.f32 %v3674, 0.70710677
        %v3877 = vmul.f32 %v3676, 0.70710677
        %v3878 = vmul.f32 %v3680, 0.70710677
        %v3879 = vmul.f32 %v3682, 0.70710677
        %v3880 = vmul.f32 %v3684, 0.70710677
        %v3881 = vmul.f32 %v3686, 0.70710677
        %v3882 = vmul.f32 %v3690, 0.70710677
        %v3883 = vmul.f32 %v3692, 0.70710677
        %v3884 = vmul.f32 %v3694, 0.70710677
        %v3885 = vmul.f32 %v3696, 0.70710677
        %v3886 = vmul.f32 %v3700, 0.70710677
        %v3887 = vmul.f32 %v3702, 0.70710677
        %v3888 = vmul.f32 %v3704, 0.70710677
        %v3889 = vmul.f32 %v3706, 0.70710677
        %v3890 = vmul.f32 %v3710, 0.70710677
        %v3891 = vmul.f32 %v3712, 0.70710677
        %v3892 = vmul.f32 %v3714, 0.70710677
        %v3893 = vmul.f32 %v3716, 0.70710677
        %v3894 = vmul.f32 %v3720, 0.70710677
        %v3895 = vmul.f32 %v3722, 0.70710677
        %v3896 = vmul.f32 %v3724, 0.70710677
        %v3897 = vmul.f32 %v3726, 0.70710677
        %v3898 = vmul.f32 %v3730, 0.70710677
        %v3899 = vmul.f32 %v3732, 0.70710677
        %v3900 = vmul.f32 %v3734, 0.70710677
        %v3901 = vmul.f32 %v3736, 0.70710677
        %v3902 = vmul.f32 %v3740, 0.70710677
        %v3903 = vmul.f32 %v3742, 0.70710677
        %v3904 = vmul.f32 %v3744, 0.70710677
        %v3905 = vmul.f32 %v3746, 0.70710677
        %v3906 = vmul.f32 %v3750, 0.70710677
        %v3907 = vmul.f32 %v3752, 0.70710677
        %v3908 = vmul.f32 %v3754, 0.70710677
        %v3909 = vmul.f32 %v3756, 0.70710677
        %v3910 = vmul.f32 %v3760, 0.70710677
        %v3911 = vmul.f32 %v3762, 0.70710677
        %v3912 = vmul.f32 %v3764, 0.70710677
        %v3913 = vmul.f32 %v3766, 0.70710677
        %v3914 = vmul.f32 %v3770, 0.70710677
        %v3915 = vmul.f32 %v3772, 0.70710677
        %v3916 = vmul.f32 %v3774, 0.70710677
        %v3917 = vmul.f32 %v3776, 0.70710677
        %v3918 = vmul.f32 %v3780, 0.70710677
        %v3919 = vmul.f32 %v3782, 0.70710677
        %v3920 = vmul.f32 %v3784, 0.70710677
        %v3921 = vmul.f32 %v3786, 0.70710677
        %v3922 = vmul.f32 %v3790, 0.70710677
        %v3923 = vmul.f32 %v3792, 0.70710677
        %v3924 = vmul.f32 %v3794, 0.70710677
        %v3925 = vmul.f32 %v3796, 0.70710677
        %vm3926 = vcmp.ge.f32.partialorder %v3862, 0.0
        %vm3927 = vcmp.ge.f32.partialorder %v3863, 0.0
        %vm3928 = vcmp.ge.f32.partialorder %v3864, 0.0
        %vm3929 = vcmp.ge.f32.partialorder %v3865, 0.0
        %vm3930 = vcmp.ge.f32.partialorder %v3866, 0.0
        %vm3931 = vcmp.ge.f32.partialorder %v3867, 0.0
        %vm3932 = vcmp.ge.f32.partialorder %v3868, 0.0
        %vm3933 = vcmp.ge.f32.partialorder %v3869, 0.0
        %vm3934 = vcmp.ge.f32.partialorder %v3870, 0.0
        %vm3935 = vcmp.ge.f32.partialorder %v3871, 0.0
        %vm3936 = vcmp.ge.f32.partialorder %v3872, 0.0
        %vm3937 = vcmp.ge.f32.partialorder %v3873, 0.0
        %vm3938 = vcmp.ge.f32.partialorder %v3874, 0.0
        %vm3939 = vcmp.ge.f32.partialorder %v3875, 0.0
        %vm3940 = vcmp.ge.f32.partialorder %v3876, 0.0
        %vm3941 = vcmp.ge.f32.partialorder %v3877, 0.0
        %vm3942 = vcmp.ge.f32.partialorder %v3878, 0.0
        %vm3943 = vcmp.ge.f32.partialorder %v3879, 0.0
        %vm3944 = vcmp.ge.f32.partialorder %v3880, 0.0
        %vm3945 = vcmp.ge.f32.partialorder %v3881, 0.0
        %vm3946 = vcmp.ge.f32.partialorder %v3882, 0.0
        %vm3947 = vcmp.ge.f32.partialorder %v3883, 0.0
        %vm3948 = vcmp.ge.f32.partialorder %v3884, 0.0
        %vm3949 = vcmp.ge.f32.partialorder %v3885, 0.0
        %vm3950 = vcmp.ge.f32.partialorder %v3886, 0.0
        %vm3951 = vcmp.ge.f32.partialorder %v3887, 0.0
        %vm3952 = vcmp.ge.f32.partialorder %v3888, 0.0
        %vm3953 = vcmp.ge.f32.partialorder %v3889, 0.0
        %vm3954 = vcmp.ge.f32.partialorder %v3890, 0.0
        %vm3955 = vcmp.ge.f32.partialorder %v3891, 0.0
        %vm3956 = vcmp.ge.f32.partialorder %v3892, 0.0
        %vm3957 = vcmp.ge.f32.partialorder %v3893, 0.0
        %vm3958 = vcmp.ge.f32.partialorder %v3894, 0.0
        %vm3959 = vcmp.ge.f32.partialorder %v3895, 0.0
        %vm3960 = vcmp.ge.f32.partialorder %v3896, 0.0
        %vm3961 = vcmp.ge.f32.partialorder %v3897, 0.0
        %vm3962 = vcmp.ge.f32.partialorder %v3898, 0.0
        %vm3963 = vcmp.ge.f32.partialorder %v3899, 0.0
        %vm3964 = vcmp.ge.f32.partialorder %v3900, 0.0
        %vm3965 = vcmp.ge.f32.partialorder %v3901, 0.0
        %vm3966 = vcmp.ge.f32.partialorder %v3902, 0.0
        %vm3967 = vcmp.ge.f32.partialorder %v3903, 0.0
        %vm3968 = vcmp.ge.f32.partialorder %v3904, 0.0
        %vm3969 = vcmp.ge.f32.partialorder %v3905, 0.0
        %vm3970 = vcmp.ge.f32.partialorder %v3906, 0.0
        %vm3971 = vcmp.ge.f32.partialorder %v3907, 0.0
        %vm3972 = vcmp.ge.f32.partialorder %v3908, 0.0
        %vm3973 = vcmp.ge.f32.partialorder %v3909, 0.0
        %vm3974 = vcmp.ge.f32.partialorder %v3910, 0.0
        %vm3975 = vcmp.ge.f32.partialorder %v3911, 0.0
        %vm3976 = vcmp.ge.f32.partialorder %v3912, 0.0
        %vm3977 = vcmp.ge.f32.partialorder %v3913, 0.0
        %vm3978 = vcmp.ge.f32.partialorder %v3914, 0.0
        %vm3979 = vcmp.ge.f32.partialorder %v3915, 0.0
        %vm3980 = vcmp.ge.f32.partialorder %v3916, 0.0
        %vm3981 = vcmp.ge.f32.partialorder %v3917, 0.0
        %vm3982 = vcmp.ge.f32.partialorder %v3918, 0.0
        %vm3983 = vcmp.ge.f32.partialorder %v3919, 0.0
        %vm3984 = vcmp.ge.f32.partialorder %v3920, 0.0
        %vm3985 = vcmp.ge.f32.partialorder %v3921, 0.0
        %vm3986 = vcmp.ge.f32.partialorder %v3922, 0.0
        %vm3987 = vcmp.ge.f32.partialorder %v3923, 0.0
        %vm3988 = vcmp.ge.f32.partialorder %v3924, 0.0
        %vm3989 = vcmp.ge.f32.partialorder %v3925, 0.0
        %v3990 = vsel %vm3926, 1.0, -1.0
        %v3991 = vsel %vm3927, 1.0, -1.0
        %v3992 = vsel %vm3928, 1.0, -1.0
        %v3993 = vsel %vm3929, 1.0, -1.0
        %v3994 = vsel %vm3930, 1.0, -1.0
        %v3995 = vsel %vm3931, 1.0, -1.0
        %v3996 = vsel %vm3932, 1.0, -1.0
        %v3997 = vsel %vm3933, 1.0, -1.0
        %v3998 = vsel %vm3934, 1.0, -1.0
        %v3999 = vsel %vm3935, 1.0, -1.0
        %v4000 = vsel %vm3936, 1.0, -1.0
        %v4001 = vsel %vm3937, 1.0, -1.0
        %v4002 = vsel %vm3938, 1.0, -1.0
        %v4003 = vsel %vm3939, 1.0, -1.0
        %v4004 = vsel %vm3940, 1.0, -1.0
        %v4005 = vsel %vm3941, 1.0, -1.0
        %v4006 = vsel %vm3942, 1.0, -1.0
        %v4007 = vsel %vm3943, 1.0, -1.0
        %v4008 = vsel %vm3944, 1.0, -1.0
        %v4009 = vsel %vm3945, 1.0, -1.0
        %v4010 = vsel %vm3946, 1.0, -1.0
        %v4011 = vsel %vm3947, 1.0, -1.0
        %v4012 = vsel %vm3948, 1.0, -1.0
        %v4013 = vsel %vm3949, 1.0, -1.0
        %v4014 = vsel %vm3950, 1.0, -1.0
        %v4015 = vsel %vm3951, 1.0, -1.0
        %v4016 = vsel %vm3952, 1.0, -1.0
        %v4017 = vsel %vm3953, 1.0, -1.0
        %v4018 = vsel %vm3954, 1.0, -1.0
        %v4019 = vsel %vm3955, 1.0, -1.0
        %v4020 = vsel %vm3956, 1.0, -1.0
        %v4021 = vsel %vm3957, 1.0, -1.0
        %v4022 = vsel %vm3958, 1.0, -1.0
        %v4023 = vsel %vm3959, 1.0, -1.0
        %v4024 = vsel %vm3960, 1.0, -1.0
        %v4025 = vsel %vm3961, 1.0, -1.0
        %v4026 = vsel %vm3962, 1.0, -1.0
        %v4027 = vsel %vm3963, 1.0, -1.0
        %v4028 = vsel %vm3964, 1.0, -1.0
        %v4029 = vsel %vm3965, 1.0, -1.0
        %v4030 = vsel %vm3966, 1.0, -1.0
        %v4031 = vsel %vm3967, 1.0, -1.0
        %v4032 = vsel %vm3968, 1.0, -1.0
        %v4033 = vsel %vm3969, 1.0, -1.0
        %v4034 = vsel %vm3970, 1.0, -1.0
        %v4035 = vsel %vm3971, 1.0, -1.0
        %v4036 = vsel %vm3972, 1.0, -1.0
        %v4037 = vsel %vm3973, 1.0, -1.0
        %v4038 = vsel %vm3974, 1.0, -1.0
        %v4039 = vsel %vm3975, 1.0, -1.0
        %v4040 = vsel %vm3976, 1.0, -1.0
        %v4041 = vsel %vm3977, 1.0, -1.0
        %v4042 = vsel %vm3978, 1.0, -1.0
        %v4043 = vsel %vm3979, 1.0, -1.0
        %v4044 = vsel %vm3980, 1.0, -1.0
        %v4045 = vsel %vm3981, 1.0, -1.0
        %v4046 = vsel %vm3982, 1.0, -1.0
        %v4047 = vsel %vm3983, 1.0, -1.0
        %v4048 = vsel %vm3984, 1.0, -1.0
        %v4049 = vsel %vm3985, 1.0, -1.0
        %v4050 = vsel %vm3986, 1.0, -1.0
        %v4051 = vsel %vm3987, 1.0, -1.0
        %v4052 = vsel %vm3988, 1.0, -1.0
        %v4053 = vsel %vm3989, 1.0, -1.0
        %v4054 = vand.u32 2147483647, %v3862
        %v4055 = vand.u32 2147483647, %v3863
        %v4056 = vand.u32 2147483647, %v3864
        %v4057 = vand.u32 2147483647, %v3865
        %v4058 = vand.u32 2147483647, %v3866
        %v4059 = vand.u32 2147483647, %v3867
        %v4060 = vand.u32 2147483647, %v3868
        %v4061 = vand.u32 2147483647, %v3869
        %v4062 = vand.u32 2147483647, %v3870
        %v4063 = vand.u32 2147483647, %v3871
        %v4064 = vand.u32 2147483647, %v3872
        %v4065 = vand.u32 2147483647, %v3873
        %v4066 = vand.u32 2147483647, %v3874
        %v4067 = vand.u32 2147483647, %v3875
        %v4068 = vand.u32 2147483647, %v3876
        %v4069 = vand.u32 2147483647, %v3877
        %v4070 = vand.u32 2147483647, %v3878
        %v4071 = vand.u32 2147483647, %v3879
        %v4072 = vand.u32 2147483647, %v3880
        %v4073 = vand.u32 2147483647, %v3881
        %v4074 = vand.u32 2147483647, %v3882
        %v4075 = vand.u32 2147483647, %v3883
        %v4076 = vand.u32 2147483647, %v3884
        %v4077 = vand.u32 2147483647, %v3885
        %v4078 = vand.u32 2147483647, %v3886
        %v4079 = vand.u32 2147483647, %v3887
        %v4080 = vand.u32 2147483647, %v3888
        %v4081 = vand.u32 2147483647, %v3889
        %v4082 = vand.u32 2147483647, %v3890
        %v4083 = vand.u32 2147483647, %v3891
        %v4084 = vand.u32 2147483647, %v3892
        %v4085 = vand.u32 2147483647, %v3893
        %v4086 = vand.u32 2147483647, %v3894
        %v4087 = vand.u32 2147483647, %v3895
        %v4088 = vand.u32 2147483647, %v3896
        %v4089 = vand.u32 2147483647, %v3897
        %v4090 = vand.u32 2147483647, %v3898
        %v4091 = vand.u32 2147483647, %v3899
        %v4092 = vand.u32 2147483647, %v3900
        %v4093 = vand.u32 2147483647, %v3901
        %v4094 = vand.u32 2147483647, %v3902
        %v4095 = vand.u32 2147483647, %v3903
        %v4096 = vand.u32 2147483647, %v3904
        %v4097 = vand.u32 2147483647, %v3905
        %v4098 = vand.u32 2147483647, %v3906
        %v4099 = vand.u32 2147483647, %v3907
        %v4100 = vand.u32 2147483647, %v3908
        %v4101 = vand.u32 2147483647, %v3909
        %v4102 = vand.u32 2147483647, %v3910
        %v4103 = vand.u32 2147483647, %v3911
        %v4104 = vand.u32 2147483647, %v3912
        %v4105 = vand.u32 2147483647, %v3913
        %v4106 = vand.u32 2147483647, %v3914
        %v4107 = vand.u32 2147483647, %v3915
        %v4108 = vand.u32 2147483647, %v3916
        %v4109 = vand.u32 2147483647, %v3917
        %v4110 = vand.u32 2147483647, %v3918
        %v4111 = vand.u32 2147483647, %v3919
        %v4112 = vand.u32 2147483647, %v3920
        %v4113 = vand.u32 2147483647, %v3921
        %v4114 = vand.u32 2147483647, %v3922
        %v4115 = vand.u32 2147483647, %v3923
        %v4116 = vand.u32 2147483647, %v3924
        %v4117 = vand.u32 2147483647, %v3925
        %v4118 = vmul.f32 %v4054, 0.3275911
        %v4119 = vmul.f32 %v4055, 0.3275911
        %v4120 = vmul.f32 %v4056, 0.3275911
        %v4121 = vmul.f32 %v4057, 0.3275911
        %v4122 = vmul.f32 %v4058, 0.3275911
        %v4123 = vmul.f32 %v4059, 0.3275911
        %v4124 = vmul.f32 %v4060, 0.3275911
        %v4125 = vmul.f32 %v4061, 0.3275911
        %v4126 = vmul.f32 %v4062, 0.3275911
        %v4127 = vmul.f32 %v4063, 0.3275911
        %v4128 = vmul.f32 %v4064, 0.3275911
        %v4129 = vmul.f32 %v4065, 0.3275911
        %v4130 = vmul.f32 %v4066, 0.3275911
        %v4131 = vmul.f32 %v4067, 0.3275911
        %v4132 = vmul.f32 %v4068, 0.3275911
        %v4133 = vmul.f32 %v4069, 0.3275911
        %v4134 = vmul.f32 %v4070, 0.3275911
        %v4135 = vmul.f32 %v4071, 0.3275911
        %v4136 = vmul.f32 %v4072, 0.3275911
        %v4137 = vmul.f32 %v4073, 0.3275911
        %v4138 = vmul.f32 %v4074, 0.3275911
        %v4139 = vmul.f32 %v4075, 0.3275911
        %v4140 = vmul.f32 %v4076, 0.3275911
        %v4141 = vmul.f32 %v4077, 0.3275911
        %v4142 = vmul.f32 %v4078, 0.3275911
        %v4143 = vmul.f32 %v4079, 0.3275911
        %v4144 = vmul.f32 %v4080, 0.3275911
        %v4145 = vmul.f32 %v4081, 0.3275911
        %v4146 = vmul.f32 %v4082, 0.3275911
        %v4147 = vmul.f32 %v4083, 0.3275911
        %v4148 = vmul.f32 %v4084, 0.3275911
        %v4149 = vmul.f32 %v4085, 0.3275911
        %v4150 = vmul.f32 %v4086, 0.3275911
        %v4151 = vmul.f32 %v4087, 0.3275911
        %v4152 = vmul.f32 %v4088, 0.3275911
        %v4153 = vmul.f32 %v4089, 0.3275911
        %v4154 = vmul.f32 %v4090, 0.3275911
        %v4155 = vmul.f32 %v4091, 0.3275911
        %v4156 = vmul.f32 %v4092, 0.3275911
        %v4157 = vmul.f32 %v4093, 0.3275911
        %v4158 = vmul.f32 %v4094, 0.3275911
        %v4159 = vmul.f32 %v4095, 0.3275911
        %v4160 = vmul.f32 %v4096, 0.3275911
        %v4161 = vmul.f32 %v4097, 0.3275911
        %v4162 = vmul.f32 %v4098, 0.3275911
        %v4163 = vmul.f32 %v4099, 0.3275911
        %v4164 = vmul.f32 %v4100, 0.3275911
        %v4165 = vmul.f32 %v4101, 0.3275911
        %v4166 = vmul.f32 %v4102, 0.3275911
        %v4167 = vmul.f32 %v4103, 0.3275911
        %v4168 = vmul.f32 %v4104, 0.3275911
        %v4169 = vmul.f32 %v4105, 0.3275911
        %v4170 = vmul.f32 %v4106, 0.3275911
        %v4171 = vmul.f32 %v4107, 0.3275911
        %v4172 = vmul.f32 %v4108, 0.3275911
        %v4173 = vmul.f32 %v4109, 0.3275911
        %v4174 = vmul.f32 %v4110, 0.3275911
        %v4175 = vmul.f32 %v4111, 0.3275911
        %v4176 = vmul.f32 %v4112, 0.3275911
        %v4177 = vmul.f32 %v4113, 0.3275911
        %v4178 = vmul.f32 %v4114, 0.3275911
        %v4179 = vmul.f32 %v4115, 0.3275911
        %v4180 = vmul.f32 %v4116, 0.3275911
        %v4181 = vmul.f32 %v4117, 0.3275911
        %v4182 = vadd.f32 %v4118, 1.0
        %v4183 = vadd.f32 %v4119, 1.0
        %v4184 = vadd.f32 %v4120, 1.0
        %v4185 = vadd.f32 %v4121, 1.0
        %v4186 = vadd.f32 %v4122, 1.0
        %v4187 = vadd.f32 %v4123, 1.0
        %v4188 = vadd.f32 %v4124, 1.0
        %v4189 = vadd.f32 %v4125, 1.0
        %v4190 = vadd.f32 %v4126, 1.0
        %v4191 = vadd.f32 %v4127, 1.0
        %v4192 = vadd.f32 %v4128, 1.0
        %v4193 = vadd.f32 %v4129, 1.0
        %v4194 = vadd.f32 %v4130, 1.0
        %v4195 = vadd.f32 %v4131, 1.0
        %v4196 = vadd.f32 %v4132, 1.0
        %v4197 = vadd.f32 %v4133, 1.0
        %v4198 = vadd.f32 %v4134, 1.0
        %v4199 = vadd.f32 %v4135, 1.0
        %v4200 = vadd.f32 %v4136, 1.0
        %v4201 = vadd.f32 %v4137, 1.0
        %v4202 = vadd.f32 %v4138, 1.0
        %v4203 = vadd.f32 %v4139, 1.0
        %v4204 = vadd.f32 %v4140, 1.0
        %v4205 = vadd.f32 %v4141, 1.0
        %v4206 = vadd.f32 %v4142, 1.0
        %v4207 = vadd.f32 %v4143, 1.0
        %v4208 = vadd.f32 %v4144, 1.0
        %v4209 = vadd.f32 %v4145, 1.0
        %v4210 = vadd.f32 %v4146, 1.0
        %v4211 = vadd.f32 %v4147, 1.0
        %v4212 = vadd.f32 %v4148, 1.0
        %v4213 = vadd.f32 %v4149, 1.0
        %v4214 = vadd.f32 %v4150, 1.0
        %v4215 = vadd.f32 %v4151, 1.0
        %v4216 = vadd.f32 %v4152, 1.0
        %v4217 = vadd.f32 %v4153, 1.0
        %v4218 = vadd.f32 %v4154, 1.0
        %v4219 = vadd.f32 %v4155, 1.0
        %v4220 = vadd.f32 %v4156, 1.0
        %v4221 = vadd.f32 %v4157, 1.0
        %v4222 = vadd.f32 %v4158, 1.0
        %v4223 = vadd.f32 %v4159, 1.0
        %v4224 = vadd.f32 %v4160, 1.0
        %v4225 = vadd.f32 %v4161, 1.0
        %v4226 = vadd.f32 %v4162, 1.0
        %v4227 = vadd.f32 %v4163, 1.0
        %v4228 = vadd.f32 %v4164, 1.0
        %v4229 = vadd.f32 %v4165, 1.0
        %v4230 = vadd.f32 %v4166, 1.0
        %v4231 = vadd.f32 %v4167, 1.0
        %v4232 = vadd.f32 %v4168, 1.0
        %v4233 = vadd.f32 %v4169, 1.0
        %v4234 = vadd.f32 %v4170, 1.0
        %v4235 = vadd.f32 %v4171, 1.0
        %v4236 = vadd.f32 %v4172, 1.0
        %v4237 = vadd.f32 %v4173, 1.0
        %v4238 = vadd.f32 %v4174, 1.0
        %v4239 = vadd.f32 %v4175, 1.0
        %v4240 = vadd.f32 %v4176, 1.0
        %v4241 = vadd.f32 %v4177, 1.0
        %v4242 = vadd.f32 %v4178, 1.0
        %v4243 = vadd.f32 %v4179, 1.0
        %v4244 = vadd.f32 %v4180, 1.0
        %v4245 = vadd.f32 %v4181, 1.0
        %v4246 = vrcp.pop %v4182
        %v4247 = vmul.f32 1.0, %v4246
        %v4248 = vrcp.pop %v4183
        %v4249 = vmul.f32 1.0, %v4248
        %v4250 = vrcp.pop %v4184
        %v4251 = vmul.f32 1.0, %v4250
        %v4252 = vrcp.pop %v4185
        %v4253 = vmul.f32 1.0, %v4252
        %v4254 = vrcp.pop %v4186
        %v4255 = vmul.f32 1.0, %v4254
        %v4256 = vrcp.pop %v4187
        %v4257 = vmul.f32 1.0, %v4256
        %v4258 = vrcp.pop %v4188
        %v4259 = vmul.f32 1.0, %v4258
        %v4260 = vrcp.pop %v4189
        %v4261 = vmul.f32 1.0, %v4260
        %v4262 = vrcp.pop %v4190
        %v4263 = vmul.f32 1.0, %v4262
        %v4264 = vrcp.pop %v4191
        %v4265 = vmul.f32 1.0, %v4264
        %v4266 = vrcp.pop %v4192
        %v4267 = vmul.f32 1.0, %v4266
        %v4268 = vrcp.pop %v4193
        %v4269 = vmul.f32 1.0, %v4268
        %v4270 = vrcp.pop %v4194
        %v4271 = vmul.f32 1.0, %v4270
        %v4272 = vrcp.pop %v4195
        %v4273 = vmul.f32 1.0, %v4272
        %v4274 = vrcp.pop %v4196
        %v4275 = vmul.f32 1.0, %v4274
        %v4276 = vrcp.pop %v4197
        %v4277 = vmul.f32 1.0, %v4276
        %v4278 = vrcp.pop %v4198
        %v4279 = vmul.f32 1.0, %v4278
        %v4280 = vrcp.pop %v4199
        %v4281 = vmul.f32 1.0, %v4280
        %v4282 = vrcp.pop %v4200
        %v4283 = vmul.f32 1.0, %v4282
        %v4284 = vrcp.pop %v4201
        %v4285 = vmul.f32 1.0, %v4284
        %v4286 = vrcp.pop %v4202
        %v4287 = vmul.f32 1.0, %v4286
        %v4288 = vrcp.pop %v4203
        %v4289 = vmul.f32 1.0, %v4288
        %v4290 = vrcp.pop %v4204
        %v4291 = vmul.f32 1.0, %v4290
        %v4292 = vrcp.pop %v4205
        %v4293 = vmul.f32 1.0, %v4292
        %v4294 = vrcp.pop %v4206
        %v4295 = vmul.f32 1.0, %v4294
        %v4296 = vrcp.pop %v4207
        %v4297 = vmul.f32 1.0, %v4296
        %v4298 = vrcp.pop %v4208
        %v4299 = vmul.f32 1.0, %v4298
        %v4300 = vrcp.pop %v4209
        %v4301 = vmul.f32 1.0, %v4300
        %v4302 = vrcp.pop %v4210
        %v4303 = vmul.f32 1.0, %v4302
        %v4304 = vrcp.pop %v4211
        %v4305 = vmul.f32 1.0, %v4304
        %v4306 = vrcp.pop %v4212
        %v4307 = vmul.f32 1.0, %v4306
        %v4308 = vrcp.pop %v4213
        %v4309 = vmul.f32 1.0, %v4308
        %v4310 = vrcp.pop %v4214
        %v4311 = vmul.f32 1.0, %v4310
        %v4312 = vrcp.pop %v4215
        %v4313 = vmul.f32 1.0, %v4312
        %v4314 = vrcp.pop %v4216
        %v4315 = vmul.f32 1.0, %v4314
        %v4316 = vrcp.pop %v4217
        %v4317 = vmul.f32 1.0, %v4316
        %v4318 = vrcp.pop %v4218
        %v4319 = vmul.f32 1.0, %v4318
        %v4320 = vrcp.pop %v4219
        %v4321 = vmul.f32 1.0, %v4320
        %v4322 = vrcp.pop %v4220
        %v4323 = vmul.f32 1.0, %v4322
        %v4324 = vrcp.pop %v4221
        %v4325 = vmul.f32 1.0, %v4324
        %v4326 = vrcp.pop %v4222
        %v4327 = vmul.f32 1.0, %v4326
        %v4328 = vrcp.pop %v4223
        %v4329 = vmul.f32 1.0, %v4328
        %v4330 = vrcp.pop %v4224
        %v4331 = vmul.f32 1.0, %v4330
        %v4332 = vrcp.pop %v4225
        %v4333 = vmul.f32 1.0, %v4332
        %v4334 = vrcp.pop %v4226
        %v4335 = vmul.f32 1.0, %v4334
        %v4336 = vrcp.pop %v4227
        %v4337 = vmul.f32 1.0, %v4336
        %v4338 = vrcp.pop %v4228
        %v4339 = vmul.f32 1.0, %v4338
        %v4340 = vrcp.pop %v4229
        %v4341 = vmul.f32 1.0, %v4340
        %v4342 = vrcp.pop %v4230
        %v4343 = vmul.f32 1.0, %v4342
        %v4344 = vrcp.pop %v4231
        %v4345 = vmul.f32 1.0, %v4344
        %v4346 = vrcp.pop %v4232
        %v4347 = vmul.f32 1.0, %v4346
        %v4348 = vrcp.pop %v4233
        %v4349 = vmul.f32 1.0, %v4348
        %v4350 = vrcp.pop %v4234
        %v4351 = vmul.f32 1.0, %v4350
        %v4352 = vrcp.pop %v4235
        %v4353 = vmul.f32 1.0, %v4352
        %v4354 = vrcp.pop %v4236
        %v4355 = vmul.f32 1.0, %v4354
        %v4356 = vrcp.pop %v4237
        %v4357 = vmul.f32 1.0, %v4356
        %v4358 = vrcp.pop %v4238
        %v4359 = vmul.f32 1.0, %v4358
        %v4360 = vrcp.pop %v4239
        %v4361 = vmul.f32 1.0, %v4360
        %v4362 = vrcp.pop %v4240
        %v4363 = vmul.f32 1.0, %v4362
        %v4364 = vrcp.pop %v4241
        %v4365 = vmul.f32 1.0, %v4364
        %v4366 = vrcp.pop %v4242
        %v4367 = vmul.f32 1.0, %v4366
        %v4368 = vrcp.pop %v4243
        %v4369 = vmul.f32 1.0, %v4368
        %v4370 = vrcp.pop %v4244
        %v4371 = vmul.f32 1.0, %v4370
        %v4372 = vrcp.pop %v4245
        %v4373 = vmul.f32 1.0, %v4372
        %v4374 = vmul.f32 %v4247, 1.0614054
        %v4375 = vmul.f32 %v4249, 1.0614054
        %v4376 = vmul.f32 %v4251, 1.0614054
        %v4377 = vmul.f32 %v4253, 1.0614054
        %v4378 = vmul.f32 %v4255, 1.0614054
        %v4379 = vmul.f32 %v4257, 1.0614054
        %v4380 = vmul.f32 %v4259, 1.0614054
        %v4381 = vmul.f32 %v4261, 1.0614054
        %v4382 = vmul.f32 %v4263, 1.0614054
        %v4383 = vmul.f32 %v4265, 1.0614054
        %v4384 = vmul.f32 %v4267, 1.0614054
        %v4385 = vmul.f32 %v4269, 1.0614054
        %v4386 = vmul.f32 %v4271, 1.0614054
        %v4387 = vmul.f32 %v4273, 1.0614054
        %v4388 = vmul.f32 %v4275, 1.0614054
        %v4389 = vmul.f32 %v4277, 1.0614054
        %v4390 = vmul.f32 %v4279, 1.0614054
        %v4391 = vmul.f32 %v4281, 1.0614054
        %v4392 = vmul.f32 %v4283, 1.0614054
        %v4393 = vmul.f32 %v4285, 1.0614054
        %v4394 = vmul.f32 %v4287, 1.0614054
        %v4395 = vmul.f32 %v4289, 1.0614054
        %v4396 = vmul.f32 %v4291, 1.0614054
        %v4397 = vmul.f32 %v4293, 1.0614054
        %v4398 = vmul.f32 %v4295, 1.0614054
        %v4399 = vmul.f32 %v4297, 1.0614054
        %v4400 = vmul.f32 %v4299, 1.0614054
        %v4401 = vmul.f32 %v4301, 1.0614054
        %v4402 = vmul.f32 %v4303, 1.0614054
        %v4403 = vmul.f32 %v4305, 1.0614054
        %v4404 = vmul.f32 %v4307, 1.0614054
        %v4405 = vmul.f32 %v4309, 1.0614054
        %v4406 = vmul.f32 %v4311, 1.0614054
        %v4407 = vmul.f32 %v4313, 1.0614054
        %v4408 = vmul.f32 %v4315, 1.0614054
        %v4409 = vmul.f32 %v4317, 1.0614054
        %v4410 = vmul.f32 %v4319, 1.0614054
        %v4411 = vmul.f32 %v4321, 1.0614054
        %v4412 = vmul.f32 %v4323, 1.0614054
        %v4413 = vmul.f32 %v4325, 1.0614054
        %v4414 = vmul.f32 %v4327, 1.0614054
        %v4415 = vmul.f32 %v4329, 1.0614054
        %v4416 = vmul.f32 %v4331, 1.0614054
        %v4417 = vmul.f32 %v4333, 1.0614054
        %v4418 = vmul.f32 %v4335, 1.0614054
        %v4419 = vmul.f32 %v4337, 1.0614054
        %v4420 = vmul.f32 %v4339, 1.0614054
        %v4421 = vmul.f32 %v4341, 1.0614054
        %v4422 = vmul.f32 %v4343, 1.0614054
        %v4423 = vmul.f32 %v4345, 1.0614054
        %v4424 = vmul.f32 %v4347, 1.0614054
        %v4425 = vmul.f32 %v4349, 1.0614054
        %v4426 = vmul.f32 %v4351, 1.0614054
        %v4427 = vmul.f32 %v4353, 1.0614054
        %v4428 = vmul.f32 %v4355, 1.0614054
        %v4429 = vmul.f32 %v4357, 1.0614054
        %v4430 = vmul.f32 %v4359, 1.0614054
        %v4431 = vmul.f32 %v4361, 1.0614054
        %v4432 = vmul.f32 %v4363, 1.0614054
        %v4433 = vmul.f32 %v4365, 1.0614054
        %v4434 = vmul.f32 %v4367, 1.0614054
        %v4435 = vmul.f32 %v4369, 1.0614054
        %v4436 = vmul.f32 %v4371, 1.0614054
        %v4437 = vmul.f32 %v4373, 1.0614054
        %v4438 = vadd.f32 %v4374, -1.4531521
        %v4439 = vadd.f32 %v4375, -1.4531521
        %v4440 = vadd.f32 %v4376, -1.4531521
        %v4441 = vadd.f32 %v4377, -1.4531521
        %v4442 = vadd.f32 %v4378, -1.4531521
        %v4443 = vadd.f32 %v4379, -1.4531521
        %v4444 = vadd.f32 %v4380, -1.4531521
        %v4445 = vadd.f32 %v4381, -1.4531521
        %v4446 = vadd.f32 %v4382, -1.4531521
        %v4447 = vadd.f32 %v4383, -1.4531521
        %v4448 = vadd.f32 %v4384, -1.4531521
        %v4449 = vadd.f32 %v4385, -1.4531521
        %v4450 = vadd.f32 %v4386, -1.4531521
        %v4451 = vadd.f32 %v4387, -1.4531521
        %v4452 = vadd.f32 %v4388, -1.4531521
        %v4453 = vadd.f32 %v4389, -1.4531521
        %v4454 = vadd.f32 %v4390, -1.4531521
        %v4455 = vadd.f32 %v4391, -1.4531521
        %v4456 = vadd.f32 %v4392, -1.4531521
        %v4457 = vadd.f32 %v4393, -1.4531521
        %v4458 = vadd.f32 %v4394, -1.4531521
        %v4459 = vadd.f32 %v4395, -1.4531521
        %v4460 = vadd.f32 %v4396, -1.4531521
        %v4461 = vadd.f32 %v4397, -1.4531521
        %v4462 = vadd.f32 %v4398, -1.4531521
        %v4463 = vadd.f32 %v4399, -1.4531521
        %v4464 = vadd.f32 %v4400, -1.4531521
        %v4465 = vadd.f32 %v4401, -1.4531521
        %v4466 = vadd.f32 %v4402, -1.4531521
        %v4467 = vadd.f32 %v4403, -1.4531521
        %v4468 = vadd.f32 %v4404, -1.4531521
        %v4469 = vadd.f32 %v4405, -1.4531521
        %v4470 = vadd.f32 %v4406, -1.4531521
        %v4471 = vadd.f32 %v4407, -1.4531521
        %v4472 = vadd.f32 %v4408, -1.4531521
        %v4473 = vadd.f32 %v4409, -1.4531521
        %v4474 = vadd.f32 %v4410, -1.4531521
        %v4475 = vadd.f32 %v4411, -1.4531521
        %v4476 = vadd.f32 %v4412, -1.4531521
        %v4477 = vadd.f32 %v4413, -1.4531521
        %v4478 = vadd.f32 %v4414, -1.4531521
        %v4479 = vadd.f32 %v4415, -1.4531521
        %v4480 = vadd.f32 %v4416, -1.4531521
        %v4481 = vadd.f32 %v4417, -1.4531521
        %v4482 = vadd.f32 %v4418, -1.4531521
        %v4483 = vadd.f32 %v4419, -1.4531521
        %v4484 = vadd.f32 %v4420, -1.4531521
        %v4485 = vadd.f32 %v4421, -1.4531521
        %v4486 = vadd.f32 %v4422, -1.4531521
        %v4487 = vadd.f32 %v4423, -1.4531521
        %v4488 = vadd.f32 %v4424, -1.4531521
        %v4489 = vadd.f32 %v4425, -1.4531521
        %v4490 = vadd.f32 %v4426, -1.4531521
        %v4491 = vadd.f32 %v4427, -1.4531521
        %v4492 = vadd.f32 %v4428, -1.4531521
        %v4493 = vadd.f32 %v4429, -1.4531521
        %v4494 = vadd.f32 %v4430, -1.4531521
        %v4495 = vadd.f32 %v4431, -1.4531521
        %v4496 = vadd.f32 %v4432, -1.4531521
        %v4497 = vadd.f32 %v4433, -1.4531521
        %v4498 = vadd.f32 %v4434, -1.4531521
        %v4499 = vadd.f32 %v4435, -1.4531521
        %v4500 = vadd.f32 %v4436, -1.4531521
        %v4501 = vadd.f32 %v4437, -1.4531521
        %v4502 = vmul.f32 %v4438, %v4247
        %v4503 = vmul.f32 %v4439, %v4249
        %v4504 = vmul.f32 %v4440, %v4251
        %v4505 = vmul.f32 %v4441, %v4253
        %v4506 = vmul.f32 %v4442, %v4255
        %v4507 = vmul.f32 %v4443, %v4257
        %v4508 = vmul.f32 %v4444, %v4259
        %v4509 = vmul.f32 %v4445, %v4261
        %v4510 = vmul.f32 %v4446, %v4263
        %v4511 = vmul.f32 %v4447, %v4265
        %v4512 = vmul.f32 %v4448, %v4267
        %v4513 = vmul.f32 %v4449, %v4269
        %v4514 = vmul.f32 %v4450, %v4271
        %v4515 = vmul.f32 %v4451, %v4273
        %v4516 = vmul.f32 %v4452, %v4275
        %v4517 = vmul.f32 %v4453, %v4277
        %v4518 = vmul.f32 %v4454, %v4279
        %v4519 = vmul.f32 %v4455, %v4281
        %v4520 = vmul.f32 %v4456, %v4283
        %v4521 = vmul.f32 %v4457, %v4285
        %v4522 = vmul.f32 %v4458, %v4287
        %v4523 = vmul.f32 %v4459, %v4289
        %v4524 = vmul.f32 %v4460, %v4291
        %v4525 = vmul.f32 %v4461, %v4293
        %v4526 = vmul.f32 %v4462, %v4295
        %v4527 = vmul.f32 %v4463, %v4297
        %v4528 = vmul.f32 %v4464, %v4299
        %v4529 = vmul.f32 %v4465, %v4301
        %v4530 = vmul.f32 %v4466, %v4303
        %v4531 = vmul.f32 %v4467, %v4305
        %v4532 = vmul.f32 %v4468, %v4307
        %v4533 = vmul.f32 %v4469, %v4309
        %v4534 = vmul.f32 %v4470, %v4311
        %v4535 = vmul.f32 %v4471, %v4313
        %v4536 = vmul.f32 %v4472, %v4315
        %v4537 = vmul.f32 %v4473, %v4317
        %v4538 = vmul.f32 %v4474, %v4319
        %v4539 = vmul.f32 %v4475, %v4321
        %v4540 = vmul.f32 %v4476, %v4323
        %v4541 = vmul.f32 %v4477, %v4325
        %v4542 = vmul.f32 %v4478, %v4327
        %v4543 = vmul.f32 %v4479, %v4329
        %v4544 = vmul.f32 %v4480, %v4331
        %v4545 = vmul.f32 %v4481, %v4333
        %v4546 = vmul.f32 %v4482, %v4335
        %v4547 = vmul.f32 %v4483, %v4337
        %v4548 = vmul.f32 %v4484, %v4339
        %v4549 = vmul.f32 %v4485, %v4341
        %v4550 = vmul.f32 %v4486, %v4343
        %v4551 = vmul.f32 %v4487, %v4345
        %v4552 = vmul.f32 %v4488, %v4347
        %v4553 = vmul.f32 %v4489, %v4349
        %v4554 = vmul.f32 %v4490, %v4351
        %v4555 = vmul.f32 %v4491, %v4353
        %v4556 = vmul.f32 %v4492, %v4355
        %v4557 = vmul.f32 %v4493, %v4357
        %v4558 = vmul.f32 %v4494, %v4359
        %v4559 = vmul.f32 %v4495, %v4361
        %v4560 = vmul.f32 %v4496, %v4363
        %v4561 = vmul.f32 %v4497, %v4365
        %v4562 = vmul.f32 %v4498, %v4367
        %v4563 = vmul.f32 %v4499, %v4369
        %v4564 = vmul.f32 %v4500, %v4371
        %v4565 = vmul.f32 %v4501, %v4373
        %v4566 = vadd.f32 %v4502, 1.4214138
        %v4567 = vadd.f32 %v4503, 1.4214138
        %v4568 = vadd.f32 %v4504, 1.4214138
        %v4569 = vadd.f32 %v4505, 1.4214138
        %v4570 = vadd.f32 %v4506, 1.4214138
        %v4571 = vadd.f32 %v4507, 1.4214138
        %v4572 = vadd.f32 %v4508, 1.4214138
        %v4573 = vadd.f32 %v4509, 1.4214138
        %v4574 = vadd.f32 %v4510, 1.4214138
        %v4575 = vadd.f32 %v4511, 1.4214138
        %v4576 = vadd.f32 %v4512, 1.4214138
        %v4577 = vadd.f32 %v4513, 1.4214138
        %v4578 = vadd.f32 %v4514, 1.4214138
        %v4579 = vadd.f32 %v4515, 1.4214138
        %v4580 = vadd.f32 %v4516, 1.4214138
        %v4581 = vadd.f32 %v4517, 1.4214138
        %v4582 = vadd.f32 %v4518, 1.4214138
        %v4583 = vadd.f32 %v4519, 1.4214138
        %v4584 = vadd.f32 %v4520, 1.4214138
        %v4585 = vadd.f32 %v4521, 1.4214138
        %v4586 = vadd.f32 %v4522, 1.4214138
        %v4587 = vadd.f32 %v4523, 1.4214138
        %v4588 = vadd.f32 %v4524, 1.4214138
        %v4589 = vadd.f32 %v4525, 1.4214138
        %v4590 = vadd.f32 %v4526, 1.4214138
        %v4591 = vadd.f32 %v4527, 1.4214138
        %v4592 = vadd.f32 %v4528, 1.4214138
        %v4593 = vadd.f32 %v4529, 1.4214138
        %v4594 = vadd.f32 %v4530, 1.4214138
        %v4595 = vadd.f32 %v4531, 1.4214138
        %v4596 = vadd.f32 %v4532, 1.4214138
        %v4597 = vadd.f32 %v4533, 1.4214138
        %v4598 = vadd.f32 %v4534, 1.4214138
        %v4599 = vadd.f32 %v4535, 1.4214138
        %v4600 = vadd.f32 %v4536, 1.4214138
        %v4601 = vadd.f32 %v4537, 1.4214138
        %v4602 = vadd.f32 %v4538, 1.4214138
        %v4603 = vadd.f32 %v4539, 1.4214138
        %v4604 = vadd.f32 %v4540, 1.4214138
        %v4605 = vadd.f32 %v4541, 1.4214138
        %v4606 = vadd.f32 %v4542, 1.4214138
        %v4607 = vadd.f32 %v4543, 1.4214138
        %v4608 = vadd.f32 %v4544, 1.4214138
        %v4609 = vadd.f32 %v4545, 1.4214138
        %v4610 = vadd.f32 %v4546, 1.4214138
        %v4611 = vadd.f32 %v4547, 1.4214138
        %v4612 = vadd.f32 %v4548, 1.4214138
        %v4613 = vadd.f32 %v4549, 1.4214138
        %v4614 = vadd.f32 %v4550, 1.4214138
        %v4615 = vadd.f32 %v4551, 1.4214138
        %v4616 = vadd.f32 %v4552, 1.4214138
        %v4617 = vadd.f32 %v4553, 1.4214138
        %v4618 = vadd.f32 %v4554, 1.4214138
        %v4619 = vadd.f32 %v4555, 1.4214138
        %v4620 = vadd.f32 %v4556, 1.4214138
        %v4621 = vadd.f32 %v4557, 1.4214138
        %v4622 = vadd.f32 %v4558, 1.4214138
        %v4623 = vadd.f32 %v4559, 1.4214138
        %v4624 = vadd.f32 %v4560, 1.4214138
        %v4625 = vadd.f32 %v4561, 1.4214138
        %v4626 = vadd.f32 %v4562, 1.4214138
        %v4627 = vadd.f32 %v4563, 1.4214138
        %v4628 = vadd.f32 %v4564, 1.4214138
        %v4629 = vadd.f32 %v4565, 1.4214138
        %v4630 = vmul.f32 %v4566, %v4247
        %v4631 = vmul.f32 %v4567, %v4249
        %v4632 = vmul.f32 %v4568, %v4251
        %v4633 = vmul.f32 %v4569, %v4253
        %v4634 = vmul.f32 %v4570, %v4255
        %v4635 = vmul.f32 %v4571, %v4257
        %v4636 = vmul.f32 %v4572, %v4259
        %v4637 = vmul.f32 %v4573, %v4261
        %v4638 = vmul.f32 %v4574, %v4263
        %v4639 = vmul.f32 %v4575, %v4265
        %v4640 = vmul.f32 %v4576, %v4267
        %v4641 = vmul.f32 %v4577, %v4269
        %v4642 = vmul.f32 %v4578, %v4271
        %v4643 = vmul.f32 %v4579, %v4273
        %v4644 = vmul.f32 %v4580, %v4275
        %v4645 = vmul.f32 %v4581, %v4277
        %v4646 = vmul.f32 %v4582, %v4279
        %v4647 = vmul.f32 %v4583, %v4281
        %v4648 = vmul.f32 %v4584, %v4283
        %v4649 = vmul.f32 %v4585, %v4285
        %v4650 = vmul.f32 %v4586, %v4287
        %v4651 = vmul.f32 %v4587, %v4289
        %v4652 = vmul.f32 %v4588, %v4291
        %v4653 = vmul.f32 %v4589, %v4293
        %v4654 = vmul.f32 %v4590, %v4295
        %v4655 = vmul.f32 %v4591, %v4297
        %v4656 = vmul.f32 %v4592, %v4299
        %v4657 = vmul.f32 %v4593, %v4301
        %v4658 = vmul.f32 %v4594, %v4303
        %v4659 = vmul.f32 %v4595, %v4305
        %v4660 = vmul.f32 %v4596, %v4307
        %v4661 = vmul.f32 %v4597, %v4309
        %v4662 = vmul.f32 %v4598, %v4311
        %v4663 = vmul.f32 %v4599, %v4313
        %v4664 = vmul.f32 %v4600, %v4315
        %v4665 = vmul.f32 %v4601, %v4317
        %v4666 = vmul.f32 %v4602, %v4319
        %v4667 = vmul.f32 %v4603, %v4321
        %v4668 = vmul.f32 %v4604, %v4323
        %v4669 = vmul.f32 %v4605, %v4325
        %v4670 = vmul.f32 %v4606, %v4327
        %v4671 = vmul.f32 %v4607, %v4329
        %v4672 = vmul.f32 %v4608, %v4331
        %v4673 = vmul.f32 %v4609, %v4333
        %v4674 = vmul.f32 %v4610, %v4335
        %v4675 = vmul.f32 %v4611, %v4337
        %v4676 = vmul.f32 %v4612, %v4339
        %v4677 = vmul.f32 %v4613, %v4341
        %v4678 = vmul.f32 %v4614, %v4343
        %v4679 = vmul.f32 %v4615, %v4345
        %v4680 = vmul.f32 %v4616, %v4347
        %v4681 = vmul.f32 %v4617, %v4349
        %v4682 = vmul.f32 %v4618, %v4351
        %v4683 = vmul.f32 %v4619, %v4353
        %v4684 = vmul.f32 %v4620, %v4355
        %v4685 = vmul.f32 %v4621, %v4357
        %v4686 = vmul.f32 %v4622, %v4359
        %v4687 = vmul.f32 %v4623, %v4361
        %v4688 = vmul.f32 %v4624, %v4363
        %v4689 = vmul.f32 %v4625, %v4365
        %v4690 = vmul.f32 %v4626, %v4367
        %v4691 = vmul.f32 %v4627, %v4369
        %v4692 = vmul.f32 %v4628, %v4371
        %v4693 = vmul.f32 %v4629, %v4373
        %v4694 = vadd.f32 %v4630, -0.28449672
        %v4695 = vadd.f32 %v4631, -0.28449672
        %v4696 = vadd.f32 %v4632, -0.28449672
        %v4697 = vadd.f32 %v4633, -0.28449672
        %v4698 = vadd.f32 %v4634, -0.28449672
        %v4699 = vadd.f32 %v4635, -0.28449672
        %v4700 = vadd.f32 %v4636, -0.28449672
        %v4701 = vadd.f32 %v4637, -0.28449672
        %v4702 = vadd.f32 %v4638, -0.28449672
        %v4703 = vadd.f32 %v4639, -0.28449672
        %v4704 = vadd.f32 %v4640, -0.28449672
        %v4705 = vadd.f32 %v4641, -0.28449672
        %v4706 = vadd.f32 %v4642, -0.28449672
        %v4707 = vadd.f32 %v4643, -0.28449672
        %v4708 = vadd.f32 %v4644, -0.28449672
        %v4709 = vadd.f32 %v4645, -0.28449672
        %v4710 = vadd.f32 %v4646, -0.28449672
        %v4711 = vadd.f32 %v4647, -0.28449672
        %v4712 = vadd.f32 %v4648, -0.28449672
        %v4713 = vadd.f32 %v4649, -0.28449672
        %v4714 = vadd.f32 %v4650, -0.28449672
        %v4715 = vadd.f32 %v4651, -0.28449672
        %v4716 = vadd.f32 %v4652, -0.28449672
        %v4717 = vadd.f32 %v4653, -0.28449672
        %v4718 = vadd.f32 %v4654, -0.28449672
        %v4719 = vadd.f32 %v4655, -0.28449672
        %v4720 = vadd.f32 %v4656, -0.28449672
        %v4721 = vadd.f32 %v4657, -0.28449672
        %v4722 = vadd.f32 %v4658, -0.28449672
        %v4723 = vadd.f32 %v4659, -0.28449672
        %v4724 = vadd.f32 %v4660, -0.28449672
        %v4725 = vadd.f32 %v4661, -0.28449672
        %v4726 = vadd.f32 %v4662, -0.28449672
        %v4727 = vadd.f32 %v4663, -0.28449672
        %v4728 = vadd.f32 %v4664, -0.28449672
        %v4729 = vadd.f32 %v4665, -0.28449672
        %v4730 = vadd.f32 %v4666, -0.28449672
        %v4731 = vadd.f32 %v4667, -0.28449672
        %v4732 = vadd.f32 %v4668, -0.28449672
        %v4733 = vadd.f32 %v4669, -0.28449672
        %v4734 = vadd.f32 %v4670, -0.28449672
        %v4735 = vadd.f32 %v4671, -0.28449672
        %v4736 = vadd.f32 %v4672, -0.28449672
        %v4737 = vadd.f32 %v4673, -0.28449672
        %v4738 = vadd.f32 %v4674, -0.28449672
        %v4739 = vadd.f32 %v4675, -0.28449672
        %v4740 = vadd.f32 %v4676, -0.28449672
        %v4741 = vadd.f32 %v4677, -0.28449672
        %v4742 = vadd.f32 %v4678, -0.28449672
        %v4743 = vadd.f32 %v4679, -0.28449672
        %v4744 = vadd.f32 %v4680, -0.28449672
        %v4745 = vadd.f32 %v4681, -0.28449672
        %v4746 = vadd.f32 %v4682, -0.28449672
        %v4747 = vadd.f32 %v4683, -0.28449672
        %v4748 = vadd.f32 %v4684, -0.28449672
        %v4749 = vadd.f32 %v4685, -0.28449672
        %v4750 = vadd.f32 %v4686, -0.28449672
        %v4751 = vadd.f32 %v4687, -0.28449672
        %v4752 = vadd.f32 %v4688, -0.28449672
        %v4753 = vadd.f32 %v4689, -0.28449672
        %v4754 = vadd.f32 %v4690, -0.28449672
        %v4755 = vadd.f32 %v4691, -0.28449672
        %v4756 = vadd.f32 %v4692, -0.28449672
        %v4757 = vadd.f32 %v4693, -0.28449672
        %v4758 = vmul.f32 %v4694, %v4247
        %v4759 = vmul.f32 %v4695, %v4249
        %v4760 = vmul.f32 %v4696, %v4251
        %v4761 = vmul.f32 %v4697, %v4253
        %v4762 = vmul.f32 %v4698, %v4255
        %v4763 = vmul.f32 %v4699, %v4257
        %v4764 = vmul.f32 %v4700, %v4259
        %v4765 = vmul.f32 %v4701, %v4261
        %v4766 = vmul.f32 %v4702, %v4263
        %v4767 = vmul.f32 %v4703, %v4265
        %v4768 = vmul.f32 %v4704, %v4267
        %v4769 = vmul.f32 %v4705, %v4269
        %v4770 = vmul.f32 %v4706, %v4271
        %v4771 = vmul.f32 %v4707, %v4273
        %v4772 = vmul.f32 %v4708, %v4275
        %v4773 = vmul.f32 %v4709, %v4277
        %v4774 = vmul.f32 %v4710, %v4279
        %v4775 = vmul.f32 %v4711, %v4281
        %v4776 = vmul.f32 %v4712, %v4283
        %v4777 = vmul.f32 %v4713, %v4285
        %v4778 = vmul.f32 %v4714, %v4287
        %v4779 = vmul.f32 %v4715, %v4289
        %v4780 = vmul.f32 %v4716, %v4291
        %v4781 = vmul.f32 %v4717, %v4293
        %v4782 = vmul.f32 %v4718, %v4295
        %v4783 = vmul.f32 %v4719, %v4297
        %v4784 = vmul.f32 %v4720, %v4299
        %v4785 = vmul.f32 %v4721, %v4301
        %v4786 = vmul.f32 %v4722, %v4303
        %v4787 = vmul.f32 %v4723, %v4305
        %v4788 = vmul.f32 %v4724, %v4307
        %v4789 = vmul.f32 %v4725, %v4309
        %v4790 = vmul.f32 %v4726, %v4311
        %v4791 = vmul.f32 %v4727, %v4313
        %v4792 = vmul.f32 %v4728, %v4315
        %v4793 = vmul.f32 %v4729, %v4317
        %v4794 = vmul.f32 %v4730, %v4319
        %v4795 = vmul.f32 %v4731, %v4321
        %v4796 = vmul.f32 %v4732, %v4323
        %v4797 = vmul.f32 %v4733, %v4325
        %v4798 = vmul.f32 %v4734, %v4327
        %v4799 = vmul.f32 %v4735, %v4329
        %v4800 = vmul.f32 %v4736, %v4331
        %v4801 = vmul.f32 %v4737, %v4333
        %v4802 = vmul.f32 %v4738, %v4335
        %v4803 = vmul.f32 %v4739, %v4337
        %v4804 = vmul.f32 %v4740, %v4339
        %v4805 = vmul.f32 %v4741, %v4341
        %v4806 = vmul.f32 %v4742, %v4343
        %v4807 = vmul.f32 %v4743, %v4345
        %v4808 = vmul.f32 %v4744, %v4347
        %v4809 = vmul.f32 %v4745, %v4349
        %v4810 = vmul.f32 %v4746, %v4351
        %v4811 = vmul.f32 %v4747, %v4353
        %v4812 = vmul.f32 %v4748, %v4355
        %v4813 = vmul.f32 %v4749, %v4357
        %v4814 = vmul.f32 %v4750, %v4359
        %v4815 = vmul.f32 %v4751, %v4361
        %v4816 = vmul.f32 %v4752, %v4363
        %v4817 = vmul.f32 %v4753, %v4365
        %v4818 = vmul.f32 %v4754, %v4367
        %v4819 = vmul.f32 %v4755, %v4369
        %v4820 = vmul.f32 %v4756, %v4371
        %v4821 = vmul.f32 %v4757, %v4373
        %v4822 = vadd.f32 %v4758, 0.2548296
        %v4823 = vadd.f32 %v4759, 0.2548296
        %v4824 = vadd.f32 %v4760, 0.2548296
        %v4825 = vadd.f32 %v4761, 0.2548296
        %v4826 = vadd.f32 %v4762, 0.2548296
        %v4827 = vadd.f32 %v4763, 0.2548296
        %v4828 = vadd.f32 %v4764, 0.2548296
        %v4829 = vadd.f32 %v4765, 0.2548296
        %v4830 = vadd.f32 %v4766, 0.2548296
        %v4831 = vadd.f32 %v4767, 0.2548296
        %v4832 = vadd.f32 %v4768, 0.2548296
        %v4833 = vadd.f32 %v4769, 0.2548296
        %v4834 = vadd.f32 %v4770, 0.2548296
        %v4835 = vadd.f32 %v4771, 0.2548296
        %v4836 = vadd.f32 %v4772, 0.2548296
        %v4837 = vadd.f32 %v4773, 0.2548296
        %v4838 = vadd.f32 %v4774, 0.2548296
        %v4839 = vadd.f32 %v4775, 0.2548296
        %v4840 = vadd.f32 %v4776, 0.2548296
        %v4841 = vadd.f32 %v4777, 0.2548296
        %v4842 = vadd.f32 %v4778, 0.2548296
        %v4843 = vadd.f32 %v4779, 0.2548296
        %v4844 = vadd.f32 %v4780, 0.2548296
        %v4845 = vadd.f32 %v4781, 0.2548296
        %v4846 = vadd.f32 %v4782, 0.2548296
        %v4847 = vadd.f32 %v4783, 0.2548296
        %v4848 = vadd.f32 %v4784, 0.2548296
        %v4849 = vadd.f32 %v4785, 0.2548296
        %v4850 = vadd.f32 %v4786, 0.2548296
        %v4851 = vadd.f32 %v4787, 0.2548296
        %v4852 = vadd.f32 %v4788, 0.2548296
        %v4853 = vadd.f32 %v4789, 0.2548296
        %v4854 = vadd.f32 %v4790, 0.2548296
        %v4855 = vadd.f32 %v4791, 0.2548296
        %v4856 = vadd.f32 %v4792, 0.2548296
        %v4857 = vadd.f32 %v4793, 0.2548296
        %v4858 = vadd.f32 %v4794, 0.2548296
        %v4859 = vadd.f32 %v4795, 0.2548296
        %v4860 = vadd.f32 %v4796, 0.2548296
        %v4861 = vadd.f32 %v4797, 0.2548296
        %v4862 = vadd.f32 %v4798, 0.2548296
        %v4863 = vadd.f32 %v4799, 0.2548296
        %v4864 = vadd.f32 %v4800, 0.2548296
        %v4865 = vadd.f32 %v4801, 0.2548296
        %v4866 = vadd.f32 %v4802, 0.2548296
        %v4867 = vadd.f32 %v4803, 0.2548296
        %v4868 = vadd.f32 %v4804, 0.2548296
        %v4869 = vadd.f32 %v4805, 0.2548296
        %v4870 = vadd.f32 %v4806, 0.2548296
        %v4871 = vadd.f32 %v4807, 0.2548296
        %v4872 = vadd.f32 %v4808, 0.2548296
        %v4873 = vadd.f32 %v4809, 0.2548296
        %v4874 = vadd.f32 %v4810, 0.2548296
        %v4875 = vadd.f32 %v4811, 0.2548296
        %v4876 = vadd.f32 %v4812, 0.2548296
        %v4877 = vadd.f32 %v4813, 0.2548296
        %v4878 = vadd.f32 %v4814, 0.2548296
        %v4879 = vadd.f32 %v4815, 0.2548296
        %v4880 = vadd.f32 %v4816, 0.2548296
        %v4881 = vadd.f32 %v4817, 0.2548296
        %v4882 = vadd.f32 %v4818, 0.2548296
        %v4883 = vadd.f32 %v4819, 0.2548296
        %v4884 = vadd.f32 %v4820, 0.2548296
        %v4885 = vadd.f32 %v4821, 0.2548296
        %v4886 = vmul.f32 %v4822, %v4247
        %v4887 = vmul.f32 %v4823, %v4249
        %v4888 = vmul.f32 %v4824, %v4251
        %v4889 = vmul.f32 %v4825, %v4253
        %v4890 = vmul.f32 %v4826, %v4255
        %v4891 = vmul.f32 %v4827, %v4257
        %v4892 = vmul.f32 %v4828, %v4259
        %v4893 = vmul.f32 %v4829, %v4261
        %v4894 = vmul.f32 %v4830, %v4263
        %v4895 = vmul.f32 %v4831, %v4265
        %v4896 = vmul.f32 %v4832, %v4267
        %v4897 = vmul.f32 %v4833, %v4269
        %v4898 = vmul.f32 %v4834, %v4271
        %v4899 = vmul.f32 %v4835, %v4273
        %v4900 = vmul.f32 %v4836, %v4275
        %v4901 = vmul.f32 %v4837, %v4277
        %v4902 = vmul.f32 %v4838, %v4279
        %v4903 = vmul.f32 %v4839, %v4281
        %v4904 = vmul.f32 %v4840, %v4283
        %v4905 = vmul.f32 %v4841, %v4285
        %v4906 = vmul.f32 %v4842, %v4287
        %v4907 = vmul.f32 %v4843, %v4289
        %v4908 = vmul.f32 %v4844, %v4291
        %v4909 = vmul.f32 %v4845, %v4293
        %v4910 = vmul.f32 %v4846, %v4295
        %v4911 = vmul.f32 %v4847, %v4297
        %v4912 = vmul.f32 %v4848, %v4299
        %v4913 = vmul.f32 %v4849, %v4301
        %v4914 = vmul.f32 %v4850, %v4303
        %v4915 = vmul.f32 %v4851, %v4305
        %v4916 = vmul.f32 %v4852, %v4307
        %v4917 = vmul.f32 %v4853, %v4309
        %v4918 = vmul.f32 %v4854, %v4311
        %v4919 = vmul.f32 %v4855, %v4313
        %v4920 = vmul.f32 %v4856, %v4315
        %v4921 = vmul.f32 %v4857, %v4317
        %v4922 = vmul.f32 %v4858, %v4319
        %v4923 = vmul.f32 %v4859, %v4321
        %v4924 = vmul.f32 %v4860, %v4323
        %v4925 = vmul.f32 %v4861, %v4325
        %v4926 = vmul.f32 %v4862, %v4327
        %v4927 = vmul.f32 %v4863, %v4329
        %v4928 = vmul.f32 %v4864, %v4331
        %v4929 = vmul.f32 %v4865, %v4333
        %v4930 = vmul.f32 %v4866, %v4335
        %v4931 = vmul.f32 %v4867, %v4337
        %v4932 = vmul.f32 %v4868, %v4339
        %v4933 = vmul.f32 %v4869, %v4341
        %v4934 = vmul.f32 %v4870, %v4343
        %v4935 = vmul.f32 %v4871, %v4345
        %v4936 = vmul.f32 %v4872, %v4347
        %v4937 = vmul.f32 %v4873, %v4349
        %v4938 = vmul.f32 %v4874, %v4351
        %v4939 = vmul.f32 %v4875, %v4353
        %v4940 = vmul.f32 %v4876, %v4355
        %v4941 = vmul.f32 %v4877, %v4357
        %v4942 = vmul.f32 %v4878, %v4359
        %v4943 = vmul.f32 %v4879, %v4361
        %v4944 = vmul.f32 %v4880, %v4363
        %v4945 = vmul.f32 %v4881, %v4365
        %v4946 = vmul.f32 %v4882, %v4367
        %v4947 = vmul.f32 %v4883, %v4369
        %v4948 = vmul.f32 %v4884, %v4371
        %v4949 = vmul.f32 %v4885, %v4373
        %v4950 = vsub.f32 0.0, %v4054
        %v4951 = vsub.f32 0.0, %v4055
        %v4952 = vsub.f32 0.0, %v4056
        %v4953 = vsub.f32 0.0, %v4057
        %v4954 = vsub.f32 0.0, %v4058
        %v4955 = vsub.f32 0.0, %v4059
        %v4956 = vsub.f32 0.0, %v4060
        %v4957 = vsub.f32 0.0, %v4061
        %v4958 = vsub.f32 0.0, %v4062
        %v4959 = vsub.f32 0.0, %v4063
        %v4960 = vsub.f32 0.0, %v4064
        %v4961 = vsub.f32 0.0, %v4065
        %v4962 = vsub.f32 0.0, %v4066
        %v4963 = vsub.f32 0.0, %v4067
        %v4964 = vsub.f32 0.0, %v4068
        %v4965 = vsub.f32 0.0, %v4069
        %v4966 = vsub.f32 0.0, %v4070
        %v4967 = vsub.f32 0.0, %v4071
        %v4968 = vsub.f32 0.0, %v4072
        %v4969 = vsub.f32 0.0, %v4073
        %v4970 = vsub.f32 0.0, %v4074
        %v4971 = vsub.f32 0.0, %v4075
        %v4972 = vsub.f32 0.0, %v4076
        %v4973 = vsub.f32 0.0, %v4077
        %v4974 = vsub.f32 0.0, %v4078
        %v4975 = vsub.f32 0.0, %v4079
        %v4976 = vsub.f32 0.0, %v4080
        %v4977 = vsub.f32 0.0, %v4081
        %v4978 = vsub.f32 0.0, %v4082
        %v4979 = vsub.f32 0.0, %v4083
        %v4980 = vsub.f32 0.0, %v4084
        %v4981 = vsub.f32 0.0, %v4085
        %v4982 = vsub.f32 0.0, %v4086
        %v4983 = vsub.f32 0.0, %v4087
        %v4984 = vsub.f32 0.0, %v4088
        %v4985 = vsub.f32 0.0, %v4089
        %v4986 = vsub.f32 0.0, %v4090
        %v4987 = vsub.f32 0.0, %v4091
        %v4988 = vsub.f32 0.0, %v4092
        %v4989 = vsub.f32 0.0, %v4093
        %v4990 = vsub.f32 0.0, %v4094
        %v4991 = vsub.f32 0.0, %v4095
        %v4992 = vsub.f32 0.0, %v4096
        %v4993 = vsub.f32 0.0, %v4097
        %v4994 = vsub.f32 0.0, %v4098
        %v4995 = vsub.f32 0.0, %v4099
        %v4996 = vsub.f32 0.0, %v4100
        %v4997 = vsub.f32 0.0, %v4101
        %v4998 = vsub.f32 0.0, %v4102
        %v4999 = vsub.f32 0.0, %v4103
        %v5000 = vsub.f32 0.0, %v4104
        %v5001 = vsub.f32 0.0, %v4105
        %v5002 = vsub.f32 0.0, %v4106
        %v5003 = vsub.f32 0.0, %v4107
        %v5004 = vsub.f32 0.0, %v4108
        %v5005 = vsub.f32 0.0, %v4109
        %v5006 = vsub.f32 0.0, %v4110
        %v5007 = vsub.f32 0.0, %v4111
        %v5008 = vsub.f32 0.0, %v4112
        %v5009 = vsub.f32 0.0, %v4113
        %v5010 = vsub.f32 0.0, %v4114
        %v5011 = vsub.f32 0.0, %v4115
        %v5012 = vsub.f32 0.0, %v4116
        %v5013 = vsub.f32 0.0, %v4117
        %v5014 = vmul.f32 %v4950, %v4054
        %v5015 = vmul.f32 %v4951, %v4055
        %v5016 = vmul.f32 %v4952, %v4056
        %v5017 = vmul.f32 %v4953, %v4057
        %v5018 = vmul.f32 %v4954, %v4058
        %v5019 = vmul.f32 %v4955, %v4059
        %v5020 = vmul.f32 %v4956, %v4060
        %v5021 = vmul.f32 %v4957, %v4061
        %v5022 = vmul.f32 %v4958, %v4062
        %v5023 = vmul.f32 %v4959, %v4063
        %v5024 = vmul.f32 %v4960, %v4064
        %v5025 = vmul.f32 %v4961, %v4065
        %v5026 = vmul.f32 %v4962, %v4066
        %v5027 = vmul.f32 %v4963, %v4067
        %v5028 = vmul.f32 %v4964, %v4068
        %v5029 = vmul.f32 %v4965, %v4069
        %v5030 = vmul.f32 %v4966, %v4070
        %v5031 = vmul.f32 %v4967, %v4071
        %v5032 = vmul.f32 %v4968, %v4072
        %v5033 = vmul.f32 %v4969, %v4073
        %v5034 = vmul.f32 %v4970, %v4074
        %v5035 = vmul.f32 %v4971, %v4075
        %v5036 = vmul.f32 %v4972, %v4076
        %v5037 = vmul.f32 %v4973, %v4077
        %v5038 = vmul.f32 %v4974, %v4078
        %v5039 = vmul.f32 %v4975, %v4079
        %v5040 = vmul.f32 %v4976, %v4080
        %v5041 = vmul.f32 %v4977, %v4081
        %v5042 = vmul.f32 %v4978, %v4082
        %v5043 = vmul.f32 %v4979, %v4083
        %v5044 = vmul.f32 %v4980, %v4084
        %v5045 = vmul.f32 %v4981, %v4085
        %v5046 = vmul.f32 %v4982, %v4086
        %v5047 = vmul.f32 %v4983, %v4087
        %v5048 = vmul.f32 %v4984, %v4088
        %v5049 = vmul.f32 %v4985, %v4089
        %v5050 = vmul.f32 %v4986, %v4090
        %v5051 = vmul.f32 %v4987, %v4091
        %v5052 = vmul.f32 %v4988, %v4092
        %v5053 = vmul.f32 %v4989, %v4093
        %v5054 = vmul.f32 %v4990, %v4094
        %v5055 = vmul.f32 %v4991, %v4095
        %v5056 = vmul.f32 %v4992, %v4096
        %v5057 = vmul.f32 %v4993, %v4097
        %v5058 = vmul.f32 %v4994, %v4098
        %v5059 = vmul.f32 %v4995, %v4099
        %v5060 = vmul.f32 %v4996, %v4100
        %v5061 = vmul.f32 %v4997, %v4101
        %v5062 = vmul.f32 %v4998, %v4102
        %v5063 = vmul.f32 %v4999, %v4103
        %v5064 = vmul.f32 %v5000, %v4104
        %v5065 = vmul.f32 %v5001, %v4105
        %v5066 = vmul.f32 %v5002, %v4106
        %v5067 = vmul.f32 %v5003, %v4107
        %v5068 = vmul.f32 %v5004, %v4108
        %v5069 = vmul.f32 %v5005, %v4109
        %v5070 = vmul.f32 %v5006, %v4110
        %v5071 = vmul.f32 %v5007, %v4111
        %v5072 = vmul.f32 %v5008, %v4112
        %v5073 = vmul.f32 %v5009, %v4113
        %v5074 = vmul.f32 %v5010, %v4114
        %v5075 = vmul.f32 %v5011, %v4115
        %v5076 = vmul.f32 %v5012, %v4116
        %v5077 = vmul.f32 %v5013, %v4117
        %v5078 = vmul.f32 %v5014, 1.442695
        %v5079 = vpow.pop %v5078
        %v5080 = vmul.f32 %v5015, 1.442695
        %v5081 = vpow.pop %v5080
        %v5082 = vmul.f32 %v5016, 1.442695
        %v5083 = vpow.pop %v5082
        %v5084 = vmul.f32 %v5017, 1.442695
        %v5085 = vpow.pop %v5084
        %v5086 = vmul.f32 %v5018, 1.442695
        %v5087 = vpow.pop %v5086
        %v5088 = vmul.f32 %v5019, 1.442695
        %v5089 = vpow.pop %v5088
        %v5090 = vmul.f32 %v5020, 1.442695
        %v5091 = vpow.pop %v5090
        %v5092 = vmul.f32 %v5021, 1.442695
        %v5093 = vpow.pop %v5092
        %v5094 = vmul.f32 %v5022, 1.442695
        %v5095 = vpow.pop %v5094
        %v5096 = vmul.f32 %v5023, 1.442695
        %v5097 = vpow.pop %v5096
        %v5098 = vmul.f32 %v5024, 1.442695
        %v5099 = vpow.pop %v5098
        %v5100 = vmul.f32 %v5025, 1.442695
        %v5101 = vpow.pop %v5100
        %v5102 = vmul.f32 %v5026, 1.442695
        %v5103 = vpow.pop %v5102
        %v5104 = vmul.f32 %v5027, 1.442695
        %v5105 = vpow.pop %v5104
        %v5106 = vmul.f32 %v5028, 1.442695
        %v5107 = vpow.pop %v5106
        %v5108 = vmul.f32 %v5029, 1.442695
        %v5109 = vpow.pop %v5108
        %v5110 = vmul.f32 %v5030, 1.442695
        %v5111 = vpow.pop %v5110
        %v5112 = vmul.f32 %v5031, 1.442695
        %v5113 = vpow.pop %v5112
        %v5114 = vmul.f32 %v5032, 1.442695
        %v5115 = vpow.pop %v5114
        %v5116 = vmul.f32 %v5033, 1.442695
        %v5117 = vpow.pop %v5116
        %v5118 = vmul.f32 %v5034, 1.442695
        %v5119 = vpow.pop %v5118
        %v5120 = vmul.f32 %v5035, 1.442695
        %v5121 = vpow.pop %v5120
        %v5122 = vmul.f32 %v5036, 1.442695
        %v5123 = vpow.pop %v5122
        %v5124 = vmul.f32 %v5037, 1.442695
        %v5125 = vpow.pop %v5124
        %v5126 = vmul.f32 %v5038, 1.442695
        %v5127 = vpow.pop %v5126
        %v5128 = vmul.f32 %v5039, 1.442695
        %v5129 = vpow.pop %v5128
        %v5130 = vmul.f32 %v5040, 1.442695
        %v5131 = vpow.pop %v5130
        %v5132 = vmul.f32 %v5041, 1.442695
        %v5133 = vpow.pop %v5132
        %v5134 = vmul.f32 %v5042, 1.442695
        %v5135 = vpow.pop %v5134
        %v5136 = vmul.f32 %v5043, 1.442695
        %v5137 = vpow.pop %v5136
        %v5138 = vmul.f32 %v5044, 1.442695
        %v5139 = vpow.pop %v5138
        %v5140 = vmul.f32 %v5045, 1.442695
        %v5141 = vpow.pop %v5140
        %v5142 = vmul.f32 %v5046, 1.442695
        %v5143 = vpow.pop %v5142
        %v5144 = vmul.f32 %v5047, 1.442695
        %v5145 = vpow.pop %v5144
        %v5146 = vmul.f32 %v5048, 1.442695
        %v5147 = vpow.pop %v5146
        %v5148 = vmul.f32 %v5049, 1.442695
        %v5149 = vpow.pop %v5148
        %v5150 = vmul.f32 %v5050, 1.442695
        %v5151 = vpow.pop %v5150
        %v5152 = vmul.f32 %v5051, 1.442695
        %v5153 = vpow.pop %v5152
        %v5154 = vmul.f32 %v5052, 1.442695
        %v5155 = vpow.pop %v5154
        %v5156 = vmul.f32 %v5053, 1.442695
        %v5157 = vpow.pop %v5156
        %v5158 = vmul.f32 %v5054, 1.442695
        %v5159 = vpow.pop %v5158
        %v5160 = vmul.f32 %v5055, 1.442695
        %v5161 = vpow.pop %v5160
        %v5162 = vmul.f32 %v5056, 1.442695
        %v5163 = vpow.pop %v5162
        %v5164 = vmul.f32 %v5057, 1.442695
        %v5165 = vpow.pop %v5164
        %v5166 = vmul.f32 %v5058, 1.442695
        %v5167 = vpow.pop %v5166
        %v5168 = vmul.f32 %v5059, 1.442695
        %v5169 = vpow.pop %v5168
        %v5170 = vmul.f32 %v5060, 1.442695
        %v5171 = vpow.pop %v5170
        %v5172 = vmul.f32 %v5061, 1.442695
        %v5173 = vpow.pop %v5172
        %v5174 = vmul.f32 %v5062, 1.442695
        %v5175 = vpow.pop %v5174
        %v5176 = vmul.f32 %v5063, 1.442695
        %v5177 = vpow.pop %v5176
        %v5178 = vmul.f32 %v5064, 1.442695
        %v5179 = vpow.pop %v5178
        %v5180 = vmul.f32 %v5065, 1.442695
        %v5181 = vpow.pop %v5180
        %v5182 = vmul.f32 %v5066, 1.442695
        %v5183 = vpow.pop %v5182
        %v5184 = vmul.f32 %v5067, 1.442695
        %v5185 = vpow.pop %v5184
        %v5186 = vmul.f32 %v5068, 1.442695
        %v5187 = vpow.pop %v5186
        %v5188 = vmul.f32 %v5069, 1.442695
        %v5189 = vpow.pop %v5188
        %v5190 = vmul.f32 %v5070, 1.442695
        %v5191 = vpow.pop %v5190
        %v5192 = vmul.f32 %v5071, 1.442695
        %v5193 = vpow.pop %v5192
        %v5194 = vmul.f32 %v5072, 1.442695
        %v5195 = vpow.pop %v5194
        %v5196 = vmul.f32 %v5073, 1.442695
        %v5197 = vpow.pop %v5196
        %v5198 = vmul.f32 %v5074, 1.442695
        %v5199 = vpow.pop %v5198
        %v5200 = vmul.f32 %v5075, 1.442695
        %v5201 = vpow.pop %v5200
        %v5202 = vmul.f32 %v5076, 1.442695
        %v5203 = vpow.pop %v5202
        %v5204 = vmul.f32 %v5077, 1.442695
        %v5205 = vpow.pop %v5204
        %v5206 = vmul.f32 %v4886, %v5079
        %v5207 = vmul.f32 %v4887, %v5081
        %v5208 = vmul.f32 %v4888, %v5083
        %v5209 = vmul.f32 %v4889, %v5085
        %v5210 = vmul.f32 %v4890, %v5087
        %v5211 = vmul.f32 %v4891, %v5089
        %v5212 = vmul.f32 %v4892, %v5091
        %v5213 = vmul.f32 %v4893, %v5093
        %v5214 = vmul.f32 %v4894, %v5095
        %v5215 = vmul.f32 %v4895, %v5097
        %v5216 = vmul.f32 %v4896, %v5099
        %v5217 = vmul.f32 %v4897, %v5101
        %v5218 = vmul.f32 %v4898, %v5103
        %v5219 = vmul.f32 %v4899, %v5105
        %v5220 = vmul.f32 %v4900, %v5107
        %v5221 = vmul.f32 %v4901, %v5109
        %v5222 = vmul.f32 %v4902, %v5111
        %v5223 = vmul.f32 %v4903, %v5113
        %v5224 = vmul.f32 %v4904, %v5115
        %v5225 = vmul.f32 %v4905, %v5117
        %v5226 = vmul.f32 %v4906, %v5119
        %v5227 = vmul.f32 %v4907, %v5121
        %v5228 = vmul.f32 %v4908, %v5123
        %v5229 = vmul.f32 %v4909, %v5125
        %v5230 = vmul.f32 %v4910, %v5127
        %v5231 = vmul.f32 %v4911, %v5129
        %v5232 = vmul.f32 %v4912, %v5131
        %v5233 = vmul.f32 %v4913, %v5133
        %v5234 = vmul.f32 %v4914, %v5135
        %v5235 = vmul.f32 %v4915, %v5137
        %v5236 = vmul.f32 %v4916, %v5139
        %v5237 = vmul.f32 %v4917, %v5141
        %v5238 = vmul.f32 %v4918, %v5143
        %v5239 = vmul.f32 %v4919, %v5145
        %v5240 = vmul.f32 %v4920, %v5147
        %v5241 = vmul.f32 %v4921, %v5149
        %v5242 = vmul.f32 %v4922, %v5151
        %v5243 = vmul.f32 %v4923, %v5153
        %v5244 = vmul.f32 %v4924, %v5155
        %v5245 = vmul.f32 %v4925, %v5157
        %v5246 = vmul.f32 %v4926, %v5159
        %v5247 = vmul.f32 %v4927, %v5161
        %v5248 = vmul.f32 %v4928, %v5163
        %v5249 = vmul.f32 %v4929, %v5165
        %v5250 = vmul.f32 %v4930, %v5167
        %v5251 = vmul.f32 %v4931, %v5169
        %v5252 = vmul.f32 %v4932, %v5171
        %v5253 = vmul.f32 %v4933, %v5173
        %v5254 = vmul.f32 %v4934, %v5175
        %v5255 = vmul.f32 %v4935, %v5177
        %v5256 = vmul.f32 %v4936, %v5179
        %v5257 = vmul.f32 %v4937, %v5181
        %v5258 = vmul.f32 %v4938, %v5183
        %v5259 = vmul.f32 %v4939, %v5185
        %v5260 = vmul.f32 %v4940, %v5187
        %v5261 = vmul.f32 %v4941, %v5189
        %v5262 = vmul.f32 %v4942, %v5191
        %v5263 = vmul.f32 %v4943, %v5193
        %v5264 = vmul.f32 %v4944, %v5195
        %v5265 = vmul.f32 %v4945, %v5197
        %v5266 = vmul.f32 %v4946, %v5199
        %v5267 = vmul.f32 %v4947, %v5201
        %v5268 = vmul.f32 %v4948, %v5203
        %v5269 = vmul.f32 %v4949, %v5205
        %v5270 = vsub.f32 1.0, %v5206
        %v5271 = vsub.f32 1.0, %v5207
        %v5272 = vsub.f32 1.0, %v5208
        %v5273 = vsub.f32 1.0, %v5209
        %v5274 = vsub.f32 1.0, %v5210
        %v5275 = vsub.f32 1.0, %v5211
        %v5276 = vsub.f32 1.0, %v5212
        %v5277 = vsub.f32 1.0, %v5213
        %v5278 = vsub.f32 1.0, %v5214
        %v5279 = vsub.f32 1.0, %v5215
        %v5280 = vsub.f32 1.0, %v5216
        %v5281 = vsub.f32 1.0, %v5217
        %v5282 = vsub.f32 1.0, %v5218
        %v5283 = vsub.f32 1.0, %v5219
        %v5284 = vsub.f32 1.0, %v5220
        %v5285 = vsub.f32 1.0, %v5221
        %v5286 = vsub.f32 1.0, %v5222
        %v5287 = vsub.f32 1.0, %v5223
        %v5288 = vsub.f32 1.0, %v5224
        %v5289 = vsub.f32 1.0, %v5225
        %v5290 = vsub.f32 1.0, %v5226
        %v5291 = vsub.f32 1.0, %v5227
        %v5292 = vsub.f32 1.0, %v5228
        %v5293 = vsub.f32 1.0, %v5229
        %v5294 = vsub.f32 1.0, %v5230
        %v5295 = vsub.f32 1.0, %v5231
        %v5296 = vsub.f32 1.0, %v5232
        %v5297 = vsub.f32 1.0, %v5233
        %v5298 = vsub.f32 1.0, %v5234
        %v5299 = vsub.f32 1.0, %v5235
        %v5300 = vsub.f32 1.0, %v5236
        %v5301 = vsub.f32 1.0, %v5237
        %v5302 = vsub.f32 1.0, %v5238
        %v5303 = vsub.f32 1.0, %v5239
        %v5304 = vsub.f32 1.0, %v5240
        %v5305 = vsub.f32 1.0, %v5241
        %v5306 = vsub.f32 1.0, %v5242
        %v5307 = vsub.f32 1.0, %v5243
        %v5308 = vsub.f32 1.0, %v5244
        %v5309 = vsub.f32 1.0, %v5245
        %v5310 = vsub.f32 1.0, %v5246
        %v5311 = vsub.f32 1.0, %v5247
        %v5312 = vsub.f32 1.0, %v5248
        %v5313 = vsub.f32 1.0, %v5249
        %v5314 = vsub.f32 1.0, %v5250
        %v5315 = vsub.f32 1.0, %v5251
        %v5316 = vsub.f32 1.0, %v5252
        %v5317 = vsub.f32 1.0, %v5253
        %v5318 = vsub.f32 1.0, %v5254
        %v5319 = vsub.f32 1.0, %v5255
        %v5320 = vsub.f32 1.0, %v5256
        %v5321 = vsub.f32 1.0, %v5257
        %v5322 = vsub.f32 1.0, %v5258
        %v5323 = vsub.f32 1.0, %v5259
        %v5324 = vsub.f32 1.0, %v5260
        %v5325 = vsub.f32 1.0, %v5261
        %v5326 = vsub.f32 1.0, %v5262
        %v5327 = vsub.f32 1.0, %v5263
        %v5328 = vsub.f32 1.0, %v5264
        %v5329 = vsub.f32 1.0, %v5265
        %v5330 = vsub.f32 1.0, %v5266
        %v5331 = vsub.f32 1.0, %v5267
        %v5332 = vsub.f32 1.0, %v5268
        %v5333 = vsub.f32 1.0, %v5269
        %v5334 = vmul.f32 %v3990, %v5270
        %v5335 = vmul.f32 %v3991, %v5271
        %v5336 = vmul.f32 %v3992, %v5272
        %v5337 = vmul.f32 %v3993, %v5273
        %v5338 = vmul.f32 %v3994, %v5274
        %v5339 = vmul.f32 %v3995, %v5275
        %v5340 = vmul.f32 %v3996, %v5276
        %v5341 = vmul.f32 %v3997, %v5277
        %v5342 = vmul.f32 %v3998, %v5278
        %v5343 = vmul.f32 %v3999, %v5279
        %v5344 = vmul.f32 %v4000, %v5280
        %v5345 = vmul.f32 %v4001, %v5281
        %v5346 = vmul.f32 %v4002, %v5282
        %v5347 = vmul.f32 %v4003, %v5283
        %v5348 = vmul.f32 %v4004, %v5284
        %v5349 = vmul.f32 %v4005, %v5285
        %v5350 = vmul.f32 %v4006, %v5286
        %v5351 = vmul.f32 %v4007, %v5287
        %v5352 = vmul.f32 %v4008, %v5288
        %v5353 = vmul.f32 %v4009, %v5289
        %v5354 = vmul.f32 %v4010, %v5290
        %v5355 = vmul.f32 %v4011, %v5291
        %v5356 = vmul.f32 %v4012, %v5292
        %v5357 = vmul.f32 %v4013, %v5293
        %v5358 = vmul.f32 %v4014, %v5294
        %v5359 = vmul.f32 %v4015, %v5295
        %v5360 = vmul.f32 %v4016, %v5296
        %v5361 = vmul.f32 %v4017, %v5297
        %v5362 = vmul.f32 %v4018, %v5298
        %v5363 = vmul.f32 %v4019, %v5299
        %v5364 = vmul.f32 %v4020, %v5300
        %v5365 = vmul.f32 %v4021, %v5301
        %v5366 = vmul.f32 %v4022, %v5302
        %v5367 = vmul.f32 %v4023, %v5303
        %v5368 = vmul.f32 %v4024, %v5304
        %v5369 = vmul.f32 %v4025, %v5305
        %v5370 = vmul.f32 %v4026, %v5306
        %v5371 = vmul.f32 %v4027, %v5307
        %v5372 = vmul.f32 %v4028, %v5308
        %v5373 = vmul.f32 %v4029, %v5309
        %v5374 = vmul.f32 %v4030, %v5310
        %v5375 = vmul.f32 %v4031, %v5311
        %v5376 = vmul.f32 %v4032, %v5312
        %v5377 = vmul.f32 %v4033, %v5313
        %v5378 = vmul.f32 %v4034, %v5314
        %v5379 = vmul.f32 %v4035, %v5315
        %v5380 = vmul.f32 %v4036, %v5316
        %v5381 = vmul.f32 %v4037, %v5317
        %v5382 = vmul.f32 %v4038, %v5318
        %v5383 = vmul.f32 %v4039, %v5319
        %v5384 = vmul.f32 %v4040, %v5320
        %v5385 = vmul.f32 %v4041, %v5321
        %v5386 = vmul.f32 %v4042, %v5322
        %v5387 = vmul.f32 %v4043, %v5323
        %v5388 = vmul.f32 %v4044, %v5324
        %v5389 = vmul.f32 %v4045, %v5325
        %v5390 = vmul.f32 %v4046, %v5326
        %v5391 = vmul.f32 %v4047, %v5327
        %v5392 = vmul.f32 %v4048, %v5328
        %v5393 = vmul.f32 %v4049, %v5329
        %v5394 = vmul.f32 %v4050, %v5330
        %v5395 = vmul.f32 %v4051, %v5331
        %v5396 = vmul.f32 %v4052, %v5332
        %v5397 = vmul.f32 %v4053, %v5333
        %v5398 = vadd.f32 %v5334, 1.0
        %v5399 = vadd.f32 %v5335, 1.0
        %v5400 = vadd.f32 %v5336, 1.0
        %v5401 = vadd.f32 %v5337, 1.0
        %v5402 = vadd.f32 %v5338, 1.0
        %v5403 = vadd.f32 %v5339, 1.0
        %v5404 = vadd.f32 %v5340, 1.0
        %v5405 = vadd.f32 %v5341, 1.0
        %v5406 = vadd.f32 %v5342, 1.0
        %v5407 = vadd.f32 %v5343, 1.0
        %v5408 = vadd.f32 %v5344, 1.0
        %v5409 = vadd.f32 %v5345, 1.0
        %v5410 = vadd.f32 %v5346, 1.0
        %v5411 = vadd.f32 %v5347, 1.0
        %v5412 = vadd.f32 %v5348, 1.0
        %v5413 = vadd.f32 %v5349, 1.0
        %v5414 = vadd.f32 %v5350, 1.0
        %v5415 = vadd.f32 %v5351, 1.0
        %v5416 = vadd.f32 %v5352, 1.0
        %v5417 = vadd.f32 %v5353, 1.0
        %v5418 = vadd.f32 %v5354, 1.0
        %v5419 = vadd.f32 %v5355, 1.0
        %v5420 = vadd.f32 %v5356, 1.0
        %v5421 = vadd.f32 %v5357, 1.0
        %v5422 = vadd.f32 %v5358, 1.0
        %v5423 = vadd.f32 %v5359, 1.0
        %v5424 = vadd.f32 %v5360, 1.0
        %v5425 = vadd.f32 %v5361, 1.0
        %v5426 = vadd.f32 %v5362, 1.0
        %v5427 = vadd.f32 %v5363, 1.0
        %v5428 = vadd.f32 %v5364, 1.0
        %v5429 = vadd.f32 %v5365, 1.0
        %v5430 = vadd.f32 %v5366, 1.0
        %v5431 = vadd.f32 %v5367, 1.0
        %v5432 = vadd.f32 %v5368, 1.0
        %v5433 = vadd.f32 %v5369, 1.0
        %v5434 = vadd.f32 %v5370, 1.0
        %v5435 = vadd.f32 %v5371, 1.0
        %v5436 = vadd.f32 %v5372, 1.0
        %v5437 = vadd.f32 %v5373, 1.0
        %v5438 = vadd.f32 %v5374, 1.0
        %v5439 = vadd.f32 %v5375, 1.0
        %v5440 = vadd.f32 %v5376, 1.0
        %v5441 = vadd.f32 %v5377, 1.0
        %v5442 = vadd.f32 %v5378, 1.0
        %v5443 = vadd.f32 %v5379, 1.0
        %v5444 = vadd.f32 %v5380, 1.0
        %v5445 = vadd.f32 %v5381, 1.0
        %v5446 = vadd.f32 %v5382, 1.0
        %v5447 = vadd.f32 %v5383, 1.0
        %v5448 = vadd.f32 %v5384, 1.0
        %v5449 = vadd.f32 %v5385, 1.0
        %v5450 = vadd.f32 %v5386, 1.0
        %v5451 = vadd.f32 %v5387, 1.0
        %v5452 = vadd.f32 %v5388, 1.0
        %v5453 = vadd.f32 %v5389, 1.0
        %v5454 = vadd.f32 %v5390, 1.0
        %v5455 = vadd.f32 %v5391, 1.0
        %v5456 = vadd.f32 %v5392, 1.0
        %v5457 = vadd.f32 %v5393, 1.0
        %v5458 = vadd.f32 %v5394, 1.0
        %v5459 = vadd.f32 %v5395, 1.0
        %v5460 = vadd.f32 %v5396, 1.0
        %v5461 = vadd.f32 %v5397, 1.0
        %v5462 = vmul.f32 %v3798, %v5398
        %v5463 = vmul.f32 %v3799, %v5399
        %v5464 = vmul.f32 %v3800, %v5400
        %v5465 = vmul.f32 %v3801, %v5401
        %v5466 = vmul.f32 %v3802, %v5402
        %v5467 = vmul.f32 %v3803, %v5403
        %v5468 = vmul.f32 %v3804, %v5404
        %v5469 = vmul.f32 %v3805, %v5405
        %v5470 = vmul.f32 %v3806, %v5406
        %v5471 = vmul.f32 %v3807, %v5407
        %v5472 = vmul.f32 %v3808, %v5408
        %v5473 = vmul.f32 %v3809, %v5409
        %v5474 = vmul.f32 %v3810, %v5410
        %v5475 = vmul.f32 %v3811, %v5411
        %v5476 = vmul.f32 %v3812, %v5412
        %v5477 = vmul.f32 %v3813, %v5413
        %v5478 = vmul.f32 %v3814, %v5414
        %v5479 = vmul.f32 %v3815, %v5415
        %v5480 = vmul.f32 %v3816, %v5416
        %v5481 = vmul.f32 %v3817, %v5417
        %v5482 = vmul.f32 %v3818, %v5418
        %v5483 = vmul.f32 %v3819, %v5419
        %v5484 = vmul.f32 %v3820, %v5420
        %v5485 = vmul.f32 %v3821, %v5421
        %v5486 = vmul.f32 %v3822, %v5422
        %v5487 = vmul.f32 %v3823, %v5423
        %v5488 = vmul.f32 %v3824, %v5424
        %v5489 = vmul.f32 %v3825, %v5425
        %v5490 = vmul.f32 %v3826, %v5426
        %v5491 = vmul.f32 %v3827, %v5427
        %v5492 = vmul.f32 %v3828, %v5428
        %v5493 = vmul.f32 %v3829, %v5429
        %v5494 = vmul.f32 %v3830, %v5430
        %v5495 = vmul.f32 %v3831, %v5431
        %v5496 = vmul.f32 %v3832, %v5432
        %v5497 = vmul.f32 %v3833, %v5433
        %v5498 = vmul.f32 %v3834, %v5434
        %v5499 = vmul.f32 %v3835, %v5435
        %v5500 = vmul.f32 %v3836, %v5436
        %v5501 = vmul.f32 %v3837, %v5437
        %v5502 = vmul.f32 %v3838, %v5438
        %v5503 = vmul.f32 %v3839, %v5439
        %v5504 = vmul.f32 %v3840, %v5440
        %v5505 = vmul.f32 %v3841, %v5441
        %v5506 = vmul.f32 %v3842, %v5442
        %v5507 = vmul.f32 %v3843, %v5443
        %v5508 = vmul.f32 %v3844, %v5444
        %v5509 = vmul.f32 %v3845, %v5445
        %v5510 = vmul.f32 %v3846, %v5446
        %v5511 = vmul.f32 %v3847, %v5447
        %v5512 = vmul.f32 %v3848, %v5448
        %v5513 = vmul.f32 %v3849, %v5449
        %v5514 = vmul.f32 %v3850, %v5450
        %v5515 = vmul.f32 %v3851, %v5451
        %v5516 = vmul.f32 %v3852, %v5452
        %v5517 = vmul.f32 %v3853, %v5453
        %v5518 = vmul.f32 %v3854, %v5454
        %v5519 = vmul.f32 %v3855, %v5455
        %v5520 = vmul.f32 %v3856, %v5456
        %v5521 = vmul.f32 %v3857, %v5457
        %v5522 = vmul.f32 %v3858, %v5458
        %v5523 = vmul.f32 %v3859, %v5459
        %v5524 = vmul.f32 %v3860, %v5460
        %v5525 = vmul.f32 %v3861, %v5461
        %v5526 = vpack.c.bf16 %v5464, %v5462
        %v5527 = vpack.c.bf16 %v5465, %v5463
        %v5528 = vpack.c.bf16 %v5468, %v5466
        %v5529 = vpack.c.bf16 %v5469, %v5467
        %v5530 = vpack.c.bf16 %v5472, %v5470
        %v5531 = vpack.c.bf16 %v5473, %v5471
        %v5532 = vpack.c.bf16 %v5476, %v5474
        %v5533 = vpack.c.bf16 %v5477, %v5475
        %v5534 = vpack.c.bf16 %v5480, %v5478
        %v5535 = vpack.c.bf16 %v5481, %v5479
        %v5536 = vpack.c.bf16 %v5484, %v5482
        %v5537 = vpack.c.bf16 %v5485, %v5483
        %v5538 = vpack.c.bf16 %v5488, %v5486
        %v5539 = vpack.c.bf16 %v5489, %v5487
        %v5540 = vpack.c.bf16 %v5492, %v5490
        %v5541 = vpack.c.bf16 %v5493, %v5491
        %v5542 = vpack.c.bf16 %v5496, %v5494
        %v5543 = vpack.c.bf16 %v5497, %v5495
        %v5544 = vpack.c.bf16 %v5500, %v5498
        %v5545 = vpack.c.bf16 %v5501, %v5499
        %v5546 = vpack.c.bf16 %v5504, %v5502
        %v5547 = vpack.c.bf16 %v5505, %v5503
        %v5548 = vpack.c.bf16 %v5508, %v5506
        %v5549 = vpack.c.bf16 %v5509, %v5507
        %v5550 = vpack.c.bf16 %v5512, %v5510
        %v5551 = vpack.c.bf16 %v5513, %v5511
        %v5552 = vpack.c.bf16 %v5516, %v5514
        %v5553 = vpack.c.bf16 %v5517, %v5515
        %v5554 = vpack.c.bf16 %v5520, %v5518
        %v5555 = vpack.c.bf16 %v5521, %v5519
        %v5556 = vpack.c.bf16 %v5524, %v5522
        %v5557 = vpack.c.bf16 %v5525, %v5523
        %v5558 = vld [vmem:[%s629] sm:$0xf]
        %v5559 = vld [vmem:[%s629 + $0x4] sm:$0xf]
        %v5560 = vld [vmem:[%s629 + $0x8] sm:$0xf]
        %v5561 = vld [vmem:[%s629 + $0xc] sm:$0xf]
        %v5562 = vld [vmem:[%s629 + $0x10] sm:$0xf]
        %v5563 = vld [vmem:[%s629 + $0x14] sm:$0xf]
        %v5564 = vld [vmem:[%s629 + $0x18] sm:$0xf]
        %v5565 = vld [vmem:[%s629 + $0x1c] sm:$0xf]
        %v5566 = vld [vmem:[%s629 + $0x20] sm:$0xf]
        %v5567 = vld [vmem:[%s629 + $0x24] sm:$0xf]
        %v5568 = vld [vmem:[%s629 + $0x28] sm:$0xf]
        %v5569 = vld [vmem:[%s629 + $0x2c] sm:$0xf]
        %v5570 = vld [vmem:[%s629 + $0x30] sm:$0xf]
        %v5571 = vld [vmem:[%s629 + $0x34] sm:$0xf]
        %v5572 = vld [vmem:[%s629 + $0x38] sm:$0xf]
        %v5573 = vld [vmem:[%s629 + $0x3c] sm:$0xf]
        %v5574 = vld [vmem:[%s629 + $0x40] sm:$0xf]
        %v5575 = vld [vmem:[%s629 + $0x44] sm:$0xf]
        %v5576 = vld [vmem:[%s629 + $0x48] sm:$0xf]
        %v5577 = vld [vmem:[%s629 + $0x4c] sm:$0xf]
        %v5578 = vld [vmem:[%s629 + $0x50] sm:$0xf]
        %v5579 = vld [vmem:[%s629 + $0x54] sm:$0xf]
        %v5580 = vld [vmem:[%s629 + $0x58] sm:$0xf]
        %v5581 = vld [vmem:[%s629 + $0x5c] sm:$0xf]
        %v5582 = vld [vmem:[%s629 + $0x60] sm:$0xf]
        %v5583 = vld [vmem:[%s629 + $0x64] sm:$0xf]
        %v5584 = vld [vmem:[%s629 + $0x68] sm:$0xf]
        %v5585 = vld [vmem:[%s629 + $0x6c] sm:$0xf]
        %v5586 = vld [vmem:[%s629 + $0x70] sm:$0xf]
        %v5587 = vld [vmem:[%s629 + $0x74] sm:$0xf]
        %v5588 = vld [vmem:[%s629 + $0x78] sm:$0xf]
        %v5589 = vld [vmem:[%s629 + $0x7c] sm:$0xf]
        %v5590 = vld [vmem:[%s753] sm:$0x1]
        %v5592 = vlaneseq
        %v5593 = vshrl.u32 %v5592, 7
        %v5594 = vsub.s32 0, %v5593
        %v5595 = vrot.slane %v5590, %v5594
        %v5629 = vunpack.c.l.b16 %v5558
        %v5630 = vunpack.c.l.b16 %v5559
        %v5631 = vunpack.c.l.b16 %v5560
        %v5632 = vunpack.c.l.b16 %v5561
        %v5633 = vunpack.c.l.b16 %v5562
        %v5634 = vunpack.c.l.b16 %v5563
        %v5635 = vunpack.c.l.b16 %v5564
        %v5636 = vunpack.c.l.b16 %v5565
        %v5637 = vunpack.c.l.b16 %v5566
        %v5638 = vunpack.c.l.b16 %v5567
        %v5639 = vunpack.c.l.b16 %v5568
        %v5640 = vunpack.c.l.b16 %v5569
        %v5641 = vunpack.c.l.b16 %v5570
        %v5642 = vunpack.c.l.b16 %v5571
        %v5643 = vunpack.c.l.b16 %v5572
        %v5644 = vunpack.c.l.b16 %v5573
        %v5645 = vunpack.c.l.b16 %v5574
        %v5646 = vunpack.c.l.b16 %v5575
        %v5647 = vunpack.c.l.b16 %v5576
        %v5648 = vunpack.c.l.b16 %v5577
        %v5649 = vunpack.c.l.b16 %v5578
        %v5650 = vunpack.c.l.b16 %v5579
        %v5651 = vunpack.c.l.b16 %v5580
        %v5652 = vunpack.c.l.b16 %v5581
        %v5653 = vunpack.c.l.b16 %v5582
        %v5654 = vunpack.c.l.b16 %v5583
        %v5655 = vunpack.c.l.b16 %v5584
        %v5656 = vunpack.c.l.b16 %v5585
        %v5657 = vunpack.c.l.b16 %v5586
        %v5658 = vunpack.c.l.b16 %v5587
        %v5659 = vunpack.c.l.b16 %v5588
        %v5660 = vunpack.c.l.b16 %v5589
        %v5661 = vpack.c.b16 %v5630, %v5629
        %v5662 = vpack.c.b16 %v5632, %v5631
        %v5663 = vpack.c.b16 %v5634, %v5633
        %v5664 = vpack.c.b16 %v5636, %v5635
        %v5665 = vpack.c.b16 %v5638, %v5637
        %v5666 = vpack.c.b16 %v5640, %v5639
        %v5667 = vpack.c.b16 %v5642, %v5641
        %v5668 = vpack.c.b16 %v5644, %v5643
        %v5669 = vpack.c.b16 %v5646, %v5645
        %v5670 = vpack.c.b16 %v5648, %v5647
        %v5671 = vpack.c.b16 %v5650, %v5649
        %v5672 = vpack.c.b16 %v5652, %v5651
        %v5673 = vpack.c.b16 %v5654, %v5653
        %v5674 = vpack.c.b16 %v5656, %v5655
        %v5675 = vpack.c.b16 %v5658, %v5657
        %v5676 = vpack.c.b16 %v5660, %v5659
        %5693 = vmatprep.subr.bf16.mxu0 0
        %5694 = vmatpush1.bf16.msra.mxu0 %v5661
        %5695 = vmatprep.subr.bf16.mxu0 0
        %5696 = vmatpush1.bf16.msra.mxu0 %v5662
        %5697 = vmatprep.subr.bf16.mxu0 0
        %5698 = vmatpush1.bf16.msra.mxu0 %v5663
        %5699 = vmatprep.subr.bf16.mxu0 0
        %5700 = vmatpush1.bf16.msra.mxu0 %v5664
        %5701 = vmatprep.subr.bf16.mxu0 0
        %5702 = vmatpush1.bf16.msra.mxu0 %v5665
        %5703 = vmatprep.subr.bf16.mxu0 0
        %5704 = vmatpush1.bf16.msra.mxu0 %v5666
        %5705 = vmatprep.subr.bf16.mxu0 0
        %5706 = vmatpush1.bf16.msra.mxu0 %v5667
        %5707 = vmatprep.subr.bf16.mxu0 0
        %5708 = vmatpush1.bf16.msra.mxu0 %v5668
        %5709 = vmatprep.subr.bf16.mxu0 0
        %5710 = vmatpush1.bf16.msra.mxu0 %v5669
        %5711 = vmatprep.subr.bf16.mxu0 0
        %5712 = vmatpush1.bf16.msra.mxu0 %v5670
        %5713 = vmatprep.subr.bf16.mxu0 0
        %5714 = vmatpush1.bf16.msra.mxu0 %v5671
        %5715 = vmatprep.subr.bf16.mxu0 0
        %5716 = vmatpush1.bf16.msra.mxu0 %v5672
        %5717 = vmatprep.subr.bf16.mxu0 0
        %5718 = vmatpush1.bf16.msra.mxu0 %v5673
        %5719 = vmatprep.subr.bf16.mxu0 0
        %5720 = vmatpush1.bf16.msra.mxu0 %v5674
        %5721 = vmatprep.subr.bf16.mxu0 0
        %5722 = vmatpush1.bf16.msra.mxu0 %v5675
        %5723 = vmatprep.subr.bf16.mxu0 0
        %5724 = vmatpush1.bf16.msra.mxu0 %v5676
        %5725 = vmatprep.mubr.bf16.mxu0 %v5527
        %5726 = vmatmul.mubr.bf16.gmra.mrb[0].mxu0 %v5526
        %v5727 = vpop.f32.mrb[0].mxu0
        %v5728 = vadd.f32 %v5595, %v5727
        %v5729 = vpop.f32.mrb[0].mxu0
        %v5730 = vpop.f32.mrb[0].mxu0
        %v5731 = vadd.f32 %v5595, %v5730
        %v5732 = vpop.f32.mrb[0].mxu0
        %5733 = vmatprep.mubr.bf16.mxu0 %v5529
        %5734 = vmatmul.mubr.bf16.gmra.mrb[0].mxu0 %v5528
        %v5735 = vpop.f32.mrb[0].mxu0
        %v5736 = vadd.f32 %v5595, %v5735
        %v5737 = vpop.f32.mrb[0].mxu0
        %v5738 = vpop.f32.mrb[0].mxu0
        %v5739 = vadd.f32 %v5595, %v5738
        %v5740 = vpop.f32.mrb[0].mxu0
        %5741 = vmatprep.mubr.bf16.mxu0 %v5531
        %5742 = vmatmul.mubr.bf16.gmra.mrb[0].mxu0 %v5530
        %v5743 = vpop.f32.mrb[0].mxu0
        %v5744 = vadd.f32 %v5595, %v5743
        %v5745 = vpop.f32.mrb[0].mxu0
        %v5746 = vpop.f32.mrb[0].mxu0
        %v5747 = vadd.f32 %v5595, %v5746
        %v5748 = vpop.f32.mrb[0].mxu0
        %5749 = vmatprep.mubr.bf16.mxu0 %v5533
        %5750 = vmatmul.mubr.bf16.gmra.mrb[0].mxu0 %v5532
        %v5751 = vpop.f32.mrb[0].mxu0
        %v5752 = vadd.f32 %v5595, %v5751
        %v5753 = vpop.f32.mrb[0].mxu0
        %v5754 = vpop.f32.mrb[0].mxu0
        %v5755 = vadd.f32 %v5595, %v5754
        %v5756 = vpop.f32.mrb[0].mxu0
        %5757 = vmatprep.mubr.bf16.mxu0 %v5535
        %5758 = vmatmul.mubr.bf16.gmra.mrb[0].mxu0 %v5534
        %v5759 = vpop.f32.mrb[0].mxu0
        %v5760 = vadd.f32 %v5595, %v5759
        %v5761 = vpop.f32.mrb[0].mxu0
        %v5762 = vpop.f32.mrb[0].mxu0
        %v5763 = vadd.f32 %v5595, %v5762
        %v5764 = vpop.f32.mrb[0].mxu0
        %5765 = vmatprep.mubr.bf16.mxu0 %v5537
        %5766 = vmatmul.mubr.bf16.gmra.mrb[0].mxu0 %v5536
        %v5767 = vpop.f32.mrb[0].mxu0
        %v5768 = vadd.f32 %v5595, %v5767
        %v5769 = vpop.f32.mrb[0].mxu0
        %v5770 = vpop.f32.mrb[0].mxu0
        %v5771 = vadd.f32 %v5595, %v5770
        %v5772 = vpop.f32.mrb[0].mxu0
        %5773 = vmatprep.mubr.bf16.mxu0 %v5539
        %5774 = vmatmul.mubr.bf16.gmra.mrb[0].mxu0 %v5538
        %v5775 = vpop.f32.mrb[0].mxu0
        %v5776 = vadd.f32 %v5595, %v5775
        %v5777 = vpop.f32.mrb[0].mxu0
        %v5778 = vpop.f32.mrb[0].mxu0
        %v5779 = vadd.f32 %v5595, %v5778
        %v5780 = vpop.f32.mrb[0].mxu0
        %5781 = vmatprep.mubr.bf16.mxu0 %v5541
        %5782 = vmatmul.mubr.bf16.gmra.mrb[0].mxu0 %v5540
        %v5783 = vpop.f32.mrb[0].mxu0
        %v5784 = vadd.f32 %v5595, %v5783
        %v5785 = vpop.f32.mrb[0].mxu0
        %v5786 = vpop.f32.mrb[0].mxu0
        %v5787 = vadd.f32 %v5595, %v5786
        %v5788 = vpop.f32.mrb[0].mxu0
        %5789 = vmatprep.mubr.bf16.mxu0 %v5543
        %5790 = vmatmul.mubr.bf16.gmra.mrb[0].mxu0 %v5542
        %v5791 = vpop.f32.mrb[0].mxu0
        %v5792 = vadd.f32 %v5595, %v5791
        %v5793 = vpop.f32.mrb[0].mxu0
        %v5794 = vpop.f32.mrb[0].mxu0
        %v5795 = vadd.f32 %v5595, %v5794
        %v5796 = vpop.f32.mrb[0].mxu0
        %5797 = vmatprep.mubr.bf16.mxu0 %v5545
        %5798 = vmatmul.mubr.bf16.gmra.mrb[0].mxu0 %v5544
        %v5799 = vpop.f32.mrb[0].mxu0
        %v5800 = vadd.f32 %v5595, %v5799
        %v5801 = vpop.f32.mrb[0].mxu0
        %v5802 = vpop.f32.mrb[0].mxu0
        %v5803 = vadd.f32 %v5595, %v5802
        %v5804 = vpop.f32.mrb[0].mxu0
        %5805 = vmatprep.mubr.bf16.mxu0 %v5547
        %5806 = vmatmul.mubr.bf16.gmra.mrb[0].mxu0 %v5546
        %v5807 = vpop.f32.mrb[0].mxu0
        %v5808 = vadd.f32 %v5595, %v5807
        %v5809 = vpop.f32.mrb[0].mxu0
        %v5810 = vpop.f32.mrb[0].mxu0
        %v5811 = vadd.f32 %v5595, %v5810
        %v5812 = vpop.f32.mrb[0].mxu0
        %5813 = vmatprep.mubr.bf16.mxu0 %v5549
        %5814 = vmatmul.mubr.bf16.gmra.mrb[0].mxu0 %v5548
        %v5815 = vpop.f32.mrb[0].mxu0
        %v5816 = vadd.f32 %v5595, %v5815
        %v5817 = vpop.f32.mrb[0].mxu0
        %v5818 = vpop.f32.mrb[0].mxu0
        %v5819 = vadd.f32 %v5595, %v5818
        %v5820 = vpop.f32.mrb[0].mxu0
        %5821 = vmatprep.mubr.bf16.mxu0 %v5551
        %5822 = vmatmul.mubr.bf16.gmra.mrb[0].mxu0 %v5550
        %v5823 = vpop.f32.mrb[0].mxu0
        %v5824 = vadd.f32 %v5595, %v5823
        %v5825 = vpop.f32.mrb[0].mxu0
        %v5826 = vpop.f32.mrb[0].mxu0
        %v5827 = vadd.f32 %v5595, %v5826
        %v5828 = vpop.f32.mrb[0].mxu0
        %5829 = vmatprep.mubr.bf16.mxu0 %v5553
        %5830 = vmatmul.mubr.bf16.gmra.mrb[0].mxu0 %v5552
        %v5831 = vpop.f32.mrb[0].mxu0
        %v5832 = vadd.f32 %v5595, %v5831
        %v5833 = vpop.f32.mrb[0].mxu0
        %v5834 = vpop.f32.mrb[0].mxu0
        %v5835 = vadd.f32 %v5595, %v5834
        %v5836 = vpop.f32.mrb[0].mxu0
        %5837 = vmatprep.mubr.bf16.mxu0 %v5555
        %5838 = vmatmul.mubr.bf16.gmra.mrb[0].mxu0 %v5554
        %v5839 = vpop.f32.mrb[0].mxu0
        %v5840 = vadd.f32 %v5595, %v5839
        %v5841 = vpop.f32.mrb[0].mxu0
        %v5842 = vpop.f32.mrb[0].mxu0
        %v5843 = vadd.f32 %v5595, %v5842
        %v5844 = vpop.f32.mrb[0].mxu0
        %5845 = vmatprep.mubr.bf16.mxu0 %v5557
        %5846 = vmatmul.mubr.bf16.gmra.mrb[0].mxu0 %v5556
        %v5847 = vpop.f32.mrb[0].mxu0
        %v5848 = vadd.f32 %v5595, %v5847
        %v5849 = vpop.f32.mrb[0].mxu0
        %v5850 = vpop.f32.mrb[0].mxu0
        %v5851 = vadd.f32 %v5595, %v5850
        %v5852 = vpop.f32.mrb[0].mxu0
        %5853 = vdwg.mxu0
        %v5854 = vadd.f32 %v2955, %v5728
        %v5855 = vadd.f32 %v2956, %v5731
        %v5856 = vadd.f32 %v2957, %v5736
        %v5857 = vadd.f32 %v2958, %v5739
        %v5858 = vadd.f32 %v2959, %v5744
        %v5859 = vadd.f32 %v2960, %v5747
        %v5860 = vadd.f32 %v2961, %v5752
        %v5861 = vadd.f32 %v2962, %v5755
        %v5862 = vadd.f32 %v2963, %v5760
        %v5863 = vadd.f32 %v2964, %v5763
        %v5864 = vadd.f32 %v2965, %v5768
        %v5865 = vadd.f32 %v2966, %v5771
        %v5866 = vadd.f32 %v2967, %v5776
        %v5867 = vadd.f32 %v2968, %v5779
        %v5868 = vadd.f32 %v2969, %v5784
        %v5869 = vadd.f32 %v2970, %v5787
        %v5870 = vadd.f32 %v2971, %v5792
        %v5871 = vadd.f32 %v2972, %v5795
        %v5872 = vadd.f32 %v2973, %v5800
        %v5873 = vadd.f32 %v2974, %v5803
        %v5874 = vadd.f32 %v2975, %v5808
        %v5875 = vadd.f32 %v2976, %v5811
        %v5876 = vadd.f32 %v2977, %v5816
        %v5877 = vadd.f32 %v2978, %v5819
        %v5878 = vadd.f32 %v2979, %v5824
        %v5879 = vadd.f32 %v2980, %v5827
        %v5880 = vadd.f32 %v2981, %v5832
        %v5881 = vadd.f32 %v2982, %v5835
        %v5882 = vadd.f32 %v2983, %v5840
        %v5883 = vadd.f32 %v2984, %v5843
        %v5884 = vadd.f32 %v2985, %v5848
        %v5885 = vadd.f32 %v2986, %v5851
        %5886 = vst [vmem:[%s721] sm:$0xff] %v5854
        %5887 = vst [vmem:[%s721 + $0x8] sm:$0xff] %v5855
        %5888 = vst [vmem:[%s721 + $0x10] sm:$0xff] %v5856
        %5889 = vst [vmem:[%s721 + $0x18] sm:$0xff] %v5857
        %5890 = vst [vmem:[%s721 + $0x20] sm:$0xff] %v5858
        %5891 = vst [vmem:[%s721 + $0x28] sm:$0xff] %v5859
        %5892 = vst [vmem:[%s721 + $0x30] sm:$0xff] %v5860
        %5893 = vst [vmem:[%s721 + $0x38] sm:$0xff] %v5861
        %5894 = vst [vmem:[%s721 + $0x40] sm:$0xff] %v5862
        %5895 = vst [vmem:[%s721 + $0x48] sm:$0xff] %v5863
        %5896 = vst [vmem:[%s721 + $0x50] sm:$0xff] %v5864
        %5897 = vst [vmem:[%s721 + $0x58] sm:$0xff] %v5865
        %5898 = vst [vmem:[%s721 + $0x60] sm:$0xff] %v5866
        %5899 = vst [vmem:[%s721 + $0x68] sm:$0xff] %v5867
        %5900 = vst [vmem:[%s721 + $0x70] sm:$0xff] %v5868
        %5901 = vst [vmem:[%s721 + $0x78] sm:$0xff] %v5869
        %5902 = vst [vmem:[%s721 + $0x80] sm:$0xff] %v5870
        %5903 = vst [vmem:[%s721 + $0x88] sm:$0xff] %v5871
        %5904 = vst [vmem:[%s721 + $0x90] sm:$0xff] %v5872
        %5905 = vst [vmem:[%s721 + $0x98] sm:$0xff] %v5873
        %5906 = vst [vmem:[%s721 + $0xa0] sm:$0xff] %v5874
        %5907 = vst [vmem:[%s721 + $0xa8] sm:$0xff] %v5875
        %5908 = vst [vmem:[%s721 + $0xb0] sm:$0xff] %v5876
        %5909 = vst [vmem:[%s721 + $0xb8] sm:$0xff] %v5877
        %5910 = vst [vmem:[%s721 + $0xc0] sm:$0xff] %v5878
        %5911 = vst [vmem:[%s721 + $0xc8] sm:$0xff] %v5879
        %5912 = vst [vmem:[%s721 + $0xd0] sm:$0xff] %v5880
        %5913 = vst [vmem:[%s721 + $0xd8] sm:$0xff] %v5881
        %5914 = vst [vmem:[%s721 + $0xe0] sm:$0xff] %v5882
        %5915 = vst [vmem:[%s721 + $0xe8] sm:$0xff] %v5883
        %5916 = vst [vmem:[%s721 + $0xf0] sm:$0xff] %v5884
        %5917 = vst [vmem:[%s721 + $0xf8] sm:$0xff] %v5885
        %s5918 = sand.u32 %s394, 1
        %s5919 = scalar_lea.sflag [#allocation4], %s5918
        %s5920 = sand.u32 %s394, 1
        %s5921 = smul.addr %s5920, 256
        %s5922 = scalar_lea.vmem [#allocation11], %s5921
        // Predicated region
        $region97: #{tpu_custom_call.1} parent=71 // pred_check
          %p5923 = pneg %p404
        $region98: #{tpu_custom_call.1} parent=71 // pred_check_branch
          %5925 = sbr.rel (%p5923) target = $region100
        $region99: #{tpu_custom_call.1} parent=71 // pred_region
          %s5926 = smul.u32 32, %s40
          %s5928 = ssub.s32 4096, 4096
          %5929 = vsyncadd %s5919, %s5928
          %s5930 = smul.addr %s5926, 128
          %s5931 = scalar_lea.hbm %s13, %s5930
          %s5932 = sshll.u32 %s5922, 4
          %s5933 = int_to_ptr.vmem [resolvable:$true] %s5932
          %5938 = dma.vmem_to_hbm [thread:$0]  %s5933, 4096, %s5931, %s5919, 128, 128, 8
        $region100: #{tpu_custom_call.1} parent=71 // pred_fallthru
          _
      $region72: #{tpu_custom_call.1} parent=5 // pred_fallthru
        _
      %p5939 = scmp.le.s32.totalorder 2, %s31
      // Predicated region
      $region101: #{tpu_custom_call.1} parent=5 // pred_check
        %p5940 = pneg %p5939
      $region102: #{tpu_custom_call.1} parent=5 // pred_check_branch
        %5942 = sbr.rel (%p5940) target = $region104
      $region103: #{tpu_custom_call.1} parent=5 // pred_region
        %s5943 = ssub.s32 %s31, 2
        // Predicated region
        $region105: #{tpu_custom_call.1} parent=103 // pred_check
          %p5944 = pneg %p410
        $region106: #{tpu_custom_call.1} parent=103 // pred_check_branch
          %5946 = sbr.rel (%p5944) target = $region108
        $region107: #{tpu_custom_call.1} parent=103 // pred_region
          %s5947 = sand.u32 %s395, 1
          %s5948 = scalar_lea.sflag [#allocation4], %s5947
          %s5949 = sand.u32 %s395, 1
          %s5950 = smul.addr %s5949, 256
          %s5951 = scalar_lea.vmem [#allocation11], %s5950
          %5952 = dma.done %s5948, 4096
        $region108: #{tpu_custom_call.1} parent=103 // pred_fallthru
          _
      $region104: #{tpu_custom_call.1} parent=5 // pred_fallthru
        _
    $region6: #{tpu_custom_call.1} parent=1 // loop_footer
      %s35 = sadd.s32 1, %s31
    $region7: #{tpu_custom_call.1} parent=1 // loop_footer_branch
      %30 = sbr.rel target = $region3
    $region8: #{tpu_custom_call.1} parent=1 // loop_exit
      _
    %5953 = vsyncpa [#allocation3], 1
    %s5954 = scalar_lea.sflag [#allocation3], 1
    %5955 = vsyncpa %s5954, 1
    %5956 = vsyncpa [#allocation6], 1
    %s5957 = scalar_lea.sflag [#allocation6], 1
    %5958 = vsyncpa %s5957, 1
    %5959 = vsyncpa [#allocation9], 1
    %s5960 = scalar_lea.sflag [#allocation9], 1
    %5961 = vsyncpa %s5960, 1
    %5962 = vsyncpa [#allocation4], 1
    %s5963 = scalar_lea.sflag [#allocation4], 1
    %5964 = vsyncpa %s5963, 1

</llo_original>
